<compile_context>
chip_gen: v7x
topology: tpu7x:2x2x1
jax: 0.10.0
libtpu: 0.0.40
codegen_flags: <defaults>
</compile_context>

<pallas_src>
import functools

import jax
import jax.numpy as jnp
from jax.experimental import pallas as pl
from jax.experimental.pallas import tpu as pltpu


LANE = 128
NEG_BIG = -1e30


def _round_up(v, m):
    return (v + m - 1) // m * m


def _pick_tile(npad):
    # npad is always a multiple of 128; pick the biggest tile that divides it.
    for t in (512, 384, 256, 128):
        if npad % t == 0:
            return t
    return npad


def _compiler_params(sem):
    return pltpu.CompilerParams(dimension_semantics=sem,
                                vmem_limit_bytes=32 * 1024 * 1024)


# ---------------------------------------------------------------------------
# Pallas kernels
# ---------------------------------------------------------------------------

def _xw_kernel(x_ref, w_ref, o_ref):
    """o = x @ W  (row-tiled; bf16 operands, f32 accumulate)."""
    o_ref[...] = jnp.dot(x_ref[...], w_ref[...],
                         preferred_element_type=jnp.float32).astype(o_ref.dtype)


def _agg_kernel(a_ref, xw_ref, b_ref, o_ref, acc_ref):
    """o = relu(A @ XW + b), tiled over (row tile i, K tile k)."""
    k = pl.program_id(1)

    @pl.when(k == 0)
    def _():
        acc_ref[...] = jnp.zeros_like(acc_ref)

    acc_ref[...] += jnp.dot(a_ref[...], xw_ref[...],
                            preferred_element_type=jnp.float32)

    @pl.when(k == pl.num_programs(1) - 1)
    def _():
        h = jnp.maximum(acc_ref[...] + b_ref[...], 0.0)
        o_ref[...] = h.astype(o_ref.dtype)


def _agg_next_kernel(a_ref, xw_ref, b_ref, wn_ref, o_ref, onext_ref, acc_ref):
    """Same as _agg_kernel but also emits h @ W_next (next layer's transform)."""
    k = pl.program_id(1)

    @pl.when(k == 0)
    def _():
        acc_ref[...] = jnp.zeros_like(acc_ref)

    acc_ref[...] += jnp.dot(a_ref[...], xw_ref[...],
                            preferred_element_type=jnp.float32)

    @pl.when(k == pl.num_programs(1) - 1)
    def _():
        h = jnp.maximum(acc_ref[...] + b_ref[...], 0.0).astype(jnp.bfloat16)
        o_ref[...] = h
        onext_ref[...] = jnp.dot(
            h, wn_ref[...], preferred_element_type=jnp.float32
        ).astype(onext_ref.dtype)


def _readout_kernel(x_ref, mask_ref, mask_t_ref, invcnt_ref, o_ref,
                    sum_ref, max_ref):
    """o = [global_max_pool ; global_mean_pool], accumulated over node row tiles."""
    i = pl.program_id(0)

    @pl.when(i == 0)
    def _():
        sum_ref[...] = jnp.zeros_like(sum_ref)
        max_ref[...] = jnp.full_like(max_ref, NEG_BIG)

    x32 = x_ref[...].astype(jnp.float32)                       # [T, F]

    # mean part: per-graph sums via MXU (mask is 0/1).
    sum_ref[...] += jnp.dot(mask_ref[...].astype(jnp.bfloat16), x_ref[...],
                            preferred_element_type=jnp.float32)

    # max part: per-graph additive mask; live footprint stays at T*F.
    mt = mask_t_ref[...]                                        # [T, B]
    nb = mt.shape[1]
    tmaxes = []
    for b in range(nb):                                         # B is small & static
        neg = (mt[:, b:b + 1] - 1.0) * 1e30                     # 0 if member else -1e30
        tmaxes.append(jnp.max(x32 + neg, axis=0, keepdims=True))  # [1, F]
    max_ref[...] = jnp.maximum(max_ref[...], jnp.concatenate(tmaxes, axis=0))

    @pl.when(i == pl.num_programs(0) - 1)
    def _():
        inv = invcnt_ref[...]                                   # [B, 1]; 0 => empty graph
        mean = sum_ref[...] * inv
        mx = jnp.where(inv > 0.0, max_ref[...], 0.0)
        o_ref[...] = jnp.concatenate([mx, mean], axis=1)        # single lane-dense store


def _head_kernel(num_classes, x1_ref, x2_ref, x3_ref,
                 w1_ref, b1_ref, w2_ref, b2_ref, w3_ref, b3_ref, o_ref):
    """relu(x1)+relu(x2)+relu(x3) -> lin1+relu -> lin2+relu -> lin3 -> log_softmax."""
    x = (jnp.maximum(x1_ref[...], 0.0)
         + jnp.maximum(x2_ref[...], 0.0)
         + jnp.maximum(x3_ref[...], 0.0))
    h = jnp.dot(x.astype(jnp.bfloat16), w1_ref[...],
                preferred_element_type=jnp.float32) + b1_ref[...]
    h = jnp.maximum(h, 0.0)
    # dropout (p=dropout_ratio) is identity at inference time
    h = jnp.dot(h.astype(jnp.bfloat16), w2_ref[...],
                preferred_element_type=jnp.float32) + b2_ref[...]
    h = jnp.maximum(h, 0.0)
    z = jnp.dot(h.astype(jnp.bfloat16), w3_ref[...],
                preferred_element_type=jnp.float32) + b3_ref[...]
    # mask padded class lanes so log_softmax normalizes over real classes only
    col = jax.lax.broadcasted_iota(jnp.int32, z.shape, 1)
    z = jnp.where(col < num_classes, z, NEG_BIG)
    z = z - jnp.max(z, axis=-1, keepdims=True)
    lse = jnp.log(jnp.sum(jnp.exp(z), axis=-1, keepdims=True))
    o_ref[...] = z - lse


# ---------------------------------------------------------------------------
# pallas_call wrappers
# ---------------------------------------------------------------------------

def xw_matmul(x, w, tile):
    npad, fin = x.shape
    fout = w.shape[1]
    return pl.pallas_call(
        _xw_kernel,
        out_shape=jax.ShapeDtypeStruct((npad, fout), jnp.bfloat16),
        grid_spec=pltpu.PrefetchScalarGridSpec(
            num_scalar_prefetch=0,
            grid=(npad // tile,),
            in_specs=[pl.BlockSpec((tile, fin), lambda i: (i, 0)),
                      pl.BlockSpec((fin, fout), lambda i: (0, 0))],
            out_specs=pl.BlockSpec((tile, fout), lambda i: (i, 0))),
        compiler_params=_compiler_params(("parallel",)),
    )(x, w)


def gcn_aggregate(a, xw, bias, w_next, tile):
    """relu(A @ XW + b); optionally also emits h @ W_next (fused next-layer transform)."""
    npad = a.shape[0]
    fout = xw.shape[1]
    grid = (npad // tile, npad // tile)
    in_specs = [
        pl.BlockSpec((tile, tile), lambda i, k: (i, k)),   # A tile (streamed from HBM)
        pl.BlockSpec((tile, fout), lambda i, k: (k, 0)),   # XW K-tile
        pl.BlockSpec((1, fout), lambda i, k: (0, 0)),      # bias (resident)
    ]
    out_h = pl.BlockSpec((tile, fout), lambda i, k: (i, 0))
    scratch = [pltpu.VMEM((tile, fout), jnp.float32)]
    cp = _compiler_params(("parallel", "arbitrary"))

    if w_next is None:
        return pl.pallas_call(
            _agg_kernel,
            out_shape=jax.ShapeDtypeStruct((npad, fout), jnp.bfloat16),
            grid_spec=pltpu.PrefetchScalarGridSpec(
                num_scalar_prefetch=0, grid=grid,
                in_specs=in_specs, out_specs=out_h, scratch_shapes=scratch),
            compiler_params=cp,
        )(a, xw, bias)

    fnext = w_next.shape[1]
    in_specs = in_specs + [pl.BlockSpec((fout, fnext), lambda i, k: (0, 0))]
    out_specs = (out_h, pl.BlockSpec((tile, fnext), lambda i, k: (i, 0)))
    return pl.pallas_call(
        _agg_next_kernel,
        out_shape=(jax.ShapeDtypeStruct((npad, fout), jnp.bfloat16),
                   jax.ShapeDtypeStruct((npad, fnext), jnp.bfloat16)),
        grid_spec=pltpu.PrefetchScalarGridSpec(
            num_scalar_prefetch=0, grid=grid,
            in_specs=in_specs, out_specs=out_specs, scratch_shapes=scratch),
        compiler_params=cp,
    )(a, xw, bias, w_next)


def readout(x, mask, mask_t, inv_cnt, tile):
    npad, f = x.shape
    nb = mask.shape[0]
    return pl.pallas_call(
        _readout_kernel,
        out_shape=jax.ShapeDtypeStruct((nb, 2 * f), jnp.float32),
        grid_spec=pltpu.PrefetchScalarGridSpec(
            num_scalar_prefetch=0,
            grid=(npad // tile,),
            in_specs=[pl.BlockSpec((tile, f), lambda i: (i, 0)),
                      pl.BlockSpec((nb, tile), lambda i: (0, i)),
                      pl.BlockSpec((tile, nb), lambda i: (i, 0)),
                      pl.BlockSpec((nb, 1), lambda i: (0, 0))],
            out_specs=pl.BlockSpec((nb, 2 * f), lambda i: (0, 0)),
            scratch_shapes=[pltpu.VMEM((nb, f), jnp.float32),
                            pltpu.VMEM((nb, f), jnp.float32)]),
        compiler_params=_compiler_params(("arbitrary",)),
    )(x, mask, mask_t, inv_cnt)


def mlp_head(x1, x2, x3, params, num_classes):
    nb = x1.shape[0]
    cpad = params["lin3_w"].shape[1]
    vmem = pl.BlockSpec(memory_space=pltpu.MemorySpace.VMEM)
    return pl.pallas_call(
        functools.partial(_head_kernel, num_classes),
        out_shape=jax.ShapeDtypeStruct((nb, cpad), jnp.float32),
        in_specs=[vmem] * 9,
        out_specs=vmem,
    )(x1, x2, x3,
      params["lin1_w"], params["lin1_b"],
      params["lin2_w"], params["lin2_b"],
      params["lin3_w"], params["lin3_b"])


# ---------------------------------------------------------------------------
# Plain-JAX glue: adjacency normalization, batch masks, parameter init
# ---------------------------------------------------------------------------

def normalized_adjacency(edge_index, num_nodes, num_nodes_padded, add_self_loops):
    """Dense D^{-1/2} A D^{-1/2}; out[i] = sum_{(j->i)} norm_e * x[j].  bf16 for the MXU."""
    # TODO(synk): dense XLA scatter is O(N^2) HBM traffic; use a sparse CSR Pallas
    #             aggregation (edges scalar-prefetched into SMEM) for large graphs.
    row, col = edge_index[0], edge_index[1]
    if add_self_loops:
        loop = jnp.arange(num_nodes, dtype=edge_index.dtype)
        row = jnp.concatenate([row, loop])
        col = jnp.concatenate([col, loop])
    ew = jnp.ones(row.shape[0], jnp.float32)
    deg = jnp.zeros((num_nodes_padded,), jnp.float32).at[row].add(ew)
    deg_inv_sqrt = jnp.where(deg > 0, deg ** -0.5, 0.0)
    norm = deg_inv_sqrt[row] * ew * deg_inv_sqrt[col]
    a = jnp.zeros((num_nodes_padded, num_nodes_padded), jnp.float32).at[col, row].add(norm)
    return a.astype(jnp.bfloat16)


def batch_masks(batch, num_graphs_padded, num_nodes_padded):
    n = batch.shape[0]
    batch_p = jnp.full((num_nodes_padded,), -1, dtype=batch.dtype).at[:n].set(batch)
    gid = jnp.arange(num_graphs_padded, dtype=batch.dtype)
    mask = (batch_p[None, :] == gid[:, None]).astype(jnp.float32)   # [Bpad, Npad]
    cnt = jnp.sum(mask, axis=1, keepdims=True)                       # [Bpad, 1]
    inv = jnp.where(cnt > 0, 1.0 / cnt, 0.0)
    return mask, jnp.transpose(mask), inv


def _xavier_block(key, real_shape, pad_shape):
    fi, fo = real_shape
    limit = (6.0 / (fi + fo)) ** 0.5
    w = jax.random.uniform(key, real_shape, jnp.float32, -limit, limit)
    return jnp.zeros(pad_shape, jnp.float32).at[:fi, :fo].set(w)


def init_params(key, num_features, nhid, num_classes):
    fin_p = _round_up(num_features, LANE)
    fh = _round_up(nhid, LANE)
    fh2 = _round_up(nhid // 2, LANE)
    cls_p = _round_up(num_classes, LANE)
    ks = jax.random.split(key, 6)

    p = {}
    p["conv1_w"] = _xavier_block(ks[0], (num_features, nhid), (fin_p, fh)).astype(jnp.bfloat16)
    p["conv1_b"] = jnp.zeros((1, fh), jnp.float32)
    p["conv2_w"] = _xavier_block(ks[1], (nhid, nhid), (fh, fh)).astype(jnp.bfloat16)
    p["conv2_b"] = jnp.zeros((1, fh), jnp.float32)
    p["conv3_w"] = _xavier_block(ks[2], (nhid, nhid), (fh, fh)).astype(jnp.bfloat16)
    p["conv3_b"] = jnp.zeros((1, fh), jnp.float32)

    # lin1 consumes readout layout [max(0:fh) ; mean(fh:2fh)]; real lanes are 0:nhid each.
    lim = (6.0 / (2 * nhid + nhid)) ** 0.5
    w1 = jax.random.uniform(ks[3], (2 * nhid, nhid), jnp.float32, -lim, lim)
    w1p = jnp.zeros((2 * fh, fh), jnp.float32)
    w1p = w1p.at[0:nhid, 0:nhid].set(w1[:nhid])
    w1p = w1p.at[fh:fh + nhid, 0:nhid].set(w1[nhid:])
    p["lin1_w"] = w1p.astype(jnp.bfloat16)
    p["lin1_b"] = jnp.zeros((1, fh), jnp.float32)

    p["lin2_w"] = _xavier_block(ks[4], (nhid, nhid // 2), (fh, fh2)).astype(jnp.bfloat16)
    p["lin2_b"] = jnp.zeros((1, fh2), jnp.float32)
    p["lin3_w"] = _xavier_block(ks[5], (nhid // 2, num_classes), (fh2, cls_p)).astype(jnp.bfloat16)
    p["lin3_b"] = jnp.zeros((1, cls_p), jnp.float32)
    return p


# ---------------------------------------------------------------------------
# Forward pass
# ---------------------------------------------------------------------------

@functools.partial(jax.jit, static_argnames=("num_graphs", "num_classes"))
def model_forward(params, x, edge_index, batch, num_graphs, num_classes):
    n, f_in = x.shape
    npad = _round_up(n, LANE)
    tile = _pick_tile(npad)
    bpad = _round_up(num_graphs, 8)
    fin_p = params["conv1_w"].shape[0]

    # zero-pad nodes/features and cast MXU operands to bf16
    xp = jnp.zeros((npad, fin_p), jnp.float32).at[:n, :f_in].set(x).astype(jnp.bfloat16)
    mask, mask_t, inv_cnt = batch_masks(batch, bpad, npad)

    a1 = normalized_adjacency(edge_index, n, npad, add_self_loops=True)   # GCNConv (conv1)
    a2 = normalized_adjacency(edge_index, n, npad, add_self_loops=False)  # GCN (conv2/conv3)

    # conv1 = GCNConv + ReLU; its aggregation kernel also emits conv2's X @ W (fused).
    xw1 = xw_matmul(xp, params["conv1_w"], tile)
    h1, xw2 = gcn_aggregate(a1, xw1, params["conv1_b"], params["conv2_w"], tile)
    # TODO(synk): HGPSLPool (pool1) is an identity pass-through (no reference impl given).
    x1 = readout(h1, mask, mask_t, inv_cnt, tile)

    # conv2 = GCN + ReLU, fused with conv3's X @ W.
    h2, xw3 = gcn_aggregate(a2, xw2, params["conv2_b"], params["conv3_w"], tile)
    # TODO(synk): HGPSLPool (pool2) is an identity pass-through (no reference impl given).
    x2 = readout(h2, mask, mask_t, inv_cnt, tile)

    # conv3 = GCN + ReLU.
    h3 = gcn_aggregate(a2, xw3, params["conv3_b"], None, tile)
    x3 = readout(h3, mask, mask_t, inv_cnt, tile)

    # relu-sum + lin1/relu + lin2/relu + lin3 + masked log_softmax (dropout = identity).
    logits = mlp_head(x1, x2, x3, params, num_classes)
    return logits[:num_graphs, :num_classes]


# ---------------------------------------------------------------------------
# Example run
# ---------------------------------------------------------------------------

if __name__ == "__main__":
    num_features = 16
    nhid = 32
    num_classes = 4
    num_nodes = 24
    num_graphs = 2

    key = jax.random.PRNGKey(0)
    k_param, k_x, k_edge = jax.random.split(key, 3)

    params = init_params(k_param, num_features, nhid, num_classes)

    # node features
    x = jax.random.normal(k_x, (num_nodes, num_features), jnp.float32)

    # random undirected edges (made symmetric), 12 nodes per graph
    num_rand_edges = 48
    src = jax.random.randint(k_edge, (num_rand_edges,), 0, num_nodes, dtype=jnp.int32)
    dst = jax.random.randint(jax.random.fold_in(k_edge, 1), (num_rand_edges,), 0,
                             num_nodes, dtype=jnp.int32)
    edge_index = jnp.stack([jnp.concatenate([src, dst]),
                            jnp.concatenate([dst, src])], axis=0)
    batch = jnp.concatenate([
        jnp.zeros((num_nodes // 2,), jnp.int32),
        jnp.ones((num_nodes - num_nodes // 2,), jnp.int32),
    ])

    out = model_forward(params, x, edge_index, batch, num_graphs, num_classes)
    out = jax.block_until_ready(out)

    assert out.shape == (num_graphs, num_classes)
    # log_softmax rows should (approximately) exponentiate-sum to 1
    row_sums = jnp.sum(jnp.exp(out), axis=-1)
    assert bool(jnp.all(jnp.abs(row_sums - 1.0) < 2e-3))

    print("KERNEL_OK")
</pallas_src>

<mosaic_0001>
module attributes {stable_mosaic.version = 11 : i64} {
  func.func private @main(%arg0: i32) attributes {dimension_semantics = [#tpu.dimension_semantics<core_parallel>], iteration_bounds = array<i64: 2>, tpu.core_type = #tpu.core_type<sc_scalar_subcore>, window_params = []} {
    return
  }
}

module attributes {stable_mosaic.version = 11 : i64} {
  func.func private @main(%arg0: i32) attributes {dimension_semantics = [#tpu.dimension_semantics<core_parallel>], iteration_bounds = array<i64: 2>, tpu.core_type = #tpu.core_type<sc_scalar_subcore>, window_params = []} {
    return
  }
}

module attributes {stable_mosaic.version = 11 : i64} {
  func.func @_agg_next_kernel(%arg0: i32, %arg1: i32, %arg2: memref<128x128xbf16, #tpu.memory_space<vmem>>, %arg3: memref<128x128xbf16, #tpu.memory_space<vmem>>, %arg4: memref<1x128xf32, #tpu.memory_space<vmem>>, %arg5: memref<128x128xbf16, #tpu.memory_space<vmem>>, %arg6: memref<128x128xbf16, #tpu.memory_space<vmem>>, %arg7: memref<128x128xbf16, #tpu.memory_space<vmem>>, %arg8: memref<128x128xf32, #tpu.memory_space<vmem>>) attributes {dimension_semantics = [#tpu.dimension_semantics<parallel>, #tpu.dimension_semantics<arbitrary>], iteration_bounds = array<i64: 1, 1>, scalar_prefetch = 0 : i64, scratch_operands = 1 : i64, tpu.core_type = #tpu.core_type<tc>, window_params = [{transform_indices = @transform_0, window_bounds = array<i64: 128, 128>}, {transform_indices = @transform_1, window_bounds = array<i64: 128, 128>}, {pipeline_mode = #tpu.pipeline_mode<synchronous>, transform_indices = @transform_2, window_bounds = array<i64: 1, 128>}, {pipeline_mode = #tpu.pipeline_mode<synchronous>, transform_indices = @transform_3, window_bounds = array<i64: 128, 128>}, {transform_indices = @transform_4, window_bounds = array<i64: 128, 128>}, {transform_indices = @transform_5, window_bounds = array<i64: 128, 128>}]} {
    %c0_i32 = arith.constant 0 : i32
    %0 = arith.cmpi eq, %arg1, %c0_i32 : i32
    %1 = arith.extui %0 : i1 to i32
    %c0_i32_0 = arith.constant 0 : i32
    %2 = arith.cmpi ne, %1, %c0_i32_0 : i32
    scf.if %2 {
      %cst_10 = arith.constant 0.000000e+00 : f32
      %12 = vector.broadcast %cst_10 : f32 to vector<128x128xf32>
      %c0_11 = arith.constant 0 : index
      %c0_12 = arith.constant 0 : index
      %13 = vector.load %arg8[%c0_11, %c0_12] : memref<128x128xf32, #tpu.memory_space<vmem>>, vector<128x128xf32>
      tpu.vector_store %arg8[%c0_11, %c0_12], %12 {strides = array<i32>} : memref<128x128xf32, #tpu.memory_space<vmem>>, vector<128x128xf32>,
    } else {
    }
    %c0 = arith.constant 0 : index
    %c0_1 = arith.constant 0 : index
    %3 = vector.load %arg8[%c0, %c0_1] : memref<128x128xf32, #tpu.memory_space<vmem>>, vector<128x128xf32>
    %c0_2 = arith.constant 0 : index
    %c0_3 = arith.constant 0 : index
    %4 = vector.load %arg2[%c0_2, %c0_3] : memref<128x128xbf16, #tpu.memory_space<vmem>>, vector<128x128xbf16>
    %c0_4 = arith.constant 0 : index
    %c0_5 = arith.constant 0 : index
    %5 = vector.load %arg3[%c0_4, %c0_5] : memref<128x128xbf16, #tpu.memory_space<vmem>>, vector<128x128xbf16>
    %cst = arith.constant dense<0.000000e+00> : vector<128x128xf32>
    %6 = tpu.matmul %4, %5, %cst {dimension_numbers = #tpu.dot_dimension_numbers<[1], [0], [0], [1], [0, 0, 1, 1], [], []>} : vector<128x128xbf16>, vector<128x128xbf16>, vector<128x128xf32> -> vector<128x128xf32>
    %7 = arith.addf %3, %6 : vector<128x128xf32>
    %c0_6 = arith.constant 0 : index
    %c0_7 = arith.constant 0 : index
    %8 = vector.load %arg8[%c0_6, %c0_7] : memref<128x128xf32, #tpu.memory_space<vmem>>, vector<128x128xf32>
    tpu.vector_store %arg8[%c0_6, %c0_7], %7 {strides = array<i32>} : memref<128x128xf32, #tpu.memory_space<vmem>>, vector<128x128xf32>,
    %c0_i32_8 = arith.constant 0 : i32
    %9 = arith.cmpi eq, %arg1, %c0_i32_8 : i32
    %10 = arith.extui %9 : i1 to i32
    %c0_i32_9 = arith.constant 0 : i32
    %11 = arith.cmpi ne, %10, %c0_i32_9 : i32
    scf.if %11 {
      %c0_10 = arith.constant 0 : index
      %c0_11 = arith.constant 0 : index
      %12 = vector.load %arg8[%c0_10, %c0_11] : memref<128x128xf32, #tpu.memory_space<vmem>>, vector<128x128xf32>
      %c0_12 = arith.constant 0 : index
      %c0_13 = arith.constant 0 : index
      %13 = vector.load %arg4[%c0_12, %c0_13] : memref<1x128xf32, #tpu.memory_space<vmem>>, vector<1x128xf32>
      %14 = vector.broadcast %13 : vector<1x128xf32> to vector<128x128xf32>
      %15 = arith.addf %12, %14 : vector<128x128xf32>
      %cst_14 = arith.constant 0.000000e+00 : f32
      %16 = vector.broadcast %cst_14 : f32 to vector<128x128xf32>
      %17 = arith.maximumf %15, %16 : vector<128x128xf32>
      %18 = arith.truncf %17 : vector<128x128xf32> to vector<128x128xbf16>
      %c0_15 = arith.constant 0 : index
      %c0_16 = arith.constant 0 : index
      %19 = vector.load %arg6[%c0_15, %c0_16] : memref<128x128xbf16, #tpu.memory_space<vmem>>, vector<128x128xbf16>
      tpu.vector_store %arg6[%c0_15, %c0_16], %18 {strides = array<i32>} : memref<128x128xbf16, #tpu.memory_space<vmem>>, vector<128x128xbf16>,
      %c0_17 = arith.constant 0 : index
      %c0_18 = arith.constant 0 : index
      %20 = vector.load %arg5[%c0_17, %c0_18] : memref<128x128xbf16, #tpu.memory_space<vmem>>, vector<128x128xbf16>
      %cst_19 = arith.constant dense<0.000000e+00> : vector<128x128xf32>
      %21 = tpu.matmul %18, %20, %cst_19 {dimension_numbers = #tpu.dot_dimension_numbers<[1], [0], [0], [1], [0, 0, 1, 1], [], []>} : vector<128x128xbf16>, vector<128x128xbf16>, vector<128x128xf32> -> vector<128x128xf32>
      %22 = arith.truncf %21 : vector<128x128xf32> to vector<128x128xbf16>
      %c0_20 = arith.constant 0 : index
      %c0_21 = arith.constant 0 : index
      %23 = vector.load %arg7[%c0_20, %c0_21] : memref<128x128xbf16, #tpu.memory_space<vmem>>, vector<128x128xbf16>
      tpu.vector_store %arg7[%c0_20, %c0_21], %22 {strides = array<i32>} : memref<128x128xbf16, #tpu.memory_space<vmem>>, vector<128x128xbf16>,
    } else {
    }
    return
  }
  func.func @transform_0(%arg0: i32, %arg1: i32) -> (i32, i32) {
    %c0_i32 = arith.constant 0 : i32
    return %arg0, %arg1 : i32, i32
  }
  func.func @transform_1(%arg0: i32, %arg1: i32) -> (i32, i32) {
    %c0_i32 = arith.constant 0 : i32
    %c0_i32_0 = arith.constant 0 : i32
    return %arg1, %c0_i32 : i32, i32
  }
  func.func @transform_2(%arg0: i32, %arg1: i32) -> (i32, i32) {
    %c0_i32 = arith.constant 0 : i32
    %c0_i32_0 = arith.constant 0 : i32
    %c0_i32_1 = arith.constant 0 : i32
    return %c0_i32, %c0_i32_0 : i32, i32
  }
  func.func @transform_3(%arg0: i32, %arg1: i32) -> (i32, i32) {
    %c0_i32 = arith.constant 0 : i32
    %c0_i32_0 = arith.constant 0 : i32
    %c0_i32_1 = arith.constant 0 : i32
    return %c0_i32, %c0_i32_0 : i32, i32
  }
  func.func @transform_4(%arg0: i32, %arg1: i32) -> (i32, i32) {
    %c0_i32 = arith.constant 0 : i32
    %c0_i32_0 = arith.constant 0 : i32
    return %arg0, %c0_i32 : i32, i32
  }
  func.func @transform_5(%arg0: i32, %arg1: i32) -> (i32, i32) {
    %c0_i32 = arith.constant 0 : i32
    %c0_i32_0 = arith.constant 0 : i32
    return %arg0, %c0_i32 : i32, i32
  }
}

module attributes {stable_mosaic.version = 11 : i64} {
  func.func @_readout_kernel(%arg0: i32, %arg1: memref<128x128xbf16, #tpu.memory_space<vmem>>, %arg2: memref<8x128xf32, #tpu.memory_space<vmem>>, %arg3: memref<128x8xf32, #tpu.memory_space<vmem>>, %arg4: memref<8x1xf32, #tpu.memory_space<vmem>>, %arg5: memref<8x256xf32, #tpu.memory_space<vmem>>, %arg6: memref<8x128xf32, #tpu.memory_space<vmem>>, %arg7: memref<8x128xf32, #tpu.memory_space<vmem>>) attributes {dimension_semantics = [#tpu.dimension_semantics<arbitrary>], iteration_bounds = array<i64: 1>, scalar_prefetch = 0 : i64, scratch_operands = 2 : i64, tpu.core_type = #tpu.core_type<tc>, window_params = [{transform_indices = @transform_0, window_bounds = array<i64: 128, 128>}, {transform_indices = @transform_1, window_bounds = array<i64: 8, 128>}, {transform_indices = @transform_2, window_bounds = array<i64: 128, 8>}, {pipeline_mode = #tpu.pipeline_mode<synchronous>, transform_indices = @transform_3, window_bounds = array<i64: 8, 1>}, {pipeline_mode = #tpu.pipeline_mode<synchronous>, transform_indices = @transform_4, window_bounds = array<i64: 8, 256>}]} {
    %c0_i32 = arith.constant 0 : i32
    %0 = arith.cmpi eq, %arg0, %c0_i32 : i32
    %1 = arith.extui %0 : i1 to i32
    %c0_i32_0 = arith.constant 0 : i32
    %2 = arith.cmpi ne, %1, %c0_i32_0 : i32
    scf.if %2 {
      %cst_42 = arith.constant 0.000000e+00 : f32
      %92 = vector.broadcast %cst_42 : f32 to vector<8x128xf32>
      %c0_43 = arith.constant 0 : index
      %c0_44 = arith.constant 0 : index
      %93 = vector.load %arg6[%c0_43, %c0_44] : memref<8x128xf32, #tpu.memory_space<vmem>>, vector<8x128xf32>
      tpu.vector_store %arg6[%c0_43, %c0_44], %92 {strides = array<i32>} : memref<8x128xf32, #tpu.memory_space<vmem>>, vector<8x128xf32>,
      %cst_45 = arith.constant -1.000000e+30 : f32
      %94 = vector.broadcast %cst_45 : f32 to vector<8x128xf32>
      %c0_46 = arith.constant 0 : index
      %c0_47 = arith.constant 0 : index
      %95 = vector.load %arg7[%c0_46, %c0_47] : memref<8x128xf32, #tpu.memory_space<vmem>>, vector<8x128xf32>
      tpu.vector_store %arg7[%c0_46, %c0_47], %94 {strides = array<i32>} : memref<8x128xf32, #tpu.memory_space<vmem>>, vector<8x128xf32>,
    } else {
    }
    %c0 = arith.constant 0 : index
    %c0_1 = arith.constant 0 : index
    %3 = vector.load %arg1[%c0, %c0_1] : memref<128x128xbf16, #tpu.memory_space<vmem>>, vector<128x128xbf16>
    %4 = arith.extf %3 : vector<128x128xbf16> to vector<128x128xf32>
    %c0_2 = arith.constant 0 : index
    %c0_3 = arith.constant 0 : index
    %5 = vector.load %arg6[%c0_2, %c0_3] : memref<8x128xf32, #tpu.memory_space<vmem>>, vector<8x128xf32>
    %c0_4 = arith.constant 0 : index
    %c0_5 = arith.constant 0 : index
    %6 = vector.load %arg2[%c0_4, %c0_5] : memref<8x128xf32, #tpu.memory_space<vmem>>, vector<8x128xf32>
    %7 = arith.truncf %6 : vector<8x128xf32> to vector<8x128xbf16>
    %c0_6 = arith.constant 0 : index
    %c0_7 = arith.constant 0 : index
    %8 = vector.load %arg1[%c0_6, %c0_7] : memref<128x128xbf16, #tpu.memory_space<vmem>>, vector<128x128xbf16>
    %cst = arith.constant dense<0.000000e+00> : vector<8x128xf32>
    %9 = tpu.matmul %7, %8, %cst {dimension_numbers = #tpu.dot_dimension_numbers<[1], [0], [0], [1], [0, 0, 1, 1], [], []>} : vector<8x128xbf16>, vector<128x128xbf16>, vector<8x128xf32> -> vector<8x128xf32>
    %10 = arith.addf %5, %9 : vector<8x128xf32>
    %c0_8 = arith.constant 0 : index
    %c0_9 = arith.constant 0 : index
    %11 = vector.load %arg6[%c0_8, %c0_9] : memref<8x128xf32, #tpu.memory_space<vmem>>, vector<8x128xf32>
    tpu.vector_store %arg6[%c0_8, %c0_9], %10 {strides = array<i32>} : memref<8x128xf32, #tpu.memory_space<vmem>>, vector<8x128xf32>,
    %c0_10 = arith.constant 0 : index
    %c0_11 = arith.constant 0 : index
    %12 = vector.load %arg3[%c0_10, %c0_11] : memref<128x8xf32, #tpu.memory_space<vmem>>, vector<128x8xf32>
    %13 = vector.extract_strided_slice %12 {offsets = [0, 0], sizes = [128, 1], strides = [1, 1]} : vector<128x8xf32> to vector<128x1xf32>
    %cst_12 = arith.constant 1.000000e+00 : f32
    %14 = vector.broadcast %cst_12 : f32 to vector<128x1xf32>
    %15 = arith.subf %13, %14 : vector<128x1xf32>
    %cst_13 = arith.constant 1.000000e+30 : f32
    %16 = vector.broadcast %cst_13 : f32 to vector<128x1xf32>
    %17 = arith.mulf %15, %16 : vector<128x1xf32>
    %18 = vector.broadcast %17 : vector<128x1xf32> to vector<128x128xf32>
    %19 = arith.addf %4, %18 : vector<128x128xf32>
    %cst_14 = arith.constant dense<0xFF800000> : vector<128xf32>
    %20 = vector.multi_reduction <maximumf>, %19, %cst_14 [0] : vector<128x128xf32> to vector<128xf32>
    %21 = vector.shape_cast %20 : vector<128xf32> to vector<1x128xf32>
    %22 = vector.extract_strided_slice %12 {offsets = [0, 1], sizes = [128, 1], strides = [1, 1]} : vector<128x8xf32> to vector<128x1xf32>
    %cst_15 = arith.constant 1.000000e+00 : f32
    %23 = vector.broadcast %cst_15 : f32 to vector<128x1xf32>
    %24 = arith.subf %22, %23 : vector<128x1xf32>
    %cst_16 = arith.constant 1.000000e+30 : f32
    %25 = vector.broadcast %cst_16 : f32 to vector<128x1xf32>
    %26 = arith.mulf %24, %25 : vector<128x1xf32>
    %27 = vector.broadcast %26 : vector<128x1xf32> to vector<128x128xf32>
    %28 = arith.addf %4, %27 : vector<128x128xf32>
    %cst_17 = arith.constant dense<0xFF800000> : vector<128xf32>
    %29 = vector.multi_reduction <maximumf>, %28, %cst_17 [0] : vector<128x128xf32> to vector<128xf32>
    %30 = vector.shape_cast %29 : vector<128xf32> to vector<1x128xf32>
    %31 = vector.extract_strided_slice %12 {offsets = [0, 2], sizes = [128, 1], strides = [1, 1]} : vector<128x8xf32> to vector<128x1xf32>
    %cst_18 = arith.constant 1.000000e+00 : f32
    %32 = vector.broadcast %cst_18 : f32 to vector<128x1xf32>
    %33 = arith.subf %31, %32 : vector<128x1xf32>
    %cst_19 = arith.constant 1.000000e+30 : f32
    %34 = vector.broadcast %cst_19 : f32 to vector<128x1xf32>
    %35 = arith.mulf %33, %34 : vector<128x1xf32>
    %36 = vector.broadcast %35 : vector<128x1xf32> to vector<128x128xf32>
    %37 = arith.addf %4, %36 : vector<128x128xf32>
    %cst_20 = arith.constant dense<0xFF800000> : vector<128xf32>
    %38 = vector.multi_reduction <maximumf>, %37, %cst_20 [0] : vector<128x128xf32> to vector<128xf32>
    %39 = vector.shape_cast %38 : vector<128xf32> to vector<1x128xf32>
    %40 = vector.extract_strided_slice %12 {offsets = [0, 3], sizes = [128, 1], strides = [1, 1]} : vector<128x8xf32> to vector<128x1xf32>
    %cst_21 = arith.constant 1.000000e+00 : f32
    %41 = vector.broadcast %cst_21 : f32 to vector<128x1xf32>
    %42 = arith.subf %40, %41 : vector<128x1xf32>
    %cst_22 = arith.constant 1.000000e+30 : f32
    %43 = vector.broadcast %cst_22 : f32 to vector<128x1xf32>
    %44 = arith.mulf %42, %43 : vector<128x1xf32>
    %45 = vector.broadcast %44 : vector<128x1xf32> to vector<128x128xf32>
    %46 = arith.addf %4, %45 : vector<128x128xf32>
    %cst_23 = arith.constant dense<0xFF800000> : vector<128xf32>
    %47 = vector.multi_reduction <maximumf>, %46, %cst_23 [0] : vector<128x128xf32> to vector<128xf32>
    %48 = vector.shape_cast %47 : vector<128xf32> to vector<1x128xf32>
    %49 = vector.extract_strided_slice %12 {offsets = [0, 4], sizes = [128, 1], strides = [1, 1]} : vector<128x8xf32> to vector<128x1xf32>
    %cst_24 = arith.constant 1.000000e+00 : f32
    %50 = vector.broadcast %cst_24 : f32 to vector<128x1xf32>
    %51 = arith.subf %49, %50 : vector<128x1xf32>
    %cst_25 = arith.constant 1.000000e+30 : f32
    %52 = vector.broadcast %cst_25 : f32 to vector<128x1xf32>
    %53 = arith.mulf %51, %52 : vector<128x1xf32>
    %54 = vector.broadcast %53 : vector<128x1xf32> to vector<128x128xf32>
    %55 = arith.addf %4, %54 : vector<128x128xf32>
    %cst_26 = arith.constant dense<0xFF800000> : vector<128xf32>
    %56 = vector.multi_reduction <maximumf>, %55, %cst_26 [0] : vector<128x128xf32> to vector<128xf32>
    %57 = vector.shape_cast %56 : vector<128xf32> to vector<1x128xf32>
    %58 = vector.extract_strided_slice %12 {offsets = [0, 5], sizes = [128, 1], strides = [1, 1]} : vector<128x8xf32> to vector<128x1xf32>
    %cst_27 = arith.constant 1.000000e+00 : f32
    %59 = vector.broadcast %cst_27 : f32 to vector<128x1xf32>
    %60 = arith.subf %58, %59 : vector<128x1xf32>
    %cst_28 = arith.constant 1.000000e+30 : f32
    %61 = vector.broadcast %cst_28 : f32 to vector<128x1xf32>
    %62 = arith.mulf %60, %61 : vector<128x1xf32>
    %63 = vector.broadcast %62 : vector<128x1xf32> to vector<128x128xf32>
    %64 = arith.addf %4, %63 : vector<128x128xf32>
    %cst_29 = arith.constant dense<0xFF800000> : vector<128xf32>
    %65 = vector.multi_reduction <maximumf>, %64, %cst_29 [0] : vector<128x128xf32> to vector<128xf32>
    %66 = vector.shape_cast %65 : vector<128xf32> to vector<1x128xf32>
    %67 = vector.extract_strided_slice %12 {offsets = [0, 6], sizes = [128, 1], strides = [1, 1]} : vector<128x8xf32> to vector<128x1xf32>
    %cst_30 = arith.constant 1.000000e+00 : f32
    %68 = vector.broadcast %cst_30 : f32 to vector<128x1xf32>
    %69 = arith.subf %67, %68 : vector<128x1xf32>
    %cst_31 = arith.constant 1.000000e+30 : f32
    %70 = vector.broadcast %cst_31 : f32 to vector<128x1xf32>
    %71 = arith.mulf %69, %70 : vector<128x1xf32>
    %72 = vector.broadcast %71 : vector<128x1xf32> to vector<128x128xf32>
    %73 = arith.addf %4, %72 : vector<128x128xf32>
    %cst_32 = arith.constant dense<0xFF800000> : vector<128xf32>
    %74 = vector.multi_reduction <maximumf>, %73, %cst_32 [0] : vector<128x128xf32> to vector<128xf32>
    %75 = vector.shape_cast %74 : vector<128xf32> to vector<1x128xf32>
    %76 = vector.extract_strided_slice %12 {offsets = [0, 7], sizes = [128, 1], strides = [1, 1]} : vector<128x8xf32> to vector<128x1xf32>
    %cst_33 = arith.constant 1.000000e+00 : f32
    %77 = vector.broadcast %cst_33 : f32 to vector<128x1xf32>
    %78 = arith.subf %76, %77 : vector<128x1xf32>
    %cst_34 = arith.constant 1.000000e+30 : f32
    %79 = vector.broadcast %cst_34 : f32 to vector<128x1xf32>
    %80 = arith.mulf %78, %79 : vector<128x1xf32>
    %81 = vector.broadcast %80 : vector<128x1xf32> to vector<128x128xf32>
    %82 = arith.addf %4, %81 : vector<128x128xf32>
    %cst_35 = arith.constant dense<0xFF800000> : vector<128xf32>
    %83 = vector.multi_reduction <maximumf>, %82, %cst_35 [0] : vector<128x128xf32> to vector<128xf32>
    %84 = vector.shape_cast %83 : vector<128xf32> to vector<1x128xf32>
    %c0_36 = arith.constant 0 : index
    %c0_37 = arith.constant 0 : index
    %85 = vector.load %arg7[%c0_36, %c0_37] : memref<8x128xf32, #tpu.memory_space<vmem>>, vector<8x128xf32>
    %86 = tpu.concatenate %21, %30, %39, %48, %57, %66, %75, %84 in 0 : vector<1x128xf32>, vector<1x128xf32>, vector<1x128xf32>, vector<1x128xf32>, vector<1x128xf32>, vector<1x128xf32>, vector<1x128xf32>, vector<1x128xf32> -> vector<8x128xf32>
    %87 = arith.maximumf %85, %86 : vector<8x128xf32>
    %c0_38 = arith.constant 0 : index
    %c0_39 = arith.constant 0 : index
    %88 = vector.load %arg7[%c0_38, %c0_39] : memref<8x128xf32, #tpu.memory_space<vmem>>, vector<8x128xf32>
    tpu.vector_store %arg7[%c0_38, %c0_39], %87 {strides = array<i32>} : memref<8x128xf32, #tpu.memory_space<vmem>>, vector<8x128xf32>,
    %c0_i32_40 = arith.constant 0 : i32
    %89 = arith.cmpi eq, %arg0, %c0_i32_40 : i32
    %90 = arith.extui %89 : i1 to i32
    %c0_i32_41 = arith.constant 0 : i32
    %91 = arith.cmpi ne, %90, %c0_i32_41 : i32
    scf.if %91 {
      %c0_42 = arith.constant 0 : index
      %c0_43 = arith.constant 0 : index
      %92 = vector.load %arg4[%c0_42, %c0_43] : memref<8x1xf32, #tpu.memory_space<vmem>>, vector<8x1xf32>
      %c0_44 = arith.constant 0 : index
      %c0_45 = arith.constant 0 : index
      %93 = vector.load %arg6[%c0_44, %c0_45] : memref<8x128xf32, #tpu.memory_space<vmem>>, vector<8x128xf32>
      %94 = vector.broadcast %92 : vector<8x1xf32> to vector<8x128xf32>
      %95 = arith.mulf %93, %94 : vector<8x128xf32>
      %cst_46 = arith.constant 0.000000e+00 : f32
      %96 = vector.broadcast %cst_46 : f32 to vector<8x1xf32>
      %97 = arith.cmpf ogt, %92, %96 : vector<8x1xf32>
      %c0_47 = arith.constant 0 : index
      %c0_48 = arith.constant 0 : index
      %98 = vector.load %arg7[%c0_47, %c0_48] : memref<8x128xf32, #tpu.memory_space<vmem>>, vector<8x128xf32>
      %cst_49 = arith.constant 0.000000e+00 : f32
      %99 = vector.shape_cast %97 : vector<8x1xi1> to vector<8x1xi1>
      %100 = vector.broadcast %99 : vector<8x1xi1> to vector<8x128xi1>
      %101 = vector.broadcast %cst_49 : f32 to vector<8x128xf32>
      %102 = arith.select %100, %98, %101 : vector<8x128xi1>, vector<8x128xf32>
      %103 = tpu.concatenate %102, %95 in 1 : vector<8x128xf32>, vector<8x128xf32> -> vector<8x256xf32>
      %c0_50 = arith.constant 0 : index
      %c0_51 = arith.constant 0 : index
      %104 = vector.load %arg5[%c0_50, %c0_51] : memref<8x256xf32, #tpu.memory_space<vmem>>, vector<8x256xf32>
      tpu.vector_store %arg5[%c0_50, %c0_51], %103 {strides = array<i32>} : memref<8x256xf32, #tpu.memory_space<vmem>>, vector<8x256xf32>,
    } else {
    }
    return
  }
  func.func @transform_0(%arg0: i32) -> (i32, i32) {
    %c0_i32 = arith.constant 0 : i32
    %c0_i32_0 = arith.constant 0 : i32
    return %arg0, %c0_i32 : i32, i32
  }
  func.func @transform_1(%arg0: i32) -> (i32, i32) {
    %c0_i32 = arith.constant 0 : i32
    %c0_i32_0 = arith.constant 0 : i32
    return %c0_i32, %arg0 : i32, i32
  }
  func.func @transform_2(%arg0: i32) -> (i32, i32) {
    %c0_i32 = arith.constant 0 : i32
    %c0_i32_0 = arith.constant 0 : i32
    return %arg0, %c0_i32 : i32, i32
  }
  func.func @transform_3(%arg0: i32) -> (i32, i32) {
    %c0_i32 = arith.constant 0 : i32
    %c0_i32_0 = arith.constant 0 : i32
    %c0_i32_1 = arith.constant 0 : i32
    return %c0_i32, %c0_i32_0 : i32, i32
  }
  func.func @transform_4(%arg0: i32) -> (i32, i32) {
    %c0_i32 = arith.constant 0 : i32
    %c0_i32_0 = arith.constant 0 : i32
    %c0_i32_1 = arith.constant 0 : i32
    return %c0_i32, %c0_i32_0 : i32, i32
  }
}

module attributes {stable_mosaic.version = 11 : i64} {
  func.func @_xw_kernel(%arg0: i32, %arg1: memref<128x128xbf16, #tpu.memory_space<vmem>>, %arg2: memref<128x128xbf16, #tpu.memory_space<vmem>>, %arg3: memref<128x128xbf16, #tpu.memory_space<vmem>>) attributes {dimension_semantics = [#tpu.dimension_semantics<parallel>], iteration_bounds = array<i64: 1>, scalar_prefetch = 0 : i64, scratch_operands = 0 : i64, tpu.core_type = #tpu.core_type<tc>, window_params = [{transform_indices = @transform_0, window_bounds = array<i64: 128, 128>}, {pipeline_mode = #tpu.pipeline_mode<synchronous>, transform_indices = @transform_1, window_bounds = array<i64: 128, 128>}, {transform_indices = @transform_2, window_bounds = array<i64: 128, 128>}]} {
    %c0 = arith.constant 0 : index
    %c0_0 = arith.constant 0 : index
    %0 = vector.load %arg1[%c0, %c0_0] : memref<128x128xbf16, #tpu.memory_space<vmem>>, vector<128x128xbf16>
    %c0_1 = arith.constant 0 : index
    %c0_2 = arith.constant 0 : index
    %1 = vector.load %arg2[%c0_1, %c0_2] : memref<128x128xbf16, #tpu.memory_space<vmem>>, vector<128x128xbf16>
    %cst = arith.constant dense<0.000000e+00> : vector<128x128xf32>
    %2 = tpu.matmul %0, %1, %cst {dimension_numbers = #tpu.dot_dimension_numbers<[1], [0], [0], [1], [0, 0, 1, 1], [], []>} : vector<128x128xbf16>, vector<128x128xbf16>, vector<128x128xf32> -> vector<128x128xf32>
    %3 = arith.truncf %2 : vector<128x128xf32> to vector<128x128xbf16>
    %c0_3 = arith.constant 0 : index
    %c0_4 = arith.constant 0 : index
    %4 = vector.load %arg3[%c0_3, %c0_4] : memref<128x128xbf16, #tpu.memory_space<vmem>>, vector<128x128xbf16>
    tpu.vector_store %arg3[%c0_3, %c0_4], %3 {strides = array<i32>} : memref<128x128xbf16, #tpu.memory_space<vmem>>, vector<128x128xbf16>,
    return
  }
  func.func @transform_0(%arg0: i32) -> (i32, i32) {
    %c0_i32 = arith.constant 0 : i32
    %c0_i32_0 = arith.constant 0 : i32
    return %arg0, %c0_i32 : i32, i32
  }
  func.func @transform_1(%arg0: i32) -> (i32, i32) {
    %c0_i32 = arith.constant 0 : i32
    %c0_i32_0 = arith.constant 0 : i32
    %c0_i32_1 = arith.constant 0 : i32
    return %c0_i32, %c0_i32_0 : i32, i32
  }
  func.func @transform_2(%arg0: i32) -> (i32, i32) {
    %c0_i32 = arith.constant 0 : i32
    %c0_i32_0 = arith.constant 0 : i32
    return %arg0, %c0_i32 : i32, i32
  }
}

module attributes {stable_mosaic.version = 11 : i64} {
  func.func @_agg_kernel(%arg0: i32, %arg1: i32, %arg2: memref<128x128xbf16, #tpu.memory_space<vmem>>, %arg3: memref<128x128xbf16, #tpu.memory_space<vmem>>, %arg4: memref<1x128xf32, #tpu.memory_space<vmem>>, %arg5: memref<128x128xbf16, #tpu.memory_space<vmem>>, %arg6: memref<128x128xf32, #tpu.memory_space<vmem>>) attributes {dimension_semantics = [#tpu.dimension_semantics<parallel>, #tpu.dimension_semantics<arbitrary>], iteration_bounds = array<i64: 1, 1>, scalar_prefetch = 0 : i64, scratch_operands = 1 : i64, tpu.core_type = #tpu.core_type<tc>, window_params = [{transform_indices = @transform_0, window_bounds = array<i64: 128, 128>}, {transform_indices = @transform_1, window_bounds = array<i64: 128, 128>}, {pipeline_mode = #tpu.pipeline_mode<synchronous>, transform_indices = @transform_2, window_bounds = array<i64: 1, 128>}, {transform_indices = @transform_3, window_bounds = array<i64: 128, 128>}]} {
    %c0_i32 = arith.constant 0 : i32
    %0 = arith.cmpi eq, %arg1, %c0_i32 : i32
    %1 = arith.extui %0 : i1 to i32
    %c0_i32_0 = arith.constant 0 : i32
    %2 = arith.cmpi ne, %1, %c0_i32_0 : i32
    scf.if %2 {
      %cst_10 = arith.constant 0.000000e+00 : f32
      %12 = vector.broadcast %cst_10 : f32 to vector<128x128xf32>
      %c0_11 = arith.constant 0 : index
      %c0_12 = arith.constant 0 : index
      %13 = vector.load %arg6[%c0_11, %c0_12] : memref<128x128xf32, #tpu.memory_space<vmem>>, vector<128x128xf32>
      tpu.vector_store %arg6[%c0_11, %c0_12], %12 {strides = array<i32>} : memref<128x128xf32, #tpu.memory_space<vmem>>, vector<128x128xf32>,
    } else {
    }
    %c0 = arith.constant 0 : index
    %c0_1 = arith.constant 0 : index
    %3 = vector.load %arg6[%c0, %c0_1] : memref<128x128xf32, #tpu.memory_space<vmem>>, vector<128x128xf32>
    %c0_2 = arith.constant 0 : index
    %c0_3 = arith.constant 0 : index
    %4 = vector.load %arg2[%c0_2, %c0_3] : memref<128x128xbf16, #tpu.memory_space<vmem>>, vector<128x128xbf16>
    %c0_4 = arith.constant 0 : index
    %c0_5 = arith.constant 0 : index
    %5 = vector.load %arg3[%c0_4, %c0_5] : memref<128x128xbf16, #tpu.memory_space<vmem>>, vector<128x128xbf16>
    %cst = arith.constant dense<0.000000e+00> : vector<128x128xf32>
    %6 = tpu.matmul %4, %5, %cst {dimension_numbers = #tpu.dot_dimension_numbers<[1], [0], [0], [1], [0, 0, 1, 1], [], []>} : vector<128x128xbf16>, vector<128x128xbf16>, vector<128x128xf32> -> vector<128x128xf32>
    %7 = arith.addf %3, %6 : vector<128x128xf32>
    %c0_6 = arith.constant 0 : index
    %c0_7 = arith.constant 0 : index
    %8 = vector.load %arg6[%c0_6, %c0_7] : memref<128x128xf32, #tpu.memory_space<vmem>>, vector<128x128xf32>
    tpu.vector_store %arg6[%c0_6, %c0_7], %7 {strides = array<i32>} : memref<128x128xf32, #tpu.memory_space<vmem>>, vector<128x128xf32>,
    %c0_i32_8 = arith.constant 0 : i32
    %9 = arith.cmpi eq, %arg1, %c0_i32_8 : i32
    %10 = arith.extui %9 : i1 to i32
    %c0_i32_9 = arith.constant 0 : i32
    %11 = arith.cmpi ne, %10, %c0_i32_9 : i32
    scf.if %11 {
      %c0_10 = arith.constant 0 : index
      %c0_11 = arith.constant 0 : index
      %12 = vector.load %arg6[%c0_10, %c0_11] : memref<128x128xf32, #tpu.memory_space<vmem>>, vector<128x128xf32>
      %c0_12 = arith.constant 0 : index
      %c0_13 = arith.constant 0 : index
      %13 = vector.load %arg4[%c0_12, %c0_13] : memref<1x128xf32, #tpu.memory_space<vmem>>, vector<1x128xf32>
      %14 = vector.broadcast %13 : vector<1x128xf32> to vector<128x128xf32>
      %15 = arith.addf %12, %14 : vector<128x128xf32>
      %cst_14 = arith.constant 0.000000e+00 : f32
      %16 = vector.broadcast %cst_14 : f32 to vector<128x128xf32>
      %17 = arith.maximumf %15, %16 : vector<128x128xf32>
      %18 = arith.truncf %17 : vector<128x128xf32> to vector<128x128xbf16>
      %c0_15 = arith.constant 0 : index
      %c0_16 = arith.constant 0 : index
      %19 = vector.load %arg5[%c0_15, %c0_16] : memref<128x128xbf16, #tpu.memory_space<vmem>>, vector<128x128xbf16>
      tpu.vector_store %arg5[%c0_15, %c0_16], %18 {strides = array<i32>} : memref<128x128xbf16, #tpu.memory_space<vmem>>, vector<128x128xbf16>,
    } else {
    }
    return
  }
  func.func @transform_0(%arg0: i32, %arg1: i32) -> (i32, i32) {
    %c0_i32 = arith.constant 0 : i32
    return %arg0, %arg1 : i32, i32
  }
  func.func @transform_1(%arg0: i32, %arg1: i32) -> (i32, i32) {
    %c0_i32 = arith.constant 0 : i32
    %c0_i32_0 = arith.constant 0 : i32
    return %arg1, %c0_i32 : i32, i32
  }
  func.func @transform_2(%arg0: i32, %arg1: i32) -> (i32, i32) {
    %c0_i32 = arith.constant 0 : i32
    %c0_i32_0 = arith.constant 0 : i32
    %c0_i32_1 = arith.constant 0 : i32
    return %c0_i32, %c0_i32_0 : i32, i32
  }
  func.func @transform_3(%arg0: i32, %arg1: i32) -> (i32, i32) {
    %c0_i32 = arith.constant 0 : i32
    %c0_i32_0 = arith.constant 0 : i32
    return %arg0, %c0_i32 : i32, i32
  }
}

module attributes {stable_mosaic.version = 11 : i64} {
  func.func @_head_kernel(%arg0: memref<8x256xf32, #tpu.memory_space<vmem>>, %arg1: memref<8x256xf32, #tpu.memory_space<vmem>>, %arg2: memref<8x256xf32, #tpu.memory_space<vmem>>, %arg3: memref<256x128xbf16, #tpu.memory_space<vmem>>, %arg4: memref<1x128xf32, #tpu.memory_space<vmem>>, %arg5: memref<128x128xbf16, #tpu.memory_space<vmem>>, %arg6: memref<1x128xf32, #tpu.memory_space<vmem>>, %arg7: memref<128x128xbf16, #tpu.memory_space<vmem>>, %arg8: memref<1x128xf32, #tpu.memory_space<vmem>>, %arg9: memref<8x128xf32, #tpu.memory_space<vmem>>) attributes {dimension_semantics = [], scalar_prefetch = 0 : i64, scratch_operands = 0 : i64, tpu.core_type = #tpu.core_type<tc>} {
    %c0 = arith.constant 0 : index
    %c0_0 = arith.constant 0 : index
    %0 = vector.load %arg0[%c0, %c0_0] : memref<8x256xf32, #tpu.memory_space<vmem>>, vector<8x256xf32>
    %cst = arith.constant 0.000000e+00 : f32
    %1 = vector.broadcast %cst : f32 to vector<8x256xf32>
    %2 = arith.maximumf %0, %1 : vector<8x256xf32>
    %c0_1 = arith.constant 0 : index
    %c0_2 = arith.constant 0 : index
    %3 = vector.load %arg1[%c0_1, %c0_2] : memref<8x256xf32, #tpu.memory_space<vmem>>, vector<8x256xf32>
    %cst_3 = arith.constant 0.000000e+00 : f32
    %4 = vector.broadcast %cst_3 : f32 to vector<8x256xf32>
    %5 = arith.maximumf %3, %4 : vector<8x256xf32>
    %6 = arith.addf %2, %5 : vector<8x256xf32>
    %c0_4 = arith.constant 0 : index
    %c0_5 = arith.constant 0 : index
    %7 = vector.load %arg2[%c0_4, %c0_5] : memref<8x256xf32, #tpu.memory_space<vmem>>, vector<8x256xf32>
    %cst_6 = arith.constant 0.000000e+00 : f32
    %8 = vector.broadcast %cst_6 : f32 to vector<8x256xf32>
    %9 = arith.maximumf %7, %8 : vector<8x256xf32>
    %10 = arith.addf %6, %9 : vector<8x256xf32>
    %11 = arith.truncf %10 : vector<8x256xf32> to vector<8x256xbf16>
    %c0_7 = arith.constant 0 : index
    %c0_8 = arith.constant 0 : index
    %12 = vector.load %arg3[%c0_7, %c0_8] : memref<256x128xbf16, #tpu.memory_space<vmem>>, vector<256x128xbf16>
    %cst_9 = arith.constant dense<0.000000e+00> : vector<8x128xf32>
    %13 = tpu.matmul %11, %12, %cst_9 {dimension_numbers = #tpu.dot_dimension_numbers<[1], [0], [0], [1], [0, 0, 1, 1], [], []>} : vector<8x256xbf16>, vector<256x128xbf16>, vector<8x128xf32> -> vector<8x128xf32>
    %c0_10 = arith.constant 0 : index
    %c0_11 = arith.constant 0 : index
    %14 = vector.load %arg4[%c0_10, %c0_11] : memref<1x128xf32, #tpu.memory_space<vmem>>, vector<1x128xf32>
    %15 = vector.broadcast %14 : vector<1x128xf32> to vector<8x128xf32>
    %16 = arith.addf %13, %15 : vector<8x128xf32>
    %cst_12 = arith.constant 0.000000e+00 : f32
    %17 = vector.broadcast %cst_12 : f32 to vector<8x128xf32>
    %18 = arith.maximumf %16, %17 : vector<8x128xf32>
    %19 = arith.truncf %18 : vector<8x128xf32> to vector<8x128xbf16>
    %c0_13 = arith.constant 0 : index
    %c0_14 = arith.constant 0 : index
    %20 = vector.load %arg5[%c0_13, %c0_14] : memref<128x128xbf16, #tpu.memory_space<vmem>>, vector<128x128xbf16>
    %cst_15 = arith.constant dense<0.000000e+00> : vector<8x128xf32>
    %21 = tpu.matmul %19, %20, %cst_15 {dimension_numbers = #tpu.dot_dimension_numbers<[1], [0], [0], [1], [0, 0, 1, 1], [], []>} : vector<8x128xbf16>, vector<128x128xbf16>, vector<8x128xf32> -> vector<8x128xf32>
    %c0_16 = arith.constant 0 : index
    %c0_17 = arith.constant 0 : index
    %22 = vector.load %arg6[%c0_16, %c0_17] : memref<1x128xf32, #tpu.memory_space<vmem>>, vector<1x128xf32>
    %23 = vector.broadcast %22 : vector<1x128xf32> to vector<8x128xf32>
    %24 = arith.addf %21, %23 : vector<8x128xf32>
    %cst_18 = arith.constant 0.000000e+00 : f32
    %25 = vector.broadcast %cst_18 : f32 to vector<8x128xf32>
    %26 = arith.maximumf %24, %25 : vector<8x128xf32>
    %27 = arith.truncf %26 : vector<8x128xf32> to vector<8x128xbf16>
    %c0_19 = arith.constant 0 : index
    %c0_20 = arith.constant 0 : index
    %28 = vector.load %arg7[%c0_19, %c0_20] : memref<128x128xbf16, #tpu.memory_space<vmem>>, vector<128x128xbf16>
    %cst_21 = arith.constant dense<0.000000e+00> : vector<8x128xf32>
    %29 = tpu.matmul %27, %28, %cst_21 {dimension_numbers = #tpu.dot_dimension_numbers<[1], [0], [0], [1], [0, 0, 1, 1], [], []>} : vector<8x128xbf16>, vector<128x128xbf16>, vector<8x128xf32> -> vector<8x128xf32>
    %c0_22 = arith.constant 0 : index
    %c0_23 = arith.constant 0 : index
    %30 = vector.load %arg8[%c0_22, %c0_23] : memref<1x128xf32, #tpu.memory_space<vmem>>, vector<1x128xf32>
    %31 = vector.broadcast %30 : vector<1x128xf32> to vector<8x128xf32>
    %32 = arith.addf %29, %31 : vector<8x128xf32>
    %33 = tpu.iota {dimensions = array<i32: 1>} : vector<8x128xi32>
    %c4_i32 = arith.constant 4 : i32
    %34 = vector.broadcast %c4_i32 : i32 to vector<8x128xi32>
    %35 = arith.cmpi slt, %33, %34 : vector<8x128xi32>
    %cst_24 = arith.constant -1.000000e+30 : f32
    %36 = vector.broadcast %cst_24 : f32 to vector<8x128xf32>
    %37 = arith.select %35, %32, %36 : vector<8x128xi1>, vector<8x128xf32>
    %cst_25 = arith.constant dense<0xFF800000> : vector<8xf32>
    %38 = vector.multi_reduction <maximumf>, %37, %cst_25 [1] : vector<8x128xf32> to vector<8xf32>
    %39 = vector.shape_cast %38 : vector<8xf32> to vector<8x1xf32>
    %40 = vector.broadcast %39 : vector<8x1xf32> to vector<8x128xf32>
    %41 = arith.subf %37, %40 : vector<8x128xf32>
    %42 = math.exp %41 : vector<8x128xf32>
    %cst_26 = arith.constant dense<0.000000e+00> : vector<8xf32>
    %43 = vector.multi_reduction <add>, %42, %cst_26 [1] : vector<8x128xf32> to vector<8xf32>
    %44 = vector.shape_cast %43 : vector<8xf32> to vector<8x1xf32>
    %45 = math.log %44 : vector<8x1xf32>
    %46 = vector.broadcast %45 : vector<8x1xf32> to vector<8x128xf32>
    %47 = arith.subf %41, %46 : vector<8x128xf32>
    %c0_27 = arith.constant 0 : index
    %c0_28 = arith.constant 0 : index
    %48 = vector.load %arg9[%c0_27, %c0_28] : memref<8x128xf32, #tpu.memory_space<vmem>>, vector<8x128xf32>
    tpu.vector_store %arg9[%c0_27, %c0_28], %47 {strides = array<i32>} : memref<8x128xf32, #tpu.memory_space<vmem>>, vector<8x128xf32>,
    return
  }
}

</mosaic_0001>

<llo_original>
// kernel: mul.2
$region0: #{mul.2}
  #allocation0 [shape = 's32[1]{0}', space=sflag, size = 0x4, scoped, tag = 'scoped memory for mul.2']
  %s0 = inlined_call_operand.vmem [shape: f32[120], index: 0, kind: input, shape index: {}]
  %s1 = inlined_call_operand.vmem [shape: f32[120], index: 1, kind: input, shape index: {}]
  %s2 = inlined_call_operand.vmem [shape: f32[120], index: 2, kind: output, shape index: {}]
  %v3 = vld [vmem:[%s0] sm:$0x1]
  %v4 = vld [vmem:[%s1] sm:$0x1]
  %5 = xla_tuple %v3, %v4
  %6 = xla_tuple %5
  %v7 = vmul.f32 %v3, %v4
  %8 = xla_tuple %v7
  %9 = vst [vmem:[%s2] sm:$0x1] %v7

// kernel: model_forward.9
$region0: #{model_forward.9}
  #allocation0 [shape = 'u32[]', space=smem, size = 0x4, offset = 0x4, fixed_abs, tag = 'smem constant byte address 0x4 - core index']
  #allocation1 [shape = 'u32[144,128]{1,0:T(1,128)}', space=vmem, size = 0x12000, scoped, tag = 'internal scratch']
  #allocation2 [shape = 'f32[128,128]{1,0:T(8,128)}', space=vmem, size = 0x10000, scoped, tag = 'scratch operand']
  %s0 = inlined_call_operand.vmem [shape: bf16[128,128], index: 0, kind: input, shape index: {}]
  %s1 = inlined_call_operand.vmem [shape: bf16[128,128], index: 1, kind: input, shape index: {}]
  %s2 = inlined_call_operand.vmem [shape: f32[1,128], index: 2, kind: input, shape index: {}]
  %s3 = inlined_call_operand.vmem [shape: bf16[128,128], index: 3, kind: input, shape index: {}]
  %s4 = inlined_call_operand.vmem [shape: bf16[128,128], index: 4, kind: output, shape index: {0}]
  %s5 = inlined_call_operand.vmem [shape: bf16[128,128], index: 5, kind: output, shape index: {1}]
  %6 = xla_tuple %s4, %s5
  %s7 = sld [smem:[#allocation0]]
  $region42: #{model_forward.9} parent=0
    _
  %s9 = ssub.s32 1, %s7
  %s10 = scalar_select 0, %s9, %s7
  // Predicated region
  $region2: #{model_forward.9} parent=0 // pred_check
    _
  $region3: #{model_forward.9} parent=0 // pred_check_branch
    %12 = sbr.rel (0) target = $region5
  $region4: #{model_forward.9} parent=0 // pred_region
    _
  $region5: #{model_forward.9} parent=0 // pred_fallthru
    _
  // Predicated region
  $region6: #{model_forward.9} parent=0 // pred_check
    _
  $region7: #{model_forward.9} parent=0 // pred_check_branch
    %14 = sbr.rel (0) target = $region9
  $region8: #{model_forward.9} parent=0 // pred_region
    _
  $region9: #{model_forward.9} parent=0 // pred_fallthru
    _
  // Predicated region
  $region10: #{model_forward.9} parent=0 // pred_check
    _
  $region11: #{model_forward.9} parent=0 // pred_check_branch
    %16 = sbr.rel (0) target = $region13
  $region12: #{model_forward.9} parent=0 // pred_region
    _
  $region13: #{model_forward.9} parent=0 // pred_fallthru
    _
  // Predicated region
  $region14: #{model_forward.9} parent=0 // pred_check
    _
  $region15: #{model_forward.9} parent=0 // pred_check_branch
    %18 = sbr.rel (0) target = $region17
  $region16: #{model_forward.9} parent=0 // pred_region
    _
  $region17: #{model_forward.9} parent=0 // pred_fallthru
    _
  %p20 = scmp.eq.s32.totalorder 0, 0
  // Predicated region
  $region18: #{model_forward.9} parent=0 // pred_check
    %p21 = pneg %p20
  $region19: #{model_forward.9} parent=0 // pred_check_branch
    %23 = sbr.rel (%p21) target = $region21
  $region20: #{model_forward.9} parent=0 // pred_region
    %24 = vst [vmem:[#allocation2] sm:$0xff] 0.0
    %25 = vst [vmem:[#allocation2 + $0x8] sm:$0xff] 0.0
    %26 = vst [vmem:[#allocation2 + $0x10] sm:$0xff] 0.0
    %27 = vst [vmem:[#allocation2 + $0x18] sm:$0xff] 0.0
    %28 = vst [vmem:[#allocation2 + $0x20] sm:$0xff] 0.0
    %29 = vst [vmem:[#allocation2 + $0x28] sm:$0xff] 0.0
    %30 = vst [vmem:[#allocation2 + $0x30] sm:$0xff] 0.0
    %31 = vst [vmem:[#allocation2 + $0x38] sm:$0xff] 0.0
    %32 = vst [vmem:[#allocation2 + $0x40] sm:$0xff] 0.0
    %33 = vst [vmem:[#allocation2 + $0x48] sm:$0xff] 0.0
    %34 = vst [vmem:[#allocation2 + $0x50] sm:$0xff] 0.0
    %35 = vst [vmem:[#allocation2 + $0x58] sm:$0xff] 0.0
    %36 = vst [vmem:[#allocation2 + $0x60] sm:$0xff] 0.0
    %37 = vst [vmem:[#allocation2 + $0x68] sm:$0xff] 0.0
    %38 = vst [vmem:[#allocation2 + $0x70] sm:$0xff] 0.0
    %39 = vst [vmem:[#allocation2 + $0x78] sm:$0xff] 0.0
  $region21: #{model_forward.9} parent=0 // pred_fallthru
    _
  %v40 = vld [vmem:[#allocation2] sm:$0xff]
  %v41 = vld [vmem:[#allocation2 + $0x8] sm:$0xff]
  %v42 = vld [vmem:[#allocation2 + $0x10] sm:$0xff]
  %v43 = vld [vmem:[#allocation2 + $0x18] sm:$0xff]
  %v44 = vld [vmem:[#allocation2 + $0x20] sm:$0xff]
  %v45 = vld [vmem:[#allocation2 + $0x28] sm:$0xff]
  %v46 = vld [vmem:[#allocation2 + $0x30] sm:$0xff]
  %v47 = vld [vmem:[#allocation2 + $0x38] sm:$0xff]
  %v48 = vld [vmem:[#allocation2 + $0x40] sm:$0xff]
  %v49 = vld [vmem:[#allocation2 + $0x48] sm:$0xff]
  %v50 = vld [vmem:[#allocation2 + $0x50] sm:$0xff]
  %v51 = vld [vmem:[#allocation2 + $0x58] sm:$0xff]
  %v52 = vld [vmem:[#allocation2 + $0x60] sm:$0xff]
  %v53 = vld [vmem:[#allocation2 + $0x68] sm:$0xff]
  %v54 = vld [vmem:[#allocation2 + $0x70] sm:$0xff]
  %v55 = vld [vmem:[#allocation2 + $0x78] sm:$0xff]
  %v56 = vld [vmem:[%s0] sm:$0xf]
  %v57 = vld [vmem:[%s0 + $0x4] sm:$0xf]
  %v58 = vld [vmem:[%s0 + $0x8] sm:$0xf]
  %v59 = vld [vmem:[%s0 + $0xc] sm:$0xf]
  %v60 = vld [vmem:[%s0 + $0x10] sm:$0xf]
  %v61 = vld [vmem:[%s0 + $0x14] sm:$0xf]
  %v62 = vld [vmem:[%s0 + $0x18] sm:$0xf]
  %v63 = vld [vmem:[%s0 + $0x1c] sm:$0xf]
  %v64 = vld [vmem:[%s0 + $0x20] sm:$0xf]
  %v65 = vld [vmem:[%s0 + $0x24] sm:$0xf]
  %v66 = vld [vmem:[%s0 + $0x28] sm:$0xf]
  %v67 = vld [vmem:[%s0 + $0x2c] sm:$0xf]
  %v68 = vld [vmem:[%s0 + $0x30] sm:$0xf]
  %v69 = vld [vmem:[%s0 + $0x34] sm:$0xf]
  %v70 = vld [vmem:[%s0 + $0x38] sm:$0xf]
  %v71 = vld [vmem:[%s0 + $0x3c] sm:$0xf]
  %v72 = vld [vmem:[%s1] sm:$0xf]
  %v73 = vld [vmem:[%s1 + $0x4] sm:$0xf]
  %v74 = vld [vmem:[%s1 + $0x8] sm:$0xf]
  %v75 = vld [vmem:[%s1 + $0xc] sm:$0xf]
  %v76 = vld [vmem:[%s1 + $0x10] sm:$0xf]
  %v77 = vld [vmem:[%s1 + $0x14] sm:$0xf]
  %v78 = vld [vmem:[%s1 + $0x18] sm:$0xf]
  %v79 = vld [vmem:[%s1 + $0x1c] sm:$0xf]
  %v80 = vld [vmem:[%s1 + $0x20] sm:$0xf]
  %v81 = vld [vmem:[%s1 + $0x24] sm:$0xf]
  %v82 = vld [vmem:[%s1 + $0x28] sm:$0xf]
  %v83 = vld [vmem:[%s1 + $0x2c] sm:$0xf]
  %v84 = vld [vmem:[%s1 + $0x30] sm:$0xf]
  %v85 = vld [vmem:[%s1 + $0x34] sm:$0xf]
  %v86 = vld [vmem:[%s1 + $0x38] sm:$0xf]
  %v87 = vld [vmem:[%s1 + $0x3c] sm:$0xf]
  %v104 = vunpack.c.l.b16 %v56
  %v105 = vunpack.c.l.b16 %v57
  %v106 = vunpack.c.l.b16 %v58
  %v107 = vunpack.c.l.b16 %v59
  %v108 = vunpack.c.l.b16 %v60
  %v109 = vunpack.c.l.b16 %v61
  %v110 = vunpack.c.l.b16 %v62
  %v111 = vunpack.c.l.b16 %v63
  %v112 = vunpack.c.l.b16 %v64
  %v113 = vunpack.c.l.b16 %v65
  %v114 = vunpack.c.l.b16 %v66
  %v115 = vunpack.c.l.b16 %v67
  %v116 = vunpack.c.l.b16 %v68
  %v117 = vunpack.c.l.b16 %v69
  %v118 = vunpack.c.l.b16 %v70
  %v119 = vunpack.c.l.b16 %v71
  %v120 = vpack.c.b16 %v105, %v104
  %v121 = vpack.c.b16 %v107, %v106
  %v122 = vpack.c.b16 %v109, %v108
  %v123 = vpack.c.b16 %v111, %v110
  %v124 = vpack.c.b16 %v113, %v112
  %v125 = vpack.c.b16 %v115, %v114
  %v126 = vpack.c.b16 %v117, %v116
  %v127 = vpack.c.b16 %v119, %v118
  %v152 = vunpack.c.l.b16 %v72
  %v153 = vunpack.c.l.b16 %v73
  %v154 = vunpack.c.l.b16 %v74
  %v155 = vunpack.c.l.b16 %v75
  %v156 = vunpack.c.l.b16 %v76
  %v157 = vunpack.c.l.b16 %v77
  %v158 = vunpack.c.l.b16 %v78
  %v159 = vunpack.c.l.b16 %v79
  %v160 = vunpack.c.l.b16 %v80
  %v161 = vunpack.c.l.b16 %v81
  %v162 = vunpack.c.l.b16 %v82
  %v163 = vunpack.c.l.b16 %v83
  %v164 = vunpack.c.l.b16 %v84
  %v165 = vunpack.c.l.b16 %v85
  %v166 = vunpack.c.l.b16 %v86
  %v167 = vunpack.c.l.b16 %v87
  %v168 = vpack.c.b16 %v153, %v152
  %v169 = vpack.c.b16 %v155, %v154
  %v170 = vpack.c.b16 %v157, %v156
  %v171 = vpack.c.b16 %v159, %v158
  %v172 = vpack.c.b16 %v161, %v160
  %v173 = vpack.c.b16 %v163, %v162
  %v174 = vpack.c.b16 %v165, %v164
  %v175 = vpack.c.b16 %v167, %v166
  %184 = vmatprep.subr.bf16.mxu0 0
  %185 = vmatpush1.bf16.msra.mxu0 %v168
  %186 = vmatprep.subr.bf16.mxu0 0
  %187 = vmatpush1.bf16.msra.mxu0 %v169
  %188 = vmatprep.subr.bf16.mxu0 0
  %189 = vmatpush1.bf16.msra.mxu0 %v170
  %190 = vmatprep.subr.bf16.mxu0 0
  %191 = vmatpush1.bf16.msra.mxu0 %v171
  %192 = vmatprep.subr.bf16.mxu0 0
  %193 = vmatpush1.bf16.msra.mxu0 %v172
  %194 = vmatprep.subr.bf16.mxu0 0
  %195 = vmatpush1.bf16.msra.mxu0 %v173
  %196 = vmatprep.subr.bf16.mxu0 0
  %197 = vmatpush1.bf16.msra.mxu0 %v174
  %198 = vmatprep.subr.bf16.mxu0 0
  %199 = vmatpush1.bf16.msra.mxu0 %v175
  %200 = vmatprep.subr.bf16.mxu0 0
  %201 = vmatpush1.bf16.msra.mxu0 0
  %202 = vmatprep.subr.bf16.mxu0 0
  %203 = vmatpush1.bf16.msra.mxu0 0
  %204 = vmatprep.subr.bf16.mxu0 0
  %205 = vmatpush1.bf16.msra.mxu0 0
  %206 = vmatprep.subr.bf16.mxu0 0
  %207 = vmatpush1.bf16.msra.mxu0 0
  %208 = vmatprep.subr.bf16.mxu0 0
  %209 = vmatpush1.bf16.msra.mxu0 0
  %210 = vmatprep.subr.bf16.mxu0 0
  %211 = vmatpush1.bf16.msra.mxu0 0
  %212 = vmatprep.subr.bf16.mxu0 0
  %213 = vmatpush1.bf16.msra.mxu0 0
  %214 = vmatprep.subr.bf16.mxu0 0
  %215 = vmatpush1.bf16.msra.mxu0 0
  %216 = vmatprep.mubr.bf16.mxu0 0
  %217 = vmatmul.mubr.bf16.gmra.mrb[0].mxu0 %v120
  %v218 = vpop.f32.mrb[0].mxu0
  %v219 = vadd.f32 0.0, %v218
  %v220 = vpop.f32.mrb[0].mxu0
  %v221 = vpop.f32.mrb[0].mxu0
  %v222 = vadd.f32 0.0, %v221
  %v223 = vpop.f32.mrb[0].mxu0
  %224 = vmatprep.mubr.bf16.mxu0 0
  %225 = vmatmul.mubr.bf16.gmra.mrb[0].mxu0 %v121
  %v226 = vpop.f32.mrb[0].mxu0
  %v227 = vadd.f32 0.0, %v226
  %v228 = vpop.f32.mrb[0].mxu0
  %v229 = vpop.f32.mrb[0].mxu0
  %v230 = vadd.f32 0.0, %v229
  %v231 = vpop.f32.mrb[0].mxu0
  %232 = vmatprep.mubr.bf16.mxu0 0
  %233 = vmatmul.mubr.bf16.gmra.mrb[0].mxu0 %v122
  %v234 = vpop.f32.mrb[0].mxu0
  %v235 = vadd.f32 0.0, %v234
  %v236 = vpop.f32.mrb[0].mxu0
  %v237 = vpop.f32.mrb[0].mxu0
  %v238 = vadd.f32 0.0, %v237
  %v239 = vpop.f32.mrb[0].mxu0
  %240 = vmatprep.mubr.bf16.mxu0 0
  %241 = vmatmul.mubr.bf16.gmra.mrb[0].mxu0 %v123
  %v242 = vpop.f32.mrb[0].mxu0
  %v243 = vadd.f32 0.0, %v242
  %v244 = vpop.f32.mrb[0].mxu0
  %v245 = vpop.f32.mrb[0].mxu0
  %v246 = vadd.f32 0.0, %v245
  %v247 = vpop.f32.mrb[0].mxu0
  %248 = vmatprep.mubr.bf16.mxu0 0
  %249 = vmatmul.mubr.bf16.gmra.mrb[0].mxu0 %v124
  %v250 = vpop.f32.mrb[0].mxu0
  %v251 = vadd.f32 0.0, %v250
  %v252 = vpop.f32.mrb[0].mxu0
  %v253 = vpop.f32.mrb[0].mxu0
  %v254 = vadd.f32 0.0, %v253
  %v255 = vpop.f32.mrb[0].mxu0
  %256 = vmatprep.mubr.bf16.mxu0 0
  %257 = vmatmul.mubr.bf16.gmra.mrb[0].mxu0 %v125
  %v258 = vpop.f32.mrb[0].mxu0
  %v259 = vadd.f32 0.0, %v258
  %v260 = vpop.f32.mrb[0].mxu0
  %v261 = vpop.f32.mrb[0].mxu0
  %v262 = vadd.f32 0.0, %v261
  %v263 = vpop.f32.mrb[0].mxu0
  %264 = vmatprep.mubr.bf16.mxu0 0
  %265 = vmatmul.mubr.bf16.gmra.mrb[0].mxu0 %v126
  %v266 = vpop.f32.mrb[0].mxu0
  %v267 = vadd.f32 0.0, %v266
  %v268 = vpop.f32.mrb[0].mxu0
  %v269 = vpop.f32.mrb[0].mxu0
  %v270 = vadd.f32 0.0, %v269
  %v271 = vpop.f32.mrb[0].mxu0
  %272 = vmatprep.mubr.bf16.mxu0 0
  %273 = vmatmul.mubr.bf16.gmra.mrb[0].mxu0 %v127
  %v274 = vpop.f32.mrb[0].mxu0
  %v275 = vadd.f32 0.0, %v274
  %v276 = vpop.f32.mrb[0].mxu0
  %v277 = vpop.f32.mrb[0].mxu0
  %v278 = vadd.f32 0.0, %v277
  %v279 = vpop.f32.mrb[0].mxu0
  %280 = vdwg.mxu0
  %v281 = vadd.f32 %v40, %v219
  %v282 = vadd.f32 %v41, %v222
  %v283 = vadd.f32 %v42, %v227
  %v284 = vadd.f32 %v43, %v230
  %v285 = vadd.f32 %v44, %v235
  %v286 = vadd.f32 %v45, %v238
  %v287 = vadd.f32 %v46, %v243
  %v288 = vadd.f32 %v47, %v246
  %v289 = vadd.f32 %v48, %v251
  %v290 = vadd.f32 %v49, %v254
  %v291 = vadd.f32 %v50, %v259
  %v292 = vadd.f32 %v51, %v262
  %v293 = vadd.f32 %v52, %v267
  %v294 = vadd.f32 %v53, %v270
  %v295 = vadd.f32 %v54, %v275
  %v296 = vadd.f32 %v55, %v278
  %297 = vst [vmem:[#allocation2] sm:$0xff] %v281
  %298 = vst [vmem:[#allocation2 + $0x8] sm:$0xff] %v282
  %299 = vst [vmem:[#allocation2 + $0x10] sm:$0xff] %v283
  %300 = vst [vmem:[#allocation2 + $0x18] sm:$0xff] %v284
  %301 = vst [vmem:[#allocation2 + $0x20] sm:$0xff] %v285
  %302 = vst [vmem:[#allocation2 + $0x28] sm:$0xff] %v286
  %303 = vst [vmem:[#allocation2 + $0x30] sm:$0xff] %v287
  %304 = vst [vmem:[#allocation2 + $0x38] sm:$0xff] %v288
  %305 = vst [vmem:[#allocation2 + $0x40] sm:$0xff] %v289
  %306 = vst [vmem:[#allocation2 + $0x48] sm:$0xff] %v290
  %307 = vst [vmem:[#allocation2 + $0x50] sm:$0xff] %v291
  %308 = vst [vmem:[#allocation2 + $0x58] sm:$0xff] %v292
  %309 = vst [vmem:[#allocation2 + $0x60] sm:$0xff] %v293
  %310 = vst [vmem:[#allocation2 + $0x68] sm:$0xff] %v294
  %311 = vst [vmem:[#allocation2 + $0x70] sm:$0xff] %v295
  %312 = vst [vmem:[#allocation2 + $0x78] sm:$0xff] %v296
  // Predicated region
  $region22: #{model_forward.9} parent=0 // pred_check
    %p313 = pneg %p20
  $region23: #{model_forward.9} parent=0 // pred_check_branch
    %315 = sbr.rel (%p313) target = $region25
  $region24: #{model_forward.9} parent=0 // pred_region
    %v316 = vld [vmem:[#allocation2] sm:$0xff]
    %v317 = vld [vmem:[#allocation2 + $0x8] sm:$0xff]
    %v318 = vld [vmem:[#allocation2 + $0x10] sm:$0xff]
    %v319 = vld [vmem:[#allocation2 + $0x18] sm:$0xff]
    %v320 = vld [vmem:[#allocation2 + $0x20] sm:$0xff]
    %v321 = vld [vmem:[#allocation2 + $0x28] sm:$0xff]
    %v322 = vld [vmem:[#allocation2 + $0x30] sm:$0xff]
    %v323 = vld [vmem:[#allocation2 + $0x38] sm:$0xff]
    %v324 = vld [vmem:[#allocation2 + $0x40] sm:$0xff]
    %v325 = vld [vmem:[#allocation2 + $0x48] sm:$0xff]
    %v326 = vld [vmem:[#allocation2 + $0x50] sm:$0xff]
    %v327 = vld [vmem:[#allocation2 + $0x58] sm:$0xff]
    %v328 = vld [vmem:[#allocation2 + $0x60] sm:$0xff]
    %v329 = vld [vmem:[#allocation2 + $0x68] sm:$0xff]
    %v330 = vld [vmem:[#allocation2 + $0x70] sm:$0xff]
    %v331 = vld [vmem:[#allocation2 + $0x78] sm:$0xff]
    %v332 = vld [vmem:[%s2] sm:$0x1]
    %v334 = vlaneseq
    %v335 = vshrl.u32 %v334, 7
    %v336 = vsub.s32 0, %v335
    %v337 = vrot.slane %v332, %v336
    %v339 = vadd.f32 %v316, %v337
    %v340 = vadd.f32 %v317, %v337
    %v341 = vadd.f32 %v318, %v337
    %v342 = vadd.f32 %v319, %v337
    %v343 = vadd.f32 %v320, %v337
    %v344 = vadd.f32 %v321, %v337
    %v345 = vadd.f32 %v322, %v337
    %v346 = vadd.f32 %v323, %v337
    %v347 = vadd.f32 %v324, %v337
    %v348 = vadd.f32 %v325, %v337
    %v349 = vadd.f32 %v326, %v337
    %v350 = vadd.f32 %v327, %v337
    %v351 = vadd.f32 %v328, %v337
    %v352 = vadd.f32 %v329, %v337
    %v353 = vadd.f32 %v330, %v337
    %v354 = vadd.f32 %v331, %v337
    %v355 = vmax.f32 %v339, 0.0
    %v356 = vmax.f32 %v340, 0.0
    %v357 = vmax.f32 %v341, 0.0
    %v358 = vmax.f32 %v342, 0.0
    %v359 = vmax.f32 %v343, 0.0
    %v360 = vmax.f32 %v344, 0.0
    %v361 = vmax.f32 %v345, 0.0
    %v362 = vmax.f32 %v346, 0.0
    %v363 = vmax.f32 %v347, 0.0
    %v364 = vmax.f32 %v348, 0.0
    %v365 = vmax.f32 %v349, 0.0
    %v366 = vmax.f32 %v350, 0.0
    %v367 = vmax.f32 %v351, 0.0
    %v368 = vmax.f32 %v352, 0.0
    %v369 = vmax.f32 %v353, 0.0
    %v370 = vmax.f32 %v354, 0.0
    %v371 = vpack.c.bf16 %v356, %v355
    %v372 = vpack.c.bf16 %v358, %v357
    %v373 = vpack.c.bf16 %v360, %v359
    %v374 = vpack.c.bf16 %v362, %v361
    %v375 = vpack.c.bf16 %v364, %v363
    %v376 = vpack.c.bf16 %v366, %v365
    %v377 = vpack.c.bf16 %v368, %v367
    %v378 = vpack.c.bf16 %v370, %v369
    %v387 = vunpack.c.l.b16 %v371
    %v388 = vunpack.c.h.b16 %v371
    %v389 = vunpack.c.l.b16 %v372
    %v390 = vunpack.c.h.b16 %v372
    %v391 = vunpack.c.l.b16 %v373
    %v392 = vunpack.c.h.b16 %v373
    %v393 = vunpack.c.l.b16 %v374
    %v394 = vunpack.c.h.b16 %v374
    %v395 = vunpack.c.l.b16 %v375
    %v396 = vunpack.c.h.b16 %v375
    %v397 = vunpack.c.l.b16 %v376
    %v398 = vunpack.c.h.b16 %v376
    %v399 = vunpack.c.l.b16 %v377
    %v400 = vunpack.c.h.b16 %v377
    %v401 = vunpack.c.l.b16 %v378
    %v402 = vunpack.c.h.b16 %v378
    %v403 = vpack.c.b16 %v387, %v387
    %v404 = vpack.c.b16 %v388, %v388
    %v405 = vpack.c.b16 %v389, %v389
    %v406 = vpack.c.b16 %v390, %v390
    %v407 = vpack.c.b16 %v391, %v391
    %v408 = vpack.c.b16 %v392, %v392
    %v409 = vpack.c.b16 %v393, %v393
    %v410 = vpack.c.b16 %v394, %v394
    %v411 = vpack.c.b16 %v395, %v395
    %v412 = vpack.c.b16 %v396, %v396
    %v413 = vpack.c.b16 %v397, %v397
    %v414 = vpack.c.b16 %v398, %v398
    %v415 = vpack.c.b16 %v399, %v399
    %v416 = vpack.c.b16 %v400, %v400
    %v417 = vpack.c.b16 %v401, %v401
    %v418 = vpack.c.b16 %v402, %v402
    %435 = vst [vmem:[%s4] sm:$0xf] %v403
    %436 = vst [vmem:[%s4 + $0x4] sm:$0xf] %v404
    %437 = vst [vmem:[%s4 + $0x8] sm:$0xf] %v405
    %438 = vst [vmem:[%s4 + $0xc] sm:$0xf] %v406
    %439 = vst [vmem:[%s4 + $0x10] sm:$0xf] %v407
    %440 = vst [vmem:[%s4 + $0x14] sm:$0xf] %v408
    %441 = vst [vmem:[%s4 + $0x18] sm:$0xf] %v409
    %442 = vst [vmem:[%s4 + $0x1c] sm:$0xf] %v410
    %443 = vst [vmem:[%s4 + $0x20] sm:$0xf] %v411
    %444 = vst [vmem:[%s4 + $0x24] sm:$0xf] %v412
    %445 = vst [vmem:[%s4 + $0x28] sm:$0xf] %v413
    %446 = vst [vmem:[%s4 + $0x2c] sm:$0xf] %v414
    %447 = vst [vmem:[%s4 + $0x30] sm:$0xf] %v415
    %448 = vst [vmem:[%s4 + $0x34] sm:$0xf] %v416
    %449 = vst [vmem:[%s4 + $0x38] sm:$0xf] %v417
    %450 = vst [vmem:[%s4 + $0x3c] sm:$0xf] %v418
    %v451 = vld [vmem:[%s3] sm:$0xf]
    %v452 = vld [vmem:[%s3 + $0x4] sm:$0xf]
    %v453 = vld [vmem:[%s3 + $0x8] sm:$0xf]
    %v454 = vld [vmem:[%s3 + $0xc] sm:$0xf]
    %v455 = vld [vmem:[%s3 + $0x10] sm:$0xf]
    %v456 = vld [vmem:[%s3 + $0x14] sm:$0xf]
    %v457 = vld [vmem:[%s3 + $0x18] sm:$0xf]
    %v458 = vld [vmem:[%s3 + $0x1c] sm:$0xf]
    %v459 = vld [vmem:[%s3 + $0x20] sm:$0xf]
    %v460 = vld [vmem:[%s3 + $0x24] sm:$0xf]
    %v461 = vld [vmem:[%s3 + $0x28] sm:$0xf]
    %v462 = vld [vmem:[%s3 + $0x2c] sm:$0xf]
    %v463 = vld [vmem:[%s3 + $0x30] sm:$0xf]
    %v464 = vld [vmem:[%s3 + $0x34] sm:$0xf]
    %v465 = vld [vmem:[%s3 + $0x38] sm:$0xf]
    %v466 = vld [vmem:[%s3 + $0x3c] sm:$0xf]
    %v483 = vunpack.c.l.b16 %v451
    %v484 = vunpack.c.l.b16 %v452
    %v485 = vunpack.c.l.b16 %v453
    %v486 = vunpack.c.l.b16 %v454
    %v487 = vunpack.c.l.b16 %v455
    %v488 = vunpack.c.l.b16 %v456
    %v489 = vunpack.c.l.b16 %v457
    %v490 = vunpack.c.l.b16 %v458
    %v491 = vunpack.c.l.b16 %v459
    %v492 = vunpack.c.l.b16 %v460
    %v493 = vunpack.c.l.b16 %v461
    %v494 = vunpack.c.l.b16 %v462
    %v495 = vunpack.c.l.b16 %v463
    %v496 = vunpack.c.l.b16 %v464
    %v497 = vunpack.c.l.b16 %v465
    %v498 = vunpack.c.l.b16 %v466
    %v499 = vpack.c.b16 %v484, %v483
    %v500 = vpack.c.b16 %v486, %v485
    %v501 = vpack.c.b16 %v488, %v487
    %v502 = vpack.c.b16 %v490, %v489
    %v503 = vpack.c.b16 %v492, %v491
    %v504 = vpack.c.b16 %v494, %v493
    %v505 = vpack.c.b16 %v496, %v495
    %v506 = vpack.c.b16 %v498, %v497
    %515 = vmatprep.subr.bf16.mxu0 0
    %516 = vmatpush1.bf16.msra.mxu0 %v499
    %517 = vmatprep.subr.bf16.mxu0 0
    %518 = vmatpush1.bf16.msra.mxu0 %v500
    %519 = vmatprep.subr.bf16.mxu0 0
    %520 = vmatpush1.bf16.msra.mxu0 %v501
    %521 = vmatprep.subr.bf16.mxu0 0
    %522 = vmatpush1.bf16.msra.mxu0 %v502
    %523 = vmatprep.subr.bf16.mxu0 0
    %524 = vmatpush1.bf16.msra.mxu0 %v503
    %525 = vmatprep.subr.bf16.mxu0 0
    %526 = vmatpush1.bf16.msra.mxu0 %v504
    %527 = vmatprep.subr.bf16.mxu0 0
    %528 = vmatpush1.bf16.msra.mxu0 %v505
    %529 = vmatprep.subr.bf16.mxu0 0
    %530 = vmatpush1.bf16.msra.mxu0 %v506
    %531 = vmatprep.subr.bf16.mxu0 0
    %532 = vmatpush1.bf16.msra.mxu0 0
    %533 = vmatprep.subr.bf16.mxu0 0
    %534 = vmatpush1.bf16.msra.mxu0 0
    %535 = vmatprep.subr.bf16.mxu0 0
    %536 = vmatpush1.bf16.msra.mxu0 0
    %537 = vmatprep.subr.bf16.mxu0 0
    %538 = vmatpush1.bf16.msra.mxu0 0
    %539 = vmatprep.subr.bf16.mxu0 0
    %540 = vmatpush1.bf16.msra.mxu0 0
    %541 = vmatprep.subr.bf16.mxu0 0
    %542 = vmatpush1.bf16.msra.mxu0 0
    %543 = vmatprep.subr.bf16.mxu0 0
    %544 = vmatpush1.bf16.msra.mxu0 0
    %545 = vmatprep.subr.bf16.mxu0 0
    %546 = vmatpush1.bf16.msra.mxu0 0
    %547 = vmatprep.mubr.bf16.mxu0 0
    %548 = vmatmul.mubr.bf16.gmra.mrb[0].mxu0 %v371
    %v549 = vpop.f32.mrb[0].mxu0
    %v550 = vadd.f32 0.0, %v549
    %v551 = vpop.f32.mrb[0].mxu0
    %v552 = vpop.f32.mrb[0].mxu0
    %v553 = vadd.f32 0.0, %v552
    %v554 = vpop.f32.mrb[0].mxu0
    %555 = vmatprep.mubr.bf16.mxu0 0
    %556 = vmatmul.mubr.bf16.gmra.mrb[0].mxu0 %v372
    %v557 = vpop.f32.mrb[0].mxu0
    %v558 = vadd.f32 0.0, %v557
    %v559 = vpop.f32.mrb[0].mxu0
    %v560 = vpop.f32.mrb[0].mxu0
    %v561 = vadd.f32 0.0, %v560
    %v562 = vpop.f32.mrb[0].mxu0
    %563 = vmatprep.mubr.bf16.mxu0 0
    %564 = vmatmul.mubr.bf16.gmra.mrb[0].mxu0 %v373
    %v565 = vpop.f32.mrb[0].mxu0
    %v566 = vadd.f32 0.0, %v565
    %v567 = vpop.f32.mrb[0].mxu0
    %v568 = vpop.f32.mrb[0].mxu0
    %v569 = vadd.f32 0.0, %v568
    %v570 = vpop.f32.mrb[0].mxu0
    %571 = vmatprep.mubr.bf16.mxu0 0
    %572 = vmatmul.mubr.bf16.gmra.mrb[0].mxu0 %v374
    %v573 = vpop.f32.mrb[0].mxu0
    %v574 = vadd.f32 0.0, %v573
    %v575 = vpop.f32.mrb[0].mxu0
    %v576 = vpop.f32.mrb[0].mxu0
    %v577 = vadd.f32 0.0, %v576
    %v578 = vpop.f32.mrb[0].mxu0
    %579 = vmatprep.mubr.bf16.mxu0 0
    %580 = vmatmul.mubr.bf16.gmra.mrb[0].mxu0 %v375
    %v581 = vpop.f32.mrb[0].mxu0
    %v582 = vadd.f32 0.0, %v581
    %v583 = vpop.f32.mrb[0].mxu0
    %v584 = vpop.f32.mrb[0].mxu0
    %v585 = vadd.f32 0.0, %v584
    %v586 = vpop.f32.mrb[0].mxu0
    %587 = vmatprep.mubr.bf16.mxu0 0
    %588 = vmatmul.mubr.bf16.gmra.mrb[0].mxu0 %v376
    %v589 = vpop.f32.mrb[0].mxu0
    %v590 = vadd.f32 0.0, %v589
    %v591 = vpop.f32.mrb[0].mxu0
    %v592 = vpop.f32.mrb[0].mxu0
    %v593 = vadd.f32 0.0, %v592
    %v594 = vpop.f32.mrb[0].mxu0
    %595 = vmatprep.mubr.bf16.mxu0 0
    %596 = vmatmul.mubr.bf16.gmra.mrb[0].mxu0 %v377
    %v597 = vpop.f32.mrb[0].mxu0
    %v598 = vadd.f32 0.0, %v597
    %v599 = vpop.f32.mrb[0].mxu0
    %v600 = vpop.f32.mrb[0].mxu0
    %v601 = vadd.f32 0.0, %v600
    %v602 = vpop.f32.mrb[0].mxu0
    %603 = vmatprep.mubr.bf16.mxu0 0
    %604 = vmatmul.mubr.bf16.gmra.mrb[0].mxu0 %v378
    %v605 = vpop.f32.mrb[0].mxu0
    %v606 = vadd.f32 0.0, %v605
    %v607 = vpop.f32.mrb[0].mxu0
    %v608 = vpop.f32.mrb[0].mxu0
    %v609 = vadd.f32 0.0, %v608
    %v610 = vpop.f32.mrb[0].mxu0
    %611 = vdwg.mxu0
    %v612 = vpack.c.bf16 %v553, %v550
    %v613 = vpack.c.bf16 %v561, %v558
    %v614 = vpack.c.bf16 %v569, %v566
    %v615 = vpack.c.bf16 %v577, %v574
    %v616 = vpack.c.bf16 %v585, %v582
    %v617 = vpack.c.bf16 %v593, %v590
    %v618 = vpack.c.bf16 %v601, %v598
    %v619 = vpack.c.bf16 %v609, %v606
    %v628 = vunpack.c.l.b16 %v612
    %v629 = vunpack.c.h.b16 %v612
    %v630 = vunpack.c.l.b16 %v613
    %v631 = vunpack.c.h.b16 %v613
    %v632 = vunpack.c.l.b16 %v614
    %v633 = vunpack.c.h.b16 %v614
    %v634 = vunpack.c.l.b16 %v615
    %v635 = vunpack.c.h.b16 %v615
    %v636 = vunpack.c.l.b16 %v616
    %v637 = vunpack.c.h.b16 %v616
    %v638 = vunpack.c.l.b16 %v617
    %v639 = vunpack.c.h.b16 %v617
    %v640 = vunpack.c.l.b16 %v618
    %v641 = vunpack.c.h.b16 %v618
    %v642 = vunpack.c.l.b16 %v619
    %v643 = vunpack.c.h.b16 %v619
    %v644 = vpack.c.b16 %v628, %v628
    %v645 = vpack.c.b16 %v629, %v629
    %v646 = vpack.c.b16 %v630, %v630
    %v647 = vpack.c.b16 %v631, %v631
    %v648 = vpack.c.b16 %v632, %v632
    %v649 = vpack.c.b16 %v633, %v633
    %v650 = vpack.c.b16 %v634, %v634
    %v651 = vpack.c.b16 %v635, %v635
    %v652 = vpack.c.b16 %v636, %v636
    %v653 = vpack.c.b16 %v637, %v637
    %v654 = vpack.c.b16 %v638, %v638
    %v655 = vpack.c.b16 %v639, %v639
    %v656 = vpack.c.b16 %v640, %v640
    %v657 = vpack.c.b16 %v641, %v641
    %v658 = vpack.c.b16 %v642, %v642
    %v659 = vpack.c.b16 %v643, %v643
    %676 = vst [vmem:[%s5] sm:$0xf] %v644
    %677 = vst [vmem:[%s5 + $0x4] sm:$0xf] %v645
    %678 = vst [vmem:[%s5 + $0x8] sm:$0xf] %v646
    %679 = vst [vmem:[%s5 + $0xc] sm:$0xf] %v647
    %680 = vst [vmem:[%s5 + $0x10] sm:$0xf] %v648
    %681 = vst [vmem:[%s5 + $0x14] sm:$0xf] %v649
    %682 = vst [vmem:[%s5 + $0x18] sm:$0xf] %v650
    %683 = vst [vmem:[%s5 + $0x1c] sm:$0xf] %v651
    %684 = vst [vmem:[%s5 + $0x20] sm:$0xf] %v652
    %685 = vst [vmem:[%s5 + $0x24] sm:$0xf] %v653
    %686 = vst [vmem:[%s5 + $0x28] sm:$0xf] %v654
    %687 = vst [vmem:[%s5 + $0x2c] sm:$0xf] %v655
    %688 = vst [vmem:[%s5 + $0x30] sm:$0xf] %v656
    %689 = vst [vmem:[%s5 + $0x34] sm:$0xf] %v657
    %690 = vst [vmem:[%s5 + $0x38] sm:$0xf] %v658
    %691 = vst [vmem:[%s5 + $0x3c] sm:$0xf] %v659
  $region25: #{model_forward.9} parent=0 // pred_fallthru
    _
  // Predicated region
  $region26: #{model_forward.9} parent=0 // pred_check
    _
  $region27: #{model_forward.9} parent=0 // pred_check_branch
    %693 = sbr.rel (0) target = $region29
  $region28: #{model_forward.9} parent=0 // pred_region
    _
  $region29: #{model_forward.9} parent=0 // pred_fallthru
    _
  // Predicated region
  $region30: #{model_forward.9} parent=0 // pred_check
    _
  $region31: #{model_forward.9} parent=0 // pred_check_branch
    %695 = sbr.rel (0) target = $region33
  $region32: #{model_forward.9} parent=0 // pred_region
    _
  $region33: #{model_forward.9} parent=0 // pred_fallthru
    _
  // Predicated region
  $region34: #{model_forward.9} parent=0 // pred_check
    _
  $region35: #{model_forward.9} parent=0 // pred_check_branch
    %697 = sbr.rel (0) target = $region37
  $region36: #{model_forward.9} parent=0 // pred_region
    _
  $region37: #{model_forward.9} parent=0 // pred_fallthru
    _
  // Predicated region
  $region38: #{model_forward.9} parent=0 // pred_check
    _
  $region39: #{model_forward.9} parent=0 // pred_check_branch
    %699 = sbr.rel (0) target = $region41
  $region40: #{model_forward.9} parent=0 // pred_region
    _
  $region41: #{model_forward.9} parent=0 // pred_fallthru
    _

// kernel: model_forward.8
$region0: #{model_forward.8}
  #allocation0 [shape = 'u32[]', space=smem, size = 0x4, offset = 0x4, fixed_abs, tag = 'smem constant byte address 0x4 - core index']
  #allocation1 [shape = 'u32[144,128]{1,0:T(1,128)}', space=vmem, size = 0x12000, scoped, tag = 'internal scratch']
  %s0 = inlined_call_operand.vmem [shape: bf16[128,128], index: 0, kind: input, shape index: {}]
  %s1 = inlined_call_operand.vmem [shape: bf16[128,128], index: 1, kind: input, shape index: {}]
  %s2 = inlined_call_operand.vmem [shape: bf16[128,128], index: 2, kind: output, shape index: {}]
  %s3 = sld [smem:[#allocation0]]
  $region18: #{model_forward.8} parent=0
    _
  %s5 = ssub.s32 1, %s3
  %s6 = scalar_select 0, %s5, %s3
  // Predicated region
  $region2: #{model_forward.8} parent=0 // pred_check
    _
  $region3: #{model_forward.8} parent=0 // pred_check_branch
    %8 = sbr.rel (0) target = $region5
  $region4: #{model_forward.8} parent=0 // pred_region
    _
  $region5: #{model_forward.8} parent=0 // pred_fallthru
    _
  // Predicated region
  $region6: #{model_forward.8} parent=0 // pred_check
    _
  $region7: #{model_forward.8} parent=0 // pred_check_branch
    %10 = sbr.rel (0) target = $region9
  $region8: #{model_forward.8} parent=0 // pred_region
    _
  $region9: #{model_forward.8} parent=0 // pred_fallthru
    _
  %v12 = vld [vmem:[%s0] sm:$0xf]
  %v13 = vld [vmem:[%s0 + $0x4] sm:$0xf]
  %v14 = vld [vmem:[%s0 + $0x8] sm:$0xf]
  %v15 = vld [vmem:[%s0 + $0xc] sm:$0xf]
  %v16 = vld [vmem:[%s0 + $0x10] sm:$0xf]
  %v17 = vld [vmem:[%s0 + $0x14] sm:$0xf]
  %v18 = vld [vmem:[%s0 + $0x18] sm:$0xf]
  %v19 = vld [vmem:[%s0 + $0x1c] sm:$0xf]
  %v20 = vld [vmem:[%s0 + $0x20] sm:$0xf]
  %v21 = vld [vmem:[%s0 + $0x24] sm:$0xf]
  %v22 = vld [vmem:[%s0 + $0x28] sm:$0xf]
  %v23 = vld [vmem:[%s0 + $0x2c] sm:$0xf]
  %v24 = vld [vmem:[%s0 + $0x30] sm:$0xf]
  %v25 = vld [vmem:[%s0 + $0x34] sm:$0xf]
  %v26 = vld [vmem:[%s0 + $0x38] sm:$0xf]
  %v27 = vld [vmem:[%s0 + $0x3c] sm:$0xf]
  %v28 = vld [vmem:[%s1] sm:$0xf]
  %v29 = vld [vmem:[%s1 + $0x4] sm:$0xf]
  %v30 = vld [vmem:[%s1 + $0x8] sm:$0xf]
  %v31 = vld [vmem:[%s1 + $0xc] sm:$0xf]
  %v32 = vld [vmem:[%s1 + $0x10] sm:$0xf]
  %v33 = vld [vmem:[%s1 + $0x14] sm:$0xf]
  %v34 = vld [vmem:[%s1 + $0x18] sm:$0xf]
  %v35 = vld [vmem:[%s1 + $0x1c] sm:$0xf]
  %v36 = vld [vmem:[%s1 + $0x20] sm:$0xf]
  %v37 = vld [vmem:[%s1 + $0x24] sm:$0xf]
  %v38 = vld [vmem:[%s1 + $0x28] sm:$0xf]
  %v39 = vld [vmem:[%s1 + $0x2c] sm:$0xf]
  %v40 = vld [vmem:[%s1 + $0x30] sm:$0xf]
  %v41 = vld [vmem:[%s1 + $0x34] sm:$0xf]
  %v42 = vld [vmem:[%s1 + $0x38] sm:$0xf]
  %v43 = vld [vmem:[%s1 + $0x3c] sm:$0xf]
  %v60 = vunpack.c.l.b16 %v12
  %v61 = vunpack.c.l.b16 %v13
  %v62 = vunpack.c.l.b16 %v14
  %v63 = vunpack.c.l.b16 %v15
  %v64 = vunpack.c.l.b16 %v16
  %v65 = vunpack.c.l.b16 %v17
  %v66 = vunpack.c.l.b16 %v18
  %v67 = vunpack.c.l.b16 %v19
  %v68 = vunpack.c.l.b16 %v20
  %v69 = vunpack.c.l.b16 %v21
  %v70 = vunpack.c.l.b16 %v22
  %v71 = vunpack.c.l.b16 %v23
  %v72 = vunpack.c.l.b16 %v24
  %v73 = vunpack.c.l.b16 %v25
  %v74 = vunpack.c.l.b16 %v26
  %v75 = vunpack.c.l.b16 %v27
  %v76 = vpack.c.b16 %v61, %v60
  %v77 = vpack.c.b16 %v63, %v62
  %v78 = vpack.c.b16 %v65, %v64
  %v79 = vpack.c.b16 %v67, %v66
  %v80 = vpack.c.b16 %v69, %v68
  %v81 = vpack.c.b16 %v71, %v70
  %v82 = vpack.c.b16 %v73, %v72
  %v83 = vpack.c.b16 %v75, %v74
  %v108 = vunpack.c.l.b16 %v28
  %v109 = vunpack.c.l.b16 %v29
  %v110 = vunpack.c.l.b16 %v30
  %v111 = vunpack.c.l.b16 %v31
  %v112 = vunpack.c.l.b16 %v32
  %v113 = vunpack.c.l.b16 %v33
  %v114 = vunpack.c.l.b16 %v34
  %v115 = vunpack.c.l.b16 %v35
  %v116 = vunpack.c.l.b16 %v36
  %v117 = vunpack.c.l.b16 %v37
  %v118 = vunpack.c.l.b16 %v38
  %v119 = vunpack.c.l.b16 %v39
  %v120 = vunpack.c.l.b16 %v40
  %v121 = vunpack.c.l.b16 %v41
  %v122 = vunpack.c.l.b16 %v42
  %v123 = vunpack.c.l.b16 %v43
  %v124 = vpack.c.b16 %v109, %v108
  %v125 = vpack.c.b16 %v111, %v110
  %v126 = vpack.c.b16 %v113, %v112
  %v127 = vpack.c.b16 %v115, %v114
  %v128 = vpack.c.b16 %v117, %v116
  %v129 = vpack.c.b16 %v119, %v118
  %v130 = vpack.c.b16 %v121, %v120
  %v131 = vpack.c.b16 %v123, %v122
  %140 = vmatprep.subr.bf16.mxu0 0
  %141 = vmatpush1.bf16.msra.mxu0 %v124
  %142 = vmatprep.subr.bf16.mxu0 0
  %143 = vmatpush1.bf16.msra.mxu0 %v125
  %144 = vmatprep.subr.bf16.mxu0 0
  %145 = vmatpush1.bf16.msra.mxu0 %v126
  %146 = vmatprep.subr.bf16.mxu0 0
  %147 = vmatpush1.bf16.msra.mxu0 %v127
  %148 = vmatprep.subr.bf16.mxu0 0
  %149 = vmatpush1.bf16.msra.mxu0 %v128
  %150 = vmatprep.subr.bf16.mxu0 0
  %151 = vmatpush1.bf16.msra.mxu0 %v129
  %152 = vmatprep.subr.bf16.mxu0 0
  %153 = vmatpush1.bf16.msra.mxu0 %v130
  %154 = vmatprep.subr.bf16.mxu0 0
  %155 = vmatpush1.bf16.msra.mxu0 %v131
  %156 = vmatprep.subr.bf16.mxu0 0
  %157 = vmatpush1.bf16.msra.mxu0 0
  %158 = vmatprep.subr.bf16.mxu0 0
  %159 = vmatpush1.bf16.msra.mxu0 0
  %160 = vmatprep.subr.bf16.mxu0 0
  %161 = vmatpush1.bf16.msra.mxu0 0
  %162 = vmatprep.subr.bf16.mxu0 0
  %163 = vmatpush1.bf16.msra.mxu0 0
  %164 = vmatprep.subr.bf16.mxu0 0
  %165 = vmatpush1.bf16.msra.mxu0 0
  %166 = vmatprep.subr.bf16.mxu0 0
  %167 = vmatpush1.bf16.msra.mxu0 0
  %168 = vmatprep.subr.bf16.mxu0 0
  %169 = vmatpush1.bf16.msra.mxu0 0
  %170 = vmatprep.subr.bf16.mxu0 0
  %171 = vmatpush1.bf16.msra.mxu0 0
  %172 = vmatprep.mubr.bf16.mxu0 0
  %173 = vmatmul.mubr.bf16.gmra.mrb[0].mxu0 %v76
  %v174 = vpop.f32.mrb[0].mxu0
  %v175 = vadd.f32 0.0, %v174
  %v176 = vpop.f32.mrb[0].mxu0
  %v177 = vpop.f32.mrb[0].mxu0
  %v178 = vadd.f32 0.0, %v177
  %v179 = vpop.f32.mrb[0].mxu0
  %180 = vmatprep.mubr.bf16.mxu0 0
  %181 = vmatmul.mubr.bf16.gmra.mrb[0].mxu0 %v77
  %v182 = vpop.f32.mrb[0].mxu0
  %v183 = vadd.f32 0.0, %v182
  %v184 = vpop.f32.mrb[0].mxu0
  %v185 = vpop.f32.mrb[0].mxu0
  %v186 = vadd.f32 0.0, %v185
  %v187 = vpop.f32.mrb[0].mxu0
  %188 = vmatprep.mubr.bf16.mxu0 0
  %189 = vmatmul.mubr.bf16.gmra.mrb[0].mxu0 %v78
  %v190 = vpop.f32.mrb[0].mxu0
  %v191 = vadd.f32 0.0, %v190
  %v192 = vpop.f32.mrb[0].mxu0
  %v193 = vpop.f32.mrb[0].mxu0
  %v194 = vadd.f32 0.0, %v193
  %v195 = vpop.f32.mrb[0].mxu0
  %196 = vmatprep.mubr.bf16.mxu0 0
  %197 = vmatmul.mubr.bf16.gmra.mrb[0].mxu0 %v79
  %v198 = vpop.f32.mrb[0].mxu0
  %v199 = vadd.f32 0.0, %v198
  %v200 = vpop.f32.mrb[0].mxu0
  %v201 = vpop.f32.mrb[0].mxu0
  %v202 = vadd.f32 0.0, %v201
  %v203 = vpop.f32.mrb[0].mxu0
  %204 = vmatprep.mubr.bf16.mxu0 0
  %205 = vmatmul.mubr.bf16.gmra.mrb[0].mxu0 %v80
  %v206 = vpop.f32.mrb[0].mxu0
  %v207 = vadd.f32 0.0, %v206
  %v208 = vpop.f32.mrb[0].mxu0
  %v209 = vpop.f32.mrb[0].mxu0
  %v210 = vadd.f32 0.0, %v209
  %v211 = vpop.f32.mrb[0].mxu0
  %212 = vmatprep.mubr.bf16.mxu0 0
  %213 = vmatmul.mubr.bf16.gmra.mrb[0].mxu0 %v81
  %v214 = vpop.f32.mrb[0].mxu0
  %v215 = vadd.f32 0.0, %v214
  %v216 = vpop.f32.mrb[0].mxu0
  %v217 = vpop.f32.mrb[0].mxu0
  %v218 = vadd.f32 0.0, %v217
  %v219 = vpop.f32.mrb[0].mxu0
  %220 = vmatprep.mubr.bf16.mxu0 0
  %221 = vmatmul.mubr.bf16.gmra.mrb[0].mxu0 %v82
  %v222 = vpop.f32.mrb[0].mxu0
  %v223 = vadd.f32 0.0, %v222
  %v224 = vpop.f32.mrb[0].mxu0
  %v225 = vpop.f32.mrb[0].mxu0
  %v226 = vadd.f32 0.0, %v225
  %v227 = vpop.f32.mrb[0].mxu0
  %228 = vmatprep.mubr.bf16.mxu0 0
  %229 = vmatmul.mubr.bf16.gmra.mrb[0].mxu0 %v83
  %v230 = vpop.f32.mrb[0].mxu0
  %v231 = vadd.f32 0.0, %v230
  %v232 = vpop.f32.mrb[0].mxu0
  %v233 = vpop.f32.mrb[0].mxu0
  %v234 = vadd.f32 0.0, %v233
  %v235 = vpop.f32.mrb[0].mxu0
  %236 = vdwg.mxu0
  %v237 = vpack.c.bf16 %v178, %v175
  %v238 = vpack.c.bf16 %v186, %v183
  %v239 = vpack.c.bf16 %v194, %v191
  %v240 = vpack.c.bf16 %v202, %v199
  %v241 = vpack.c.bf16 %v210, %v207
  %v242 = vpack.c.bf16 %v218, %v215
  %v243 = vpack.c.bf16 %v226, %v223
  %v244 = vpack.c.bf16 %v234, %v231
  %v253 = vunpack.c.l.b16 %v237
  %v254 = vunpack.c.h.b16 %v237
  %v255 = vunpack.c.l.b16 %v238
  %v256 = vunpack.c.h.b16 %v238
  %v257 = vunpack.c.l.b16 %v239
  %v258 = vunpack.c.h.b16 %v239
  %v259 = vunpack.c.l.b16 %v240
  %v260 = vunpack.c.h.b16 %v240
  %v261 = vunpack.c.l.b16 %v241
  %v262 = vunpack.c.h.b16 %v241
  %v263 = vunpack.c.l.b16 %v242
  %v264 = vunpack.c.h.b16 %v242
  %v265 = vunpack.c.l.b16 %v243
  %v266 = vunpack.c.h.b16 %v243
  %v267 = vunpack.c.l.b16 %v244
  %v268 = vunpack.c.h.b16 %v244
  %v269 = vpack.c.b16 %v253, %v253
  %v270 = vpack.c.b16 %v254, %v254
  %v271 = vpack.c.b16 %v255, %v255
  %v272 = vpack.c.b16 %v256, %v256
  %v273 = vpack.c.b16 %v257, %v257
  %v274 = vpack.c.b16 %v258, %v258
  %v275 = vpack.c.b16 %v259, %v259
  %v276 = vpack.c.b16 %v260, %v260
  %v277 = vpack.c.b16 %v261, %v261
  %v278 = vpack.c.b16 %v262, %v262
  %v279 = vpack.c.b16 %v263, %v263
  %v280 = vpack.c.b16 %v264, %v264
  %v281 = vpack.c.b16 %v265, %v265
  %v282 = vpack.c.b16 %v266, %v266
  %v283 = vpack.c.b16 %v267, %v267
  %v284 = vpack.c.b16 %v268, %v268
  %301 = vst [vmem:[%s2] sm:$0xf] %v269
  %302 = vst [vmem:[%s2 + $0x4] sm:$0xf] %v270
  %303 = vst [vmem:[%s2 + $0x8] sm:$0xf] %v271
  %304 = vst [vmem:[%s2 + $0xc] sm:$0xf] %v272
  %305 = vst [vmem:[%s2 + $0x10] sm:$0xf] %v273
  %306 = vst [vmem:[%s2 + $0x14] sm:$0xf] %v274
  %307 = vst [vmem:[%s2 + $0x18] sm:$0xf] %v275
  %308 = vst [vmem:[%s2 + $0x1c] sm:$0xf] %v276
  %309 = vst [vmem:[%s2 + $0x20] sm:$0xf] %v277
  %310 = vst [vmem:[%s2 + $0x24] sm:$0xf] %v278
  %311 = vst [vmem:[%s2 + $0x28] sm:$0xf] %v279
  %312 = vst [vmem:[%s2 + $0x2c] sm:$0xf] %v280
  %313 = vst [vmem:[%s2 + $0x30] sm:$0xf] %v281
  %314 = vst [vmem:[%s2 + $0x34] sm:$0xf] %v282
  %315 = vst [vmem:[%s2 + $0x38] sm:$0xf] %v283
  %316 = vst [vmem:[%s2 + $0x3c] sm:$0xf] %v284
  // Predicated region
  $region10: #{model_forward.8} parent=0 // pred_check
    _
  $region11: #{model_forward.8} parent=0 // pred_check_branch
    %318 = sbr.rel (0) target = $region13
  $region12: #{model_forward.8} parent=0 // pred_region
    _
  $region13: #{model_forward.8} parent=0 // pred_fallthru
    _
  // Predicated region
  $region14: #{model_forward.8} parent=0 // pred_check
    _
  $region15: #{model_forward.8} parent=0 // pred_check_branch
    %320 = sbr.rel (0) target = $region17
  $region16: #{model_forward.8} parent=0 // pred_region
    _
  $region17: #{model_forward.8} parent=0 // pred_fallthru
    _

// kernel: mul.3
$region0: #{mul.3}
  #allocation0 [shape = 's32[1]{0}', space=sflag, size = 0x4, scoped, tag = 'scoped memory for mul.3']
  %s0 = inlined_call_operand.vmem [shape: f32[96], index: 0, kind: input, shape index: {}]
  %s1 = inlined_call_operand.vmem [shape: f32[96], index: 1, kind: input, shape index: {}]
  %s2 = inlined_call_operand.vmem [shape: f32[96], index: 2, kind: output, shape index: {}]
  %v3 = vld [vmem:[%s0] sm:$0x1]
  %v4 = vld [vmem:[%s1] sm:$0x1]
  %5 = xla_tuple %v3, %v4
  %6 = xla_tuple %5
  %v7 = vmul.f32 %v3, %v4
  %8 = xla_tuple %v7
  %9 = vst [vmem:[%s2] sm:$0x1] %v7

// kernel: model_forward.10
$region0: #{model_forward.10}
  #allocation0 [shape = 'u32[]', space=smem, size = 0x4, offset = 0x4, fixed_abs, tag = 'smem constant byte address 0x4 - core index']
  #allocation1 [shape = 'u32[144,128]{1,0:T(1,128)}', space=vmem, size = 0x12000, scoped, tag = 'internal scratch']
  #allocation2 [shape = 'f32[8,128]{1,0:T(8,128)}', space=vmem, size = 0x1000, scoped, tag = 'scratch operand']
  #allocation3 [shape = 'f32[8,128]{1,0:T(8,128)}', space=vmem, size = 0x1000, scoped, tag = 'scratch operand']
  %s0 = inlined_call_operand.vmem [shape: bf16[128,128], index: 0, kind: input, shape index: {}]
  %s1 = inlined_call_operand.vmem [shape: f32[8,128], index: 1, kind: input, shape index: {}]
  %s2 = inlined_call_operand.vmem [shape: f32[128,8], index: 2, kind: input, shape index: {}]
  %s3 = inlined_call_operand.vmem [shape: f32[8,1], index: 3, kind: input, shape index: {}]
  %s4 = inlined_call_operand.vmem [shape: f32[8,256], index: 4, kind: output, shape index: {}]
  %s5 = sld [smem:[#allocation0]]
  $region34: #{model_forward.10} parent=0
    _
  %s7 = ssub.s32 1, %s5
  %s8 = scalar_select 0, %s7, %s5
  // Predicated region
  $region2: #{model_forward.10} parent=0 // pred_check
    _
  $region3: #{model_forward.10} parent=0 // pred_check_branch
    %10 = sbr.rel (0) target = $region5
  $region4: #{model_forward.10} parent=0 // pred_region
    _
  $region5: #{model_forward.10} parent=0 // pred_fallthru
    _
  // Predicated region
  $region6: #{model_forward.10} parent=0 // pred_check
    _
  $region7: #{model_forward.10} parent=0 // pred_check_branch
    %12 = sbr.rel (0) target = $region9
  $region8: #{model_forward.10} parent=0 // pred_region
    _
  $region9: #{model_forward.10} parent=0 // pred_fallthru
    _
  // Predicated region
  $region10: #{model_forward.10} parent=0 // pred_check
    _
  $region11: #{model_forward.10} parent=0 // pred_check_branch
    %14 = sbr.rel (0) target = $region13
  $region12: #{model_forward.10} parent=0 // pred_region
    _
  $region13: #{model_forward.10} parent=0 // pred_fallthru
    _
  // Predicated region
  $region14: #{model_forward.10} parent=0 // pred_check
    _
  $region15: #{model_forward.10} parent=0 // pred_check_branch
    %16 = sbr.rel (0) target = $region17
  $region16: #{model_forward.10} parent=0 // pred_region
    _
  $region17: #{model_forward.10} parent=0 // pred_fallthru
    _
  %p18 = scmp.eq.s32.totalorder 0, 0
  // Predicated region
  $region18: #{model_forward.10} parent=0 // pred_check
    %p19 = pneg %p18
  $region19: #{model_forward.10} parent=0 // pred_check_branch
    %21 = sbr.rel (%p19) target = $region21
  $region20: #{model_forward.10} parent=0 // pred_region
    %22 = vst [vmem:[#allocation2] sm:$0xff] 0.0
    %23 = vst [vmem:[#allocation3] sm:$0xff] -1e+30
  $region21: #{model_forward.10} parent=0 // pred_fallthru
    _
  %v24 = vld [vmem:[%s0] sm:$0xf]
  %v25 = vld [vmem:[%s0 + $0x4] sm:$0xf]
  %v26 = vld [vmem:[%s0 + $0x8] sm:$0xf]
  %v27 = vld [vmem:[%s0 + $0xc] sm:$0xf]
  %v28 = vld [vmem:[%s0 + $0x10] sm:$0xf]
  %v29 = vld [vmem:[%s0 + $0x14] sm:$0xf]
  %v30 = vld [vmem:[%s0 + $0x18] sm:$0xf]
  %v31 = vld [vmem:[%s0 + $0x1c] sm:$0xf]
  %v32 = vld [vmem:[%s0 + $0x20] sm:$0xf]
  %v33 = vld [vmem:[%s0 + $0x24] sm:$0xf]
  %v34 = vld [vmem:[%s0 + $0x28] sm:$0xf]
  %v35 = vld [vmem:[%s0 + $0x2c] sm:$0xf]
  %v36 = vld [vmem:[%s0 + $0x30] sm:$0xf]
  %v37 = vld [vmem:[%s0 + $0x34] sm:$0xf]
  %v38 = vld [vmem:[%s0 + $0x38] sm:$0xf]
  %v39 = vld [vmem:[%s0 + $0x3c] sm:$0xf]
  %v40 = vunpack.c.l.bf16 %v24
  %v41 = vunpack.c.l.bf16 %v25
  %v42 = vunpack.c.l.bf16 %v26
  %v43 = vunpack.c.l.bf16 %v27
  %v44 = vunpack.c.l.bf16 %v28
  %v45 = vunpack.c.l.bf16 %v29
  %v46 = vunpack.c.l.bf16 %v30
  %v47 = vunpack.c.l.bf16 %v31
  %v48 = vunpack.c.l.bf16 %v32
  %v49 = vunpack.c.l.bf16 %v33
  %v50 = vunpack.c.l.bf16 %v34
  %v51 = vunpack.c.l.bf16 %v35
  %v52 = vunpack.c.l.bf16 %v36
  %v53 = vunpack.c.l.bf16 %v37
  %v54 = vunpack.c.l.bf16 %v38
  %v55 = vunpack.c.l.bf16 %v39
  %v56 = vld [vmem:[#allocation2] sm:$0xff]
  %v57 = vld [vmem:[%s1] sm:$0xff]
  %v58 = vpack.c.bf16 %v57, %v57
  %v75 = vunpack.c.l.b16 %v24
  %v76 = vunpack.c.l.b16 %v25
  %v77 = vunpack.c.l.b16 %v26
  %v78 = vunpack.c.l.b16 %v27
  %v79 = vunpack.c.l.b16 %v28
  %v80 = vunpack.c.l.b16 %v29
  %v81 = vunpack.c.l.b16 %v30
  %v82 = vunpack.c.l.b16 %v31
  %v83 = vunpack.c.l.b16 %v32
  %v84 = vunpack.c.l.b16 %v33
  %v85 = vunpack.c.l.b16 %v34
  %v86 = vunpack.c.l.b16 %v35
  %v87 = vunpack.c.l.b16 %v36
  %v88 = vunpack.c.l.b16 %v37
  %v89 = vunpack.c.l.b16 %v38
  %v90 = vunpack.c.l.b16 %v39
  %v91 = vpack.c.b16 %v76, %v75
  %v92 = vpack.c.b16 %v78, %v77
  %v93 = vpack.c.b16 %v80, %v79
  %v94 = vpack.c.b16 %v82, %v81
  %v95 = vpack.c.b16 %v84, %v83
  %v96 = vpack.c.b16 %v86, %v85
  %v97 = vpack.c.b16 %v88, %v87
  %v98 = vpack.c.b16 %v90, %v89
  %107 = vmatprep.subr.bf16.mxu0 0
  %108 = vmatpush1.bf16.msra.mxu0 %v91
  %109 = vmatprep.subr.bf16.mxu0 0
  %110 = vmatpush1.bf16.msra.mxu0 %v92
  %111 = vmatprep.subr.bf16.mxu0 0
  %112 = vmatpush1.bf16.msra.mxu0 %v93
  %113 = vmatprep.subr.bf16.mxu0 0
  %114 = vmatpush1.bf16.msra.mxu0 %v94
  %115 = vmatprep.subr.bf16.mxu0 0
  %116 = vmatpush1.bf16.msra.mxu0 %v95
  %117 = vmatprep.subr.bf16.mxu0 0
  %118 = vmatpush1.bf16.msra.mxu0 %v96
  %119 = vmatprep.subr.bf16.mxu0 0
  %120 = vmatpush1.bf16.msra.mxu0 %v97
  %121 = vmatprep.subr.bf16.mxu0 0
  %122 = vmatpush1.bf16.msra.mxu0 %v98
  %123 = vmatprep.subr.bf16.mxu0 0
  %124 = vmatpush1.bf16.msra.mxu0 0
  %125 = vmatprep.subr.bf16.mxu0 0
  %126 = vmatpush1.bf16.msra.mxu0 0
  %127 = vmatprep.subr.bf16.mxu0 0
  %128 = vmatpush1.bf16.msra.mxu0 0
  %129 = vmatprep.subr.bf16.mxu0 0
  %130 = vmatpush1.bf16.msra.mxu0 0
  %131 = vmatprep.subr.bf16.mxu0 0
  %132 = vmatpush1.bf16.msra.mxu0 0
  %133 = vmatprep.subr.bf16.mxu0 0
  %134 = vmatpush1.bf16.msra.mxu0 0
  %135 = vmatprep.subr.bf16.mxu0 0
  %136 = vmatpush1.bf16.msra.mxu0 0
  %137 = vmatprep.subr.bf16.mxu0 0
  %138 = vmatpush1.bf16.msra.mxu0 0
  %139 = vmatprep.mubr.bf16.mxu0 0
  %140 = vmatmul.mubr.bf16.gmra.mrb[0].mxu0 %v58
  %v141 = vpop.f32.mrb[0].mxu0
  %v142 = vadd.f32 0.0, %v141
  %v143 = vpop.f32.mrb[0].mxu0
  %v144 = vpop.f32.mrb[0].mxu0
  %v145 = vpop.f32.mrb[0].mxu0
  %146 = vdwg.mxu0
  %v147 = vadd.f32 %v56, %v142
  %148 = vst [vmem:[#allocation2] sm:$0xff] %v147
  %v149 = vld [vmem:[%s2] sm:$0xff]
  %v150 = vld [vmem:[%s2 + $0x8] sm:$0xff]
  %v151 = vld [vmem:[%s2 + $0x10] sm:$0xff]
  %v152 = vld [vmem:[%s2 + $0x18] sm:$0xff]
  %v153 = vld [vmem:[%s2 + $0x20] sm:$0xff]
  %v154 = vld [vmem:[%s2 + $0x28] sm:$0xff]
  %v155 = vld [vmem:[%s2 + $0x30] sm:$0xff]
  %v156 = vld [vmem:[%s2 + $0x38] sm:$0xff]
  %v157 = vld [vmem:[%s2 + $0x40] sm:$0xff]
  %v158 = vld [vmem:[%s2 + $0x48] sm:$0xff]
  %v159 = vld [vmem:[%s2 + $0x50] sm:$0xff]
  %v160 = vld [vmem:[%s2 + $0x58] sm:$0xff]
  %v161 = vld [vmem:[%s2 + $0x60] sm:$0xff]
  %v162 = vld [vmem:[%s2 + $0x68] sm:$0xff]
  %v163 = vld [vmem:[%s2 + $0x70] sm:$0xff]
  %v164 = vld [vmem:[%s2 + $0x78] sm:$0xff]
  %v165 = vsub.f32 %v149, 1.0
  %v166 = vsub.f32 %v150, 1.0
  %v167 = vsub.f32 %v151, 1.0
  %v168 = vsub.f32 %v152, 1.0
  %v169 = vsub.f32 %v153, 1.0
  %v170 = vsub.f32 %v154, 1.0
  %v171 = vsub.f32 %v155, 1.0
  %v172 = vsub.f32 %v156, 1.0
  %v173 = vsub.f32 %v157, 1.0
  %v174 = vsub.f32 %v158, 1.0
  %v175 = vsub.f32 %v159, 1.0
  %v176 = vsub.f32 %v160, 1.0
  %v177 = vsub.f32 %v161, 1.0
  %v178 = vsub.f32 %v162, 1.0
  %v179 = vsub.f32 %v163, 1.0
  %v180 = vsub.f32 %v164, 1.0
  %v181 = vmul.f32 %v165, 1e+30
  %v182 = vmul.f32 %v166, 1e+30
  %v183 = vmul.f32 %v167, 1e+30
  %v184 = vmul.f32 %v168, 1e+30
  %v185 = vmul.f32 %v169, 1e+30
  %v186 = vmul.f32 %v170, 1e+30
  %v187 = vmul.f32 %v171, 1e+30
  %v188 = vmul.f32 %v172, 1e+30
  %v189 = vmul.f32 %v173, 1e+30
  %v190 = vmul.f32 %v174, 1e+30
  %v191 = vmul.f32 %v175, 1e+30
  %v192 = vmul.f32 %v176, 1e+30
  %v193 = vmul.f32 %v177, 1e+30
  %v194 = vmul.f32 %v178, 1e+30
  %v195 = vmul.f32 %v179, 1e+30
  %v196 = vmul.f32 %v180, 1e+30
  %198 = vset.pattern.permute.xlu0 0
  %199 = vperm.xlu0 %198, %v181
  %v200 = vpop.permute.xlu0 %199
  %203 = vset.pattern.permute.xlu0 0
  %204 = vperm.xlu0 %203, %v182
  %v205 = vpop.permute.xlu0 %204
  %208 = vset.pattern.permute.xlu0 0
  %209 = vperm.xlu0 %208, %v183
  %v210 = vpop.permute.xlu0 %209
  %213 = vset.pattern.permute.xlu0 0
  %214 = vperm.xlu0 %213, %v184
  %v215 = vpop.permute.xlu0 %214
  %218 = vset.pattern.permute.xlu0 0
  %219 = vperm.xlu0 %218, %v185
  %v220 = vpop.permute.xlu0 %219
  %223 = vset.pattern.permute.xlu0 0
  %224 = vperm.xlu0 %223, %v186
  %v225 = vpop.permute.xlu0 %224
  %228 = vset.pattern.permute.xlu0 0
  %229 = vperm.xlu0 %228, %v187
  %v230 = vpop.permute.xlu0 %229
  %233 = vset.pattern.permute.xlu0 0
  %234 = vperm.xlu0 %233, %v188
  %v235 = vpop.permute.xlu0 %234
  %238 = vset.pattern.permute.xlu0 0
  %239 = vperm.xlu0 %238, %v189
  %v240 = vpop.permute.xlu0 %239
  %243 = vset.pattern.permute.xlu0 0
  %244 = vperm.xlu0 %243, %v190
  %v245 = vpop.permute.xlu0 %244
  %248 = vset.pattern.permute.xlu0 0
  %249 = vperm.xlu0 %248, %v191
  %v250 = vpop.permute.xlu0 %249
  %253 = vset.pattern.permute.xlu0 0
  %254 = vperm.xlu0 %253, %v192
  %v255 = vpop.permute.xlu0 %254
  %258 = vset.pattern.permute.xlu0 0
  %259 = vperm.xlu0 %258, %v193
  %v260 = vpop.permute.xlu0 %259
  %263 = vset.pattern.permute.xlu0 0
  %264 = vperm.xlu0 %263, %v194
  %v265 = vpop.permute.xlu0 %264
  %268 = vset.pattern.permute.xlu0 0
  %269 = vperm.xlu0 %268, %v195
  %v270 = vpop.permute.xlu0 %269
  %273 = vset.pattern.permute.xlu0 0
  %274 = vperm.xlu0 %273, %v196
  %v275 = vpop.permute.xlu0 %274
  %v277 = vadd.f32 %v40, %v200
  %v278 = vadd.f32 %v41, %v205
  %v279 = vadd.f32 %v42, %v210
  %v280 = vadd.f32 %v43, %v215
  %v281 = vadd.f32 %v44, %v220
  %v282 = vadd.f32 %v45, %v225
  %v283 = vadd.f32 %v46, %v230
  %v284 = vadd.f32 %v47, %v235
  %v285 = vadd.f32 %v48, %v240
  %v286 = vadd.f32 %v49, %v245
  %v287 = vadd.f32 %v50, %v250
  %v288 = vadd.f32 %v51, %v255
  %v289 = vadd.f32 %v52, %v260
  %v290 = vadd.f32 %v53, %v265
  %v291 = vadd.f32 %v54, %v270
  %v292 = vadd.f32 %v55, %v275
  %v293 = vmax.f32 %v277, %v281
  %v294 = vmax.f32 %v278, %v282
  %v295 = vmax.f32 %v279, %v283
  %v296 = vmax.f32 %v280, %v284
  %v297 = vmax.f32 %v293, %v285
  %v298 = vmax.f32 %v294, %v286
  %v299 = vmax.f32 %v295, %v287
  %v300 = vmax.f32 %v296, %v288
  %v301 = vmax.f32 %v297, %v289
  %v302 = vmax.f32 %v298, %v290
  %v303 = vmax.f32 %v299, %v291
  %v304 = vmax.f32 %v300, %v292
  %v305 = vmax.f32 %v301, %v302
  %v306 = vmax.f32 %v303, %v304
  %v307 = vmax.f32 %v305, %v306
  %v308 = vrot.slane %v307, 4
  %v309 = vmax.f32 %v307, %v308
  %v310 = vrot.slane %v309, 2
  %v311 = vmax.f32 %v309, %v310
  %v312 = vrot.slane %v311, 1
  %v313 = vmax.f32 %v311, %v312
  %314 = vset.pattern.permute.xlu0 1
  %315 = vperm.xlu0 %314, %v181
  %v316 = vpop.permute.xlu0 %315
  %318 = vset.pattern.permute.xlu0 1
  %319 = vperm.xlu0 %318, %v182
  %v320 = vpop.permute.xlu0 %319
  %322 = vset.pattern.permute.xlu0 1
  %323 = vperm.xlu0 %322, %v183
  %v324 = vpop.permute.xlu0 %323
  %326 = vset.pattern.permute.xlu0 1
  %327 = vperm.xlu0 %326, %v184
  %v328 = vpop.permute.xlu0 %327
  %330 = vset.pattern.permute.xlu0 1
  %331 = vperm.xlu0 %330, %v185
  %v332 = vpop.permute.xlu0 %331
  %334 = vset.pattern.permute.xlu0 1
  %335 = vperm.xlu0 %334, %v186
  %v336 = vpop.permute.xlu0 %335
  %338 = vset.pattern.permute.xlu0 1
  %339 = vperm.xlu0 %338, %v187
  %v340 = vpop.permute.xlu0 %339
  %342 = vset.pattern.permute.xlu0 1
  %343 = vperm.xlu0 %342, %v188
  %v344 = vpop.permute.xlu0 %343
  %346 = vset.pattern.permute.xlu0 1
  %347 = vperm.xlu0 %346, %v189
  %v348 = vpop.permute.xlu0 %347
  %350 = vset.pattern.permute.xlu0 1
  %351 = vperm.xlu0 %350, %v190
  %v352 = vpop.permute.xlu0 %351
  %354 = vset.pattern.permute.xlu0 1
  %355 = vperm.xlu0 %354, %v191
  %v356 = vpop.permute.xlu0 %355
  %358 = vset.pattern.permute.xlu0 1
  %359 = vperm.xlu0 %358, %v192
  %v360 = vpop.permute.xlu0 %359
  %362 = vset.pattern.permute.xlu0 1
  %363 = vperm.xlu0 %362, %v193
  %v364 = vpop.permute.xlu0 %363
  %366 = vset.pattern.permute.xlu0 1
  %367 = vperm.xlu0 %366, %v194
  %v368 = vpop.permute.xlu0 %367
  %370 = vset.pattern.permute.xlu0 1
  %371 = vperm.xlu0 %370, %v195
  %v372 = vpop.permute.xlu0 %371
  %374 = vset.pattern.permute.xlu0 1
  %375 = vperm.xlu0 %374, %v196
  %v376 = vpop.permute.xlu0 %375
  %v378 = vadd.f32 %v40, %v316
  %v379 = vadd.f32 %v41, %v320
  %v380 = vadd.f32 %v42, %v324
  %v381 = vadd.f32 %v43, %v328
  %v382 = vadd.f32 %v44, %v332
  %v383 = vadd.f32 %v45, %v336
  %v384 = vadd.f32 %v46, %v340
  %v385 = vadd.f32 %v47, %v344
  %v386 = vadd.f32 %v48, %v348
  %v387 = vadd.f32 %v49, %v352
  %v388 = vadd.f32 %v50, %v356
  %v389 = vadd.f32 %v51, %v360
  %v390 = vadd.f32 %v52, %v364
  %v391 = vadd.f32 %v53, %v368
  %v392 = vadd.f32 %v54, %v372
  %v393 = vadd.f32 %v55, %v376
  %v394 = vmax.f32 %v378, %v382
  %v395 = vmax.f32 %v379, %v383
  %v396 = vmax.f32 %v380, %v384
  %v397 = vmax.f32 %v381, %v385
  %v398 = vmax.f32 %v394, %v386
  %v399 = vmax.f32 %v395, %v387
  %v400 = vmax.f32 %v396, %v388
  %v401 = vmax.f32 %v397, %v389
  %v402 = vmax.f32 %v398, %v390
  %v403 = vmax.f32 %v399, %v391
  %v404 = vmax.f32 %v400, %v392
  %v405 = vmax.f32 %v401, %v393
  %v406 = vmax.f32 %v402, %v403
  %v407 = vmax.f32 %v404, %v405
  %v408 = vmax.f32 %v406, %v407
  %v409 = vrot.slane %v408, 4
  %v410 = vmax.f32 %v408, %v409
  %v411 = vrot.slane %v410, 2
  %v412 = vmax.f32 %v410, %v411
  %v413 = vrot.slane %v412, 1
  %v414 = vmax.f32 %v412, %v413
  %415 = vset.pattern.permute.xlu0 2
  %416 = vperm.xlu0 %415, %v181
  %v417 = vpop.permute.xlu0 %416
  %419 = vset.pattern.permute.xlu0 2
  %420 = vperm.xlu0 %419, %v182
  %v421 = vpop.permute.xlu0 %420
  %423 = vset.pattern.permute.xlu0 2
  %424 = vperm.xlu0 %423, %v183
  %v425 = vpop.permute.xlu0 %424
  %427 = vset.pattern.permute.xlu0 2
  %428 = vperm.xlu0 %427, %v184
  %v429 = vpop.permute.xlu0 %428
  %431 = vset.pattern.permute.xlu0 2
  %432 = vperm.xlu0 %431, %v185
  %v433 = vpop.permute.xlu0 %432
  %435 = vset.pattern.permute.xlu0 2
  %436 = vperm.xlu0 %435, %v186
  %v437 = vpop.permute.xlu0 %436
  %439 = vset.pattern.permute.xlu0 2
  %440 = vperm.xlu0 %439, %v187
  %v441 = vpop.permute.xlu0 %440
  %443 = vset.pattern.permute.xlu0 2
  %444 = vperm.xlu0 %443, %v188
  %v445 = vpop.permute.xlu0 %444
  %447 = vset.pattern.permute.xlu0 2
  %448 = vperm.xlu0 %447, %v189
  %v449 = vpop.permute.xlu0 %448
  %451 = vset.pattern.permute.xlu0 2
  %452 = vperm.xlu0 %451, %v190
  %v453 = vpop.permute.xlu0 %452
  %455 = vset.pattern.permute.xlu0 2
  %456 = vperm.xlu0 %455, %v191
  %v457 = vpop.permute.xlu0 %456
  %459 = vset.pattern.permute.xlu0 2
  %460 = vperm.xlu0 %459, %v192
  %v461 = vpop.permute.xlu0 %460
  %463 = vset.pattern.permute.xlu0 2
  %464 = vperm.xlu0 %463, %v193
  %v465 = vpop.permute.xlu0 %464
  %467 = vset.pattern.permute.xlu0 2
  %468 = vperm.xlu0 %467, %v194
  %v469 = vpop.permute.xlu0 %468
  %471 = vset.pattern.permute.xlu0 2
  %472 = vperm.xlu0 %471, %v195
  %v473 = vpop.permute.xlu0 %472
  %475 = vset.pattern.permute.xlu0 2
  %476 = vperm.xlu0 %475, %v196
  %v477 = vpop.permute.xlu0 %476
  %v479 = vadd.f32 %v40, %v417
  %v480 = vadd.f32 %v41, %v421
  %v481 = vadd.f32 %v42, %v425
  %v482 = vadd.f32 %v43, %v429
  %v483 = vadd.f32 %v44, %v433
  %v484 = vadd.f32 %v45, %v437
  %v485 = vadd.f32 %v46, %v441
  %v486 = vadd.f32 %v47, %v445
  %v487 = vadd.f32 %v48, %v449
  %v488 = vadd.f32 %v49, %v453
  %v489 = vadd.f32 %v50, %v457
  %v490 = vadd.f32 %v51, %v461
  %v491 = vadd.f32 %v52, %v465
  %v492 = vadd.f32 %v53, %v469
  %v493 = vadd.f32 %v54, %v473
  %v494 = vadd.f32 %v55, %v477
  %v495 = vmax.f32 %v479, %v483
  %v496 = vmax.f32 %v480, %v484
  %v497 = vmax.f32 %v481, %v485
  %v498 = vmax.f32 %v482, %v486
  %v499 = vmax.f32 %v495, %v487
  %v500 = vmax.f32 %v496, %v488
  %v501 = vmax.f32 %v497, %v489
  %v502 = vmax.f32 %v498, %v490
  %v503 = vmax.f32 %v499, %v491
  %v504 = vmax.f32 %v500, %v492
  %v505 = vmax.f32 %v501, %v493
  %v506 = vmax.f32 %v502, %v494
  %v507 = vmax.f32 %v503, %v504
  %v508 = vmax.f32 %v505, %v506
  %v509 = vmax.f32 %v507, %v508
  %v510 = vrot.slane %v509, 4
  %v511 = vmax.f32 %v509, %v510
  %v512 = vrot.slane %v511, 2
  %v513 = vmax.f32 %v511, %v512
  %v514 = vrot.slane %v513, 1
  %v515 = vmax.f32 %v513, %v514
  %516 = vset.pattern.permute.xlu0 3
  %517 = vperm.xlu0 %516, %v181
  %v518 = vpop.permute.xlu0 %517
  %520 = vset.pattern.permute.xlu0 3
  %521 = vperm.xlu0 %520, %v182
  %v522 = vpop.permute.xlu0 %521
  %524 = vset.pattern.permute.xlu0 3
  %525 = vperm.xlu0 %524, %v183
  %v526 = vpop.permute.xlu0 %525
  %528 = vset.pattern.permute.xlu0 3
  %529 = vperm.xlu0 %528, %v184
  %v530 = vpop.permute.xlu0 %529
  %532 = vset.pattern.permute.xlu0 3
  %533 = vperm.xlu0 %532, %v185
  %v534 = vpop.permute.xlu0 %533
  %536 = vset.pattern.permute.xlu0 3
  %537 = vperm.xlu0 %536, %v186
  %v538 = vpop.permute.xlu0 %537
  %540 = vset.pattern.permute.xlu0 3
  %541 = vperm.xlu0 %540, %v187
  %v542 = vpop.permute.xlu0 %541
  %544 = vset.pattern.permute.xlu0 3
  %545 = vperm.xlu0 %544, %v188
  %v546 = vpop.permute.xlu0 %545
  %548 = vset.pattern.permute.xlu0 3
  %549 = vperm.xlu0 %548, %v189
  %v550 = vpop.permute.xlu0 %549
  %552 = vset.pattern.permute.xlu0 3
  %553 = vperm.xlu0 %552, %v190
  %v554 = vpop.permute.xlu0 %553
  %556 = vset.pattern.permute.xlu0 3
  %557 = vperm.xlu0 %556, %v191
  %v558 = vpop.permute.xlu0 %557
  %560 = vset.pattern.permute.xlu0 3
  %561 = vperm.xlu0 %560, %v192
  %v562 = vpop.permute.xlu0 %561
  %564 = vset.pattern.permute.xlu0 3
  %565 = vperm.xlu0 %564, %v193
  %v566 = vpop.permute.xlu0 %565
  %568 = vset.pattern.permute.xlu0 3
  %569 = vperm.xlu0 %568, %v194
  %v570 = vpop.permute.xlu0 %569
  %572 = vset.pattern.permute.xlu0 3
  %573 = vperm.xlu0 %572, %v195
  %v574 = vpop.permute.xlu0 %573
  %576 = vset.pattern.permute.xlu0 3
  %577 = vperm.xlu0 %576, %v196
  %v578 = vpop.permute.xlu0 %577
  %v580 = vadd.f32 %v40, %v518
  %v581 = vadd.f32 %v41, %v522
  %v582 = vadd.f32 %v42, %v526
  %v583 = vadd.f32 %v43, %v530
  %v584 = vadd.f32 %v44, %v534
  %v585 = vadd.f32 %v45, %v538
  %v586 = vadd.f32 %v46, %v542
  %v587 = vadd.f32 %v47, %v546
  %v588 = vadd.f32 %v48, %v550
  %v589 = vadd.f32 %v49, %v554
  %v590 = vadd.f32 %v50, %v558
  %v591 = vadd.f32 %v51, %v562
  %v592 = vadd.f32 %v52, %v566
  %v593 = vadd.f32 %v53, %v570
  %v594 = vadd.f32 %v54, %v574
  %v595 = vadd.f32 %v55, %v578
  %v596 = vmax.f32 %v580, %v584
  %v597 = vmax.f32 %v581, %v585
  %v598 = vmax.f32 %v582, %v586
  %v599 = vmax.f32 %v583, %v587
  %v600 = vmax.f32 %v596, %v588
  %v601 = vmax.f32 %v597, %v589
  %v602 = vmax.f32 %v598, %v590
  %v603 = vmax.f32 %v599, %v591
  %v604 = vmax.f32 %v600, %v592
  %v605 = vmax.f32 %v601, %v593
  %v606 = vmax.f32 %v602, %v594
  %v607 = vmax.f32 %v603, %v595
  %v608 = vmax.f32 %v604, %v605
  %v609 = vmax.f32 %v606, %v607
  %v610 = vmax.f32 %v608, %v609
  %v611 = vrot.slane %v610, 4
  %v612 = vmax.f32 %v610, %v611
  %v613 = vrot.slane %v612, 2
  %v614 = vmax.f32 %v612, %v613
  %v615 = vrot.slane %v614, 1
  %v616 = vmax.f32 %v614, %v615
  %617 = vset.pattern.permute.xlu0 4
  %618 = vperm.xlu0 %617, %v181
  %v619 = vpop.permute.xlu0 %618
  %621 = vset.pattern.permute.xlu0 4
  %622 = vperm.xlu0 %621, %v182
  %v623 = vpop.permute.xlu0 %622
  %625 = vset.pattern.permute.xlu0 4
  %626 = vperm.xlu0 %625, %v183
  %v627 = vpop.permute.xlu0 %626
  %629 = vset.pattern.permute.xlu0 4
  %630 = vperm.xlu0 %629, %v184
  %v631 = vpop.permute.xlu0 %630
  %633 = vset.pattern.permute.xlu0 4
  %634 = vperm.xlu0 %633, %v185
  %v635 = vpop.permute.xlu0 %634
  %637 = vset.pattern.permute.xlu0 4
  %638 = vperm.xlu0 %637, %v186
  %v639 = vpop.permute.xlu0 %638
  %641 = vset.pattern.permute.xlu0 4
  %642 = vperm.xlu0 %641, %v187
  %v643 = vpop.permute.xlu0 %642
  %645 = vset.pattern.permute.xlu0 4
  %646 = vperm.xlu0 %645, %v188
  %v647 = vpop.permute.xlu0 %646
  %649 = vset.pattern.permute.xlu0 4
  %650 = vperm.xlu0 %649, %v189
  %v651 = vpop.permute.xlu0 %650
  %653 = vset.pattern.permute.xlu0 4
  %654 = vperm.xlu0 %653, %v190
  %v655 = vpop.permute.xlu0 %654
  %657 = vset.pattern.permute.xlu0 4
  %658 = vperm.xlu0 %657, %v191
  %v659 = vpop.permute.xlu0 %658
  %661 = vset.pattern.permute.xlu0 4
  %662 = vperm.xlu0 %661, %v192
  %v663 = vpop.permute.xlu0 %662
  %665 = vset.pattern.permute.xlu0 4
  %666 = vperm.xlu0 %665, %v193
  %v667 = vpop.permute.xlu0 %666
  %669 = vset.pattern.permute.xlu0 4
  %670 = vperm.xlu0 %669, %v194
  %v671 = vpop.permute.xlu0 %670
  %673 = vset.pattern.permute.xlu0 4
  %674 = vperm.xlu0 %673, %v195
  %v675 = vpop.permute.xlu0 %674
  %677 = vset.pattern.permute.xlu0 4
  %678 = vperm.xlu0 %677, %v196
  %v679 = vpop.permute.xlu0 %678
  %v681 = vadd.f32 %v40, %v619
  %v682 = vadd.f32 %v41, %v623
  %v683 = vadd.f32 %v42, %v627
  %v684 = vadd.f32 %v43, %v631
  %v685 = vadd.f32 %v44, %v635
  %v686 = vadd.f32 %v45, %v639
  %v687 = vadd.f32 %v46, %v643
  %v688 = vadd.f32 %v47, %v647
  %v689 = vadd.f32 %v48, %v651
  %v690 = vadd.f32 %v49, %v655
  %v691 = vadd.f32 %v50, %v659
  %v692 = vadd.f32 %v51, %v663
  %v693 = vadd.f32 %v52, %v667
  %v694 = vadd.f32 %v53, %v671
  %v695 = vadd.f32 %v54, %v675
  %v696 = vadd.f32 %v55, %v679
  %v697 = vmax.f32 %v681, %v685
  %v698 = vmax.f32 %v682, %v686
  %v699 = vmax.f32 %v683, %v687
  %v700 = vmax.f32 %v684, %v688
  %v701 = vmax.f32 %v697, %v689
  %v702 = vmax.f32 %v698, %v690
  %v703 = vmax.f32 %v699, %v691
  %v704 = vmax.f32 %v700, %v692
  %v705 = vmax.f32 %v701, %v693
  %v706 = vmax.f32 %v702, %v694
  %v707 = vmax.f32 %v703, %v695
  %v708 = vmax.f32 %v704, %v696
  %v709 = vmax.f32 %v705, %v706
  %v710 = vmax.f32 %v707, %v708
  %v711 = vmax.f32 %v709, %v710
  %v712 = vrot.slane %v711, 4
  %v713 = vmax.f32 %v711, %v712
  %v714 = vrot.slane %v713, 2
  %v715 = vmax.f32 %v713, %v714
  %v716 = vrot.slane %v715, 1
  %v717 = vmax.f32 %v715, %v716
  %718 = vset.pattern.permute.xlu0 5
  %719 = vperm.xlu0 %718, %v181
  %v720 = vpop.permute.xlu0 %719
  %722 = vset.pattern.permute.xlu0 5
  %723 = vperm.xlu0 %722, %v182
  %v724 = vpop.permute.xlu0 %723
  %726 = vset.pattern.permute.xlu0 5
  %727 = vperm.xlu0 %726, %v183
  %v728 = vpop.permute.xlu0 %727
  %730 = vset.pattern.permute.xlu0 5
  %731 = vperm.xlu0 %730, %v184
  %v732 = vpop.permute.xlu0 %731
  %734 = vset.pattern.permute.xlu0 5
  %735 = vperm.xlu0 %734, %v185
  %v736 = vpop.permute.xlu0 %735
  %738 = vset.pattern.permute.xlu0 5
  %739 = vperm.xlu0 %738, %v186
  %v740 = vpop.permute.xlu0 %739
  %742 = vset.pattern.permute.xlu0 5
  %743 = vperm.xlu0 %742, %v187
  %v744 = vpop.permute.xlu0 %743
  %746 = vset.pattern.permute.xlu0 5
  %747 = vperm.xlu0 %746, %v188
  %v748 = vpop.permute.xlu0 %747
  %750 = vset.pattern.permute.xlu0 5
  %751 = vperm.xlu0 %750, %v189
  %v752 = vpop.permute.xlu0 %751
  %754 = vset.pattern.permute.xlu0 5
  %755 = vperm.xlu0 %754, %v190
  %v756 = vpop.permute.xlu0 %755
  %758 = vset.pattern.permute.xlu0 5
  %759 = vperm.xlu0 %758, %v191
  %v760 = vpop.permute.xlu0 %759
  %762 = vset.pattern.permute.xlu0 5
  %763 = vperm.xlu0 %762, %v192
  %v764 = vpop.permute.xlu0 %763
  %766 = vset.pattern.permute.xlu0 5
  %767 = vperm.xlu0 %766, %v193
  %v768 = vpop.permute.xlu0 %767
  %770 = vset.pattern.permute.xlu0 5
  %771 = vperm.xlu0 %770, %v194
  %v772 = vpop.permute.xlu0 %771
  %774 = vset.pattern.permute.xlu0 5
  %775 = vperm.xlu0 %774, %v195
  %v776 = vpop.permute.xlu0 %775
  %778 = vset.pattern.permute.xlu0 5
  %779 = vperm.xlu0 %778, %v196
  %v780 = vpop.permute.xlu0 %779
  %v782 = vadd.f32 %v40, %v720
  %v783 = vadd.f32 %v41, %v724
  %v784 = vadd.f32 %v42, %v728
  %v785 = vadd.f32 %v43, %v732
  %v786 = vadd.f32 %v44, %v736
  %v787 = vadd.f32 %v45, %v740
  %v788 = vadd.f32 %v46, %v744
  %v789 = vadd.f32 %v47, %v748
  %v790 = vadd.f32 %v48, %v752
  %v791 = vadd.f32 %v49, %v756
  %v792 = vadd.f32 %v50, %v760
  %v793 = vadd.f32 %v51, %v764
  %v794 = vadd.f32 %v52, %v768
  %v795 = vadd.f32 %v53, %v772
  %v796 = vadd.f32 %v54, %v776
  %v797 = vadd.f32 %v55, %v780
  %v798 = vmax.f32 %v782, %v786
  %v799 = vmax.f32 %v783, %v787
  %v800 = vmax.f32 %v784, %v788
  %v801 = vmax.f32 %v785, %v789
  %v802 = vmax.f32 %v798, %v790
  %v803 = vmax.f32 %v799, %v791
  %v804 = vmax.f32 %v800, %v792
  %v805 = vmax.f32 %v801, %v793
  %v806 = vmax.f32 %v802, %v794
  %v807 = vmax.f32 %v803, %v795
  %v808 = vmax.f32 %v804, %v796
  %v809 = vmax.f32 %v805, %v797
  %v810 = vmax.f32 %v806, %v807
  %v811 = vmax.f32 %v808, %v809
  %v812 = vmax.f32 %v810, %v811
  %v813 = vrot.slane %v812, 4
  %v814 = vmax.f32 %v812, %v813
  %v815 = vrot.slane %v814, 2
  %v816 = vmax.f32 %v814, %v815
  %v817 = vrot.slane %v816, 1
  %v818 = vmax.f32 %v816, %v817
  %819 = vset.pattern.permute.xlu0 6
  %820 = vperm.xlu0 %819, %v181
  %v821 = vpop.permute.xlu0 %820
  %823 = vset.pattern.permute.xlu0 6
  %824 = vperm.xlu0 %823, %v182
  %v825 = vpop.permute.xlu0 %824
  %827 = vset.pattern.permute.xlu0 6
  %828 = vperm.xlu0 %827, %v183
  %v829 = vpop.permute.xlu0 %828
  %831 = vset.pattern.permute.xlu0 6
  %832 = vperm.xlu0 %831, %v184
  %v833 = vpop.permute.xlu0 %832
  %835 = vset.pattern.permute.xlu0 6
  %836 = vperm.xlu0 %835, %v185
  %v837 = vpop.permute.xlu0 %836
  %839 = vset.pattern.permute.xlu0 6
  %840 = vperm.xlu0 %839, %v186
  %v841 = vpop.permute.xlu0 %840
  %843 = vset.pattern.permute.xlu0 6
  %844 = vperm.xlu0 %843, %v187
  %v845 = vpop.permute.xlu0 %844
  %847 = vset.pattern.permute.xlu0 6
  %848 = vperm.xlu0 %847, %v188
  %v849 = vpop.permute.xlu0 %848
  %851 = vset.pattern.permute.xlu0 6
  %852 = vperm.xlu0 %851, %v189
  %v853 = vpop.permute.xlu0 %852
  %855 = vset.pattern.permute.xlu0 6
  %856 = vperm.xlu0 %855, %v190
  %v857 = vpop.permute.xlu0 %856
  %859 = vset.pattern.permute.xlu0 6
  %860 = vperm.xlu0 %859, %v191
  %v861 = vpop.permute.xlu0 %860
  %863 = vset.pattern.permute.xlu0 6
  %864 = vperm.xlu0 %863, %v192
  %v865 = vpop.permute.xlu0 %864
  %867 = vset.pattern.permute.xlu0 6
  %868 = vperm.xlu0 %867, %v193
  %v869 = vpop.permute.xlu0 %868
  %871 = vset.pattern.permute.xlu0 6
  %872 = vperm.xlu0 %871, %v194
  %v873 = vpop.permute.xlu0 %872
  %875 = vset.pattern.permute.xlu0 6
  %876 = vperm.xlu0 %875, %v195
  %v877 = vpop.permute.xlu0 %876
  %879 = vset.pattern.permute.xlu0 6
  %880 = vperm.xlu0 %879, %v196
  %v881 = vpop.permute.xlu0 %880
  %v883 = vadd.f32 %v40, %v821
  %v884 = vadd.f32 %v41, %v825
  %v885 = vadd.f32 %v42, %v829
  %v886 = vadd.f32 %v43, %v833
  %v887 = vadd.f32 %v44, %v837
  %v888 = vadd.f32 %v45, %v841
  %v889 = vadd.f32 %v46, %v845
  %v890 = vadd.f32 %v47, %v849
  %v891 = vadd.f32 %v48, %v853
  %v892 = vadd.f32 %v49, %v857
  %v893 = vadd.f32 %v50, %v861
  %v894 = vadd.f32 %v51, %v865
  %v895 = vadd.f32 %v52, %v869
  %v896 = vadd.f32 %v53, %v873
  %v897 = vadd.f32 %v54, %v877
  %v898 = vadd.f32 %v55, %v881
  %v899 = vmax.f32 %v883, %v887
  %v900 = vmax.f32 %v884, %v888
  %v901 = vmax.f32 %v885, %v889
  %v902 = vmax.f32 %v886, %v890
  %v903 = vmax.f32 %v899, %v891
  %v904 = vmax.f32 %v900, %v892
  %v905 = vmax.f32 %v901, %v893
  %v906 = vmax.f32 %v902, %v894
  %v907 = vmax.f32 %v903, %v895
  %v908 = vmax.f32 %v904, %v896
  %v909 = vmax.f32 %v905, %v897
  %v910 = vmax.f32 %v906, %v898
  %v911 = vmax.f32 %v907, %v908
  %v912 = vmax.f32 %v909, %v910
  %v913 = vmax.f32 %v911, %v912
  %v914 = vrot.slane %v913, 4
  %v915 = vmax.f32 %v913, %v914
  %v916 = vrot.slane %v915, 2
  %v917 = vmax.f32 %v915, %v916
  %v918 = vrot.slane %v917, 1
  %v919 = vmax.f32 %v917, %v918
  %920 = vset.pattern.permute.xlu0 7
  %921 = vperm.xlu0 %920, %v181
  %v922 = vpop.permute.xlu0 %921
  %924 = vset.pattern.permute.xlu0 7
  %925 = vperm.xlu0 %924, %v182
  %v926 = vpop.permute.xlu0 %925
  %928 = vset.pattern.permute.xlu0 7
  %929 = vperm.xlu0 %928, %v183
  %v930 = vpop.permute.xlu0 %929
  %932 = vset.pattern.permute.xlu0 7
  %933 = vperm.xlu0 %932, %v184
  %v934 = vpop.permute.xlu0 %933
  %936 = vset.pattern.permute.xlu0 7
  %937 = vperm.xlu0 %936, %v185
  %v938 = vpop.permute.xlu0 %937
  %940 = vset.pattern.permute.xlu0 7
  %941 = vperm.xlu0 %940, %v186
  %v942 = vpop.permute.xlu0 %941
  %944 = vset.pattern.permute.xlu0 7
  %945 = vperm.xlu0 %944, %v187
  %v946 = vpop.permute.xlu0 %945
  %948 = vset.pattern.permute.xlu0 7
  %949 = vperm.xlu0 %948, %v188
  %v950 = vpop.permute.xlu0 %949
  %952 = vset.pattern.permute.xlu0 7
  %953 = vperm.xlu0 %952, %v189
  %v954 = vpop.permute.xlu0 %953
  %956 = vset.pattern.permute.xlu0 7
  %957 = vperm.xlu0 %956, %v190
  %v958 = vpop.permute.xlu0 %957
  %960 = vset.pattern.permute.xlu0 7
  %961 = vperm.xlu0 %960, %v191
  %v962 = vpop.permute.xlu0 %961
  %964 = vset.pattern.permute.xlu0 7
  %965 = vperm.xlu0 %964, %v192
  %v966 = vpop.permute.xlu0 %965
  %968 = vset.pattern.permute.xlu0 7
  %969 = vperm.xlu0 %968, %v193
  %v970 = vpop.permute.xlu0 %969
  %972 = vset.pattern.permute.xlu0 7
  %973 = vperm.xlu0 %972, %v194
  %v974 = vpop.permute.xlu0 %973
  %976 = vset.pattern.permute.xlu0 7
  %977 = vperm.xlu0 %976, %v195
  %v978 = vpop.permute.xlu0 %977
  %980 = vset.pattern.permute.xlu0 7
  %981 = vperm.xlu0 %980, %v196
  %v982 = vpop.permute.xlu0 %981
  %v984 = vadd.f32 %v40, %v922
  %v985 = vadd.f32 %v41, %v926
  %v986 = vadd.f32 %v42, %v930
  %v987 = vadd.f32 %v43, %v934
  %v988 = vadd.f32 %v44, %v938
  %v989 = vadd.f32 %v45, %v942
  %v990 = vadd.f32 %v46, %v946
  %v991 = vadd.f32 %v47, %v950
  %v992 = vadd.f32 %v48, %v954
  %v993 = vadd.f32 %v49, %v958
  %v994 = vadd.f32 %v50, %v962
  %v995 = vadd.f32 %v51, %v966
  %v996 = vadd.f32 %v52, %v970
  %v997 = vadd.f32 %v53, %v974
  %v998 = vadd.f32 %v54, %v978
  %v999 = vadd.f32 %v55, %v982
  %v1000 = vmax.f32 %v984, %v988
  %v1001 = vmax.f32 %v985, %v989
  %v1002 = vmax.f32 %v986, %v990
  %v1003 = vmax.f32 %v987, %v991
  %v1004 = vmax.f32 %v1000, %v992
  %v1005 = vmax.f32 %v1001, %v993
  %v1006 = vmax.f32 %v1002, %v994
  %v1007 = vmax.f32 %v1003, %v995
  %v1008 = vmax.f32 %v1004, %v996
  %v1009 = vmax.f32 %v1005, %v997
  %v1010 = vmax.f32 %v1006, %v998
  %v1011 = vmax.f32 %v1007, %v999
  %v1012 = vmax.f32 %v1008, %v1009
  %v1013 = vmax.f32 %v1010, %v1011
  %v1014 = vmax.f32 %v1012, %v1013
  %v1015 = vrot.slane %v1014, 4
  %v1016 = vmax.f32 %v1014, %v1015
  %v1017 = vrot.slane %v1016, 2
  %v1018 = vmax.f32 %v1016, %v1017
  %v1019 = vrot.slane %v1018, 1
  %v1020 = vmax.f32 %v1018, %v1019
  %v1021 = vld [vmem:[#allocation3] sm:$0xff]
  %vm1022 = vcmask 1040384
  %v1023 = vsel %vm1022, %v313, %v414
  %vm1024 = vcmask 1041408
  %v1025 = vsel %vm1024, %v1023, %v515
  %vm1026 = vcmask 1042432
  %v1027 = vsel %vm1026, %v1025, %v616
  %vm1028 = vcmask 1043456
  %v1029 = vsel %vm1028, %v1027, %v717
  %vm1030 = vcmask 1044480
  %v1031 = vsel %vm1030, %v1029, %v818
  %vm1032 = vcmask 1045504
  %v1033 = vsel %vm1032, %v1031, %v919
  %vm1034 = vcmask 1046528
  %v1035 = vsel %vm1034, %v1033, %v1020
  %v1036 = vmax.f32 %v1021, %v1035
  %1037 = vst [vmem:[#allocation3] sm:$0xff] %v1036
  // Predicated region
  $region22: #{model_forward.10} parent=0 // pred_check
    %p1038 = pneg %p18
  $region23: #{model_forward.10} parent=0 // pred_check_branch
    %1040 = sbr.rel (%p1038) target = $region25
  $region24: #{model_forward.10} parent=0 // pred_region
    %v1041 = vld [vmem:[%s3] sm:$0xff]
    %v1042 = vld [vmem:[#allocation2] sm:$0xff]
    %1044 = vset.pattern.permute.xlu0 0
    %1045 = vperm.xlu0 %1044, %v1041
    %v1046 = vpop.permute.xlu0 %1045
    %v1048 = vmul.f32 %v1042, %v1046
    %vm1049 = vcmp.gt.f32.partialorder %v1041, 0.0
    %v1050 = vld [vmem:[#allocation3] sm:$0xff]
    %v1051 = vsel %vm1049, 1, 0
    %1052 = vset.pattern.permute.xlu0 0
    %1053 = vperm.xlu0 %1052, %v1051
    %v1054 = vpop.permute.xlu0 %1053
    %vm1055 = vcmp.eq.s32.totalorder %v1054, 1
    %v1056 = vsel %vm1055, %v1050, 0.0
    %1057 = vst [vmem:[%s4] sm:$0xff] %v1056
    %1058 = vst [vmem:[%s4 + $0x8] sm:$0xff] %v1048
  $region25: #{model_forward.10} parent=0 // pred_fallthru
    _
  // Predicated region
  $region26: #{model_forward.10} parent=0 // pred_check
    _
  $region27: #{model_forward.10} parent=0 // pred_check_branch
    %1060 = sbr.rel (0) target = $region29
  $region28: #{model_forward.10} parent=0 // pred_region
    _
  $region29: #{model_forward.10} parent=0 // pred_fallthru
    _
  // Predicated region
  $region30: #{model_forward.10} parent=0 // pred_check
    _
  $region31: #{model_forward.10} parent=0 // pred_check_branch
    %1062 = sbr.rel (0) target = $region33
  $region32: #{model_forward.10} parent=0 // pred_region
    _
  $region33: #{model_forward.10} parent=0 // pred_fallthru
    _

// kernel: model_forward.13
$region0: #{model_forward.13}
  #allocation0 [shape = 'u32[]', space=smem, size = 0x4, offset = 0x4, fixed_abs, tag = 'smem constant byte address 0x4 - core index']
  #allocation1 [shape = 'u32[144,128]{1,0:T(1,128)}', space=vmem, size = 0x12000, scoped, tag = 'internal scratch']
  #allocation2 [shape = 'f32[128,128]{1,0:T(8,128)}', space=vmem, size = 0x10000, scoped, tag = 'scratch operand']
  %s0 = inlined_call_operand.vmem [shape: bf16[128,128], index: 0, kind: input, shape index: {}]
  %s1 = inlined_call_operand.vmem [shape: bf16[128,128], index: 1, kind: input, shape index: {}]
  %s2 = inlined_call_operand.vmem [shape: f32[1,128], index: 2, kind: input, shape index: {}]
  %s3 = inlined_call_operand.vmem [shape: bf16[128,128], index: 3, kind: output, shape index: {}]
  %s4 = sld [smem:[#allocation0]]
  $region30: #{model_forward.13} parent=0
    _
  %s6 = ssub.s32 1, %s4
  %s7 = scalar_select 0, %s6, %s4
  // Predicated region
  $region2: #{model_forward.13} parent=0 // pred_check
    _
  $region3: #{model_forward.13} parent=0 // pred_check_branch
    %9 = sbr.rel (0) target = $region5
  $region4: #{model_forward.13} parent=0 // pred_region
    _
  $region5: #{model_forward.13} parent=0 // pred_fallthru
    _
  // Predicated region
  $region6: #{model_forward.13} parent=0 // pred_check
    _
  $region7: #{model_forward.13} parent=0 // pred_check_branch
    %11 = sbr.rel (0) target = $region9
  $region8: #{model_forward.13} parent=0 // pred_region
    _
  $region9: #{model_forward.13} parent=0 // pred_fallthru
    _
  // Predicated region
  $region10: #{model_forward.13} parent=0 // pred_check
    _
  $region11: #{model_forward.13} parent=0 // pred_check_branch
    %13 = sbr.rel (0) target = $region13
  $region12: #{model_forward.13} parent=0 // pred_region
    _
  $region13: #{model_forward.13} parent=0 // pred_fallthru
    _
  %p15 = scmp.eq.s32.totalorder 0, 0
  // Predicated region
  $region14: #{model_forward.13} parent=0 // pred_check
    %p16 = pneg %p15
  $region15: #{model_forward.13} parent=0 // pred_check_branch
    %18 = sbr.rel (%p16) target = $region17
  $region16: #{model_forward.13} parent=0 // pred_region
    %19 = vst [vmem:[#allocation2] sm:$0xff] 0.0
    %20 = vst [vmem:[#allocation2 + $0x8] sm:$0xff] 0.0
    %21 = vst [vmem:[#allocation2 + $0x10] sm:$0xff] 0.0
    %22 = vst [vmem:[#allocation2 + $0x18] sm:$0xff] 0.0
    %23 = vst [vmem:[#allocation2 + $0x20] sm:$0xff] 0.0
    %24 = vst [vmem:[#allocation2 + $0x28] sm:$0xff] 0.0
    %25 = vst [vmem:[#allocation2 + $0x30] sm:$0xff] 0.0
    %26 = vst [vmem:[#allocation2 + $0x38] sm:$0xff] 0.0
    %27 = vst [vmem:[#allocation2 + $0x40] sm:$0xff] 0.0
    %28 = vst [vmem:[#allocation2 + $0x48] sm:$0xff] 0.0
    %29 = vst [vmem:[#allocation2 + $0x50] sm:$0xff] 0.0
    %30 = vst [vmem:[#allocation2 + $0x58] sm:$0xff] 0.0
    %31 = vst [vmem:[#allocation2 + $0x60] sm:$0xff] 0.0
    %32 = vst [vmem:[#allocation2 + $0x68] sm:$0xff] 0.0
    %33 = vst [vmem:[#allocation2 + $0x70] sm:$0xff] 0.0
    %34 = vst [vmem:[#allocation2 + $0x78] sm:$0xff] 0.0
  $region17: #{model_forward.13} parent=0 // pred_fallthru
    _
  %v35 = vld [vmem:[#allocation2] sm:$0xff]
  %v36 = vld [vmem:[#allocation2 + $0x8] sm:$0xff]
  %v37 = vld [vmem:[#allocation2 + $0x10] sm:$0xff]
  %v38 = vld [vmem:[#allocation2 + $0x18] sm:$0xff]
  %v39 = vld [vmem:[#allocation2 + $0x20] sm:$0xff]
  %v40 = vld [vmem:[#allocation2 + $0x28] sm:$0xff]
  %v41 = vld [vmem:[#allocation2 + $0x30] sm:$0xff]
  %v42 = vld [vmem:[#allocation2 + $0x38] sm:$0xff]
  %v43 = vld [vmem:[#allocation2 + $0x40] sm:$0xff]
  %v44 = vld [vmem:[#allocation2 + $0x48] sm:$0xff]
  %v45 = vld [vmem:[#allocation2 + $0x50] sm:$0xff]
  %v46 = vld [vmem:[#allocation2 + $0x58] sm:$0xff]
  %v47 = vld [vmem:[#allocation2 + $0x60] sm:$0xff]
  %v48 = vld [vmem:[#allocation2 + $0x68] sm:$0xff]
  %v49 = vld [vmem:[#allocation2 + $0x70] sm:$0xff]
  %v50 = vld [vmem:[#allocation2 + $0x78] sm:$0xff]
  %v51 = vld [vmem:[%s0] sm:$0xf]
  %v52 = vld [vmem:[%s0 + $0x4] sm:$0xf]
  %v53 = vld [vmem:[%s0 + $0x8] sm:$0xf]
  %v54 = vld [vmem:[%s0 + $0xc] sm:$0xf]
  %v55 = vld [vmem:[%s0 + $0x10] sm:$0xf]
  %v56 = vld [vmem:[%s0 + $0x14] sm:$0xf]
  %v57 = vld [vmem:[%s0 + $0x18] sm:$0xf]
  %v58 = vld [vmem:[%s0 + $0x1c] sm:$0xf]
  %v59 = vld [vmem:[%s0 + $0x20] sm:$0xf]
  %v60 = vld [vmem:[%s0 + $0x24] sm:$0xf]
  %v61 = vld [vmem:[%s0 + $0x28] sm:$0xf]
  %v62 = vld [vmem:[%s0 + $0x2c] sm:$0xf]
  %v63 = vld [vmem:[%s0 + $0x30] sm:$0xf]
  %v64 = vld [vmem:[%s0 + $0x34] sm:$0xf]
  %v65 = vld [vmem:[%s0 + $0x38] sm:$0xf]
  %v66 = vld [vmem:[%s0 + $0x3c] sm:$0xf]
  %v67 = vld [vmem:[%s1] sm:$0xf]
  %v68 = vld [vmem:[%s1 + $0x4] sm:$0xf]
  %v69 = vld [vmem:[%s1 + $0x8] sm:$0xf]
  %v70 = vld [vmem:[%s1 + $0xc] sm:$0xf]
  %v71 = vld [vmem:[%s1 + $0x10] sm:$0xf]
  %v72 = vld [vmem:[%s1 + $0x14] sm:$0xf]
  %v73 = vld [vmem:[%s1 + $0x18] sm:$0xf]
  %v74 = vld [vmem:[%s1 + $0x1c] sm:$0xf]
  %v75 = vld [vmem:[%s1 + $0x20] sm:$0xf]
  %v76 = vld [vmem:[%s1 + $0x24] sm:$0xf]
  %v77 = vld [vmem:[%s1 + $0x28] sm:$0xf]
  %v78 = vld [vmem:[%s1 + $0x2c] sm:$0xf]
  %v79 = vld [vmem:[%s1 + $0x30] sm:$0xf]
  %v80 = vld [vmem:[%s1 + $0x34] sm:$0xf]
  %v81 = vld [vmem:[%s1 + $0x38] sm:$0xf]
  %v82 = vld [vmem:[%s1 + $0x3c] sm:$0xf]
  %v99 = vunpack.c.l.b16 %v51
  %v100 = vunpack.c.l.b16 %v52
  %v101 = vunpack.c.l.b16 %v53
  %v102 = vunpack.c.l.b16 %v54
  %v103 = vunpack.c.l.b16 %v55
  %v104 = vunpack.c.l.b16 %v56
  %v105 = vunpack.c.l.b16 %v57
  %v106 = vunpack.c.l.b16 %v58
  %v107 = vunpack.c.l.b16 %v59
  %v108 = vunpack.c.l.b16 %v60
  %v109 = vunpack.c.l.b16 %v61
  %v110 = vunpack.c.l.b16 %v62
  %v111 = vunpack.c.l.b16 %v63
  %v112 = vunpack.c.l.b16 %v64
  %v113 = vunpack.c.l.b16 %v65
  %v114 = vunpack.c.l.b16 %v66
  %v115 = vpack.c.b16 %v100, %v99
  %v116 = vpack.c.b16 %v102, %v101
  %v117 = vpack.c.b16 %v104, %v103
  %v118 = vpack.c.b16 %v106, %v105
  %v119 = vpack.c.b16 %v108, %v107
  %v120 = vpack.c.b16 %v110, %v109
  %v121 = vpack.c.b16 %v112, %v111
  %v122 = vpack.c.b16 %v114, %v113
  %v147 = vunpack.c.l.b16 %v67
  %v148 = vunpack.c.l.b16 %v68
  %v149 = vunpack.c.l.b16 %v69
  %v150 = vunpack.c.l.b16 %v70
  %v151 = vunpack.c.l.b16 %v71
  %v152 = vunpack.c.l.b16 %v72
  %v153 = vunpack.c.l.b16 %v73
  %v154 = vunpack.c.l.b16 %v74
  %v155 = vunpack.c.l.b16 %v75
  %v156 = vunpack.c.l.b16 %v76
  %v157 = vunpack.c.l.b16 %v77
  %v158 = vunpack.c.l.b16 %v78
  %v159 = vunpack.c.l.b16 %v79
  %v160 = vunpack.c.l.b16 %v80
  %v161 = vunpack.c.l.b16 %v81
  %v162 = vunpack.c.l.b16 %v82
  %v163 = vpack.c.b16 %v148, %v147
  %v164 = vpack.c.b16 %v150, %v149
  %v165 = vpack.c.b16 %v152, %v151
  %v166 = vpack.c.b16 %v154, %v153
  %v167 = vpack.c.b16 %v156, %v155
  %v168 = vpack.c.b16 %v158, %v157
  %v169 = vpack.c.b16 %v160, %v159
  %v170 = vpack.c.b16 %v162, %v161
  %179 = vmatprep.subr.bf16.mxu0 0
  %180 = vmatpush1.bf16.msra.mxu0 %v163
  %181 = vmatprep.subr.bf16.mxu0 0
  %182 = vmatpush1.bf16.msra.mxu0 %v164
  %183 = vmatprep.subr.bf16.mxu0 0
  %184 = vmatpush1.bf16.msra.mxu0 %v165
  %185 = vmatprep.subr.bf16.mxu0 0
  %186 = vmatpush1.bf16.msra.mxu0 %v166
  %187 = vmatprep.subr.bf16.mxu0 0
  %188 = vmatpush1.bf16.msra.mxu0 %v167
  %189 = vmatprep.subr.bf16.mxu0 0
  %190 = vmatpush1.bf16.msra.mxu0 %v168
  %191 = vmatprep.subr.bf16.mxu0 0
  %192 = vmatpush1.bf16.msra.mxu0 %v169
  %193 = vmatprep.subr.bf16.mxu0 0
  %194 = vmatpush1.bf16.msra.mxu0 %v170
  %195 = vmatprep.subr.bf16.mxu0 0
  %196 = vmatpush1.bf16.msra.mxu0 0
  %197 = vmatprep.subr.bf16.mxu0 0
  %198 = vmatpush1.bf16.msra.mxu0 0
  %199 = vmatprep.subr.bf16.mxu0 0
  %200 = vmatpush1.bf16.msra.mxu0 0
  %201 = vmatprep.subr.bf16.mxu0 0
  %202 = vmatpush1.bf16.msra.mxu0 0
  %203 = vmatprep.subr.bf16.mxu0 0
  %204 = vmatpush1.bf16.msra.mxu0 0
  %205 = vmatprep.subr.bf16.mxu0 0
  %206 = vmatpush1.bf16.msra.mxu0 0
  %207 = vmatprep.subr.bf16.mxu0 0
  %208 = vmatpush1.bf16.msra.mxu0 0
  %209 = vmatprep.subr.bf16.mxu0 0
  %210 = vmatpush1.bf16.msra.mxu0 0
  %211 = vmatprep.mubr.bf16.mxu0 0
  %212 = vmatmul.mubr.bf16.gmra.mrb[0].mxu0 %v115
  %v213 = vpop.f32.mrb[0].mxu0
  %v214 = vadd.f32 0.0, %v213
  %v215 = vpop.f32.mrb[0].mxu0
  %v216 = vpop.f32.mrb[0].mxu0
  %v217 = vadd.f32 0.0, %v216
  %v218 = vpop.f32.mrb[0].mxu0
  %219 = vmatprep.mubr.bf16.mxu0 0
  %220 = vmatmul.mubr.bf16.gmra.mrb[0].mxu0 %v116
  %v221 = vpop.f32.mrb[0].mxu0
  %v222 = vadd.f32 0.0, %v221
  %v223 = vpop.f32.mrb[0].mxu0
  %v224 = vpop.f32.mrb[0].mxu0
  %v225 = vadd.f32 0.0, %v224
  %v226 = vpop.f32.mrb[0].mxu0
  %227 = vmatprep.mubr.bf16.mxu0 0
  %228 = vmatmul.mubr.bf16.gmra.mrb[0].mxu0 %v117
  %v229 = vpop.f32.mrb[0].mxu0
  %v230 = vadd.f32 0.0, %v229
  %v231 = vpop.f32.mrb[0].mxu0
  %v232 = vpop.f32.mrb[0].mxu0
  %v233 = vadd.f32 0.0, %v232
  %v234 = vpop.f32.mrb[0].mxu0
  %235 = vmatprep.mubr.bf16.mxu0 0
  %236 = vmatmul.mubr.bf16.gmra.mrb[0].mxu0 %v118
  %v237 = vpop.f32.mrb[0].mxu0
  %v238 = vadd.f32 0.0, %v237
  %v239 = vpop.f32.mrb[0].mxu0
  %v240 = vpop.f32.mrb[0].mxu0
  %v241 = vadd.f32 0.0, %v240
  %v242 = vpop.f32.mrb[0].mxu0
  %243 = vmatprep.mubr.bf16.mxu0 0
  %244 = vmatmul.mubr.bf16.gmra.mrb[0].mxu0 %v119
  %v245 = vpop.f32.mrb[0].mxu0
  %v246 = vadd.f32 0.0, %v245
  %v247 = vpop.f32.mrb[0].mxu0
  %v248 = vpop.f32.mrb[0].mxu0
  %v249 = vadd.f32 0.0, %v248
  %v250 = vpop.f32.mrb[0].mxu0
  %251 = vmatprep.mubr.bf16.mxu0 0
  %252 = vmatmul.mubr.bf16.gmra.mrb[0].mxu0 %v120
  %v253 = vpop.f32.mrb[0].mxu0
  %v254 = vadd.f32 0.0, %v253
  %v255 = vpop.f32.mrb[0].mxu0
  %v256 = vpop.f32.mrb[0].mxu0
  %v257 = vadd.f32 0.0, %v256
  %v258 = vpop.f32.mrb[0].mxu0
  %259 = vmatprep.mubr.bf16.mxu0 0
  %260 = vmatmul.mubr.bf16.gmra.mrb[0].mxu0 %v121
  %v261 = vpop.f32.mrb[0].mxu0
  %v262 = vadd.f32 0.0, %v261
  %v263 = vpop.f32.mrb[0].mxu0
  %v264 = vpop.f32.mrb[0].mxu0
  %v265 = vadd.f32 0.0, %v264
  %v266 = vpop.f32.mrb[0].mxu0
  %267 = vmatprep.mubr.bf16.mxu0 0
  %268 = vmatmul.mubr.bf16.gmra.mrb[0].mxu0 %v122
  %v269 = vpop.f32.mrb[0].mxu0
  %v270 = vadd.f32 0.0, %v269
  %v271 = vpop.f32.mrb[0].mxu0
  %v272 = vpop.f32.mrb[0].mxu0
  %v273 = vadd.f32 0.0, %v272
  %v274 = vpop.f32.mrb[0].mxu0
  %275 = vdwg.mxu0
  %v276 = vadd.f32 %v35, %v214
  %v277 = vadd.f32 %v36, %v217
  %v278 = vadd.f32 %v37, %v222
  %v279 = vadd.f32 %v38, %v225
  %v280 = vadd.f32 %v39, %v230
  %v281 = vadd.f32 %v40, %v233
  %v282 = vadd.f32 %v41, %v238
  %v283 = vadd.f32 %v42, %v241
  %v284 = vadd.f32 %v43, %v246
  %v285 = vadd.f32 %v44, %v249
  %v286 = vadd.f32 %v45, %v254
  %v287 = vadd.f32 %v46, %v257
  %v288 = vadd.f32 %v47, %v262
  %v289 = vadd.f32 %v48, %v265
  %v290 = vadd.f32 %v49, %v270
  %v291 = vadd.f32 %v50, %v273
  %292 = vst [vmem:[#allocation2] sm:$0xff] %v276
  %293 = vst [vmem:[#allocation2 + $0x8] sm:$0xff] %v277
  %294 = vst [vmem:[#allocation2 + $0x10] sm:$0xff] %v278
  %295 = vst [vmem:[#allocation2 + $0x18] sm:$0xff] %v279
  %296 = vst [vmem:[#allocation2 + $0x20] sm:$0xff] %v280
  %297 = vst [vmem:[#allocation2 + $0x28] sm:$0xff] %v281
  %298 = vst [vmem:[#allocation2 + $0x30] sm:$0xff] %v282
  %299 = vst [vmem:[#allocation2 + $0x38] sm:$0xff] %v283
  %300 = vst [vmem:[#allocation2 + $0x40] sm:$0xff] %v284
  %301 = vst [vmem:[#allocation2 + $0x48] sm:$0xff] %v285
  %302 = vst [vmem:[#allocation2 + $0x50] sm:$0xff] %v286
  %303 = vst [vmem:[#allocation2 + $0x58] sm:$0xff] %v287
  %304 = vst [vmem:[#allocation2 + $0x60] sm:$0xff] %v288
  %305 = vst [vmem:[#allocation2 + $0x68] sm:$0xff] %v289
  %306 = vst [vmem:[#allocation2 + $0x70] sm:$0xff] %v290
  %307 = vst [vmem:[#allocation2 + $0x78] sm:$0xff] %v291
  // Predicated region
  $region18: #{model_forward.13} parent=0 // pred_check
    %p308 = pneg %p15
  $region19: #{model_forward.13} parent=0 // pred_check_branch
    %310 = sbr.rel (%p308) target = $region21
  $region20: #{model_forward.13} parent=0 // pred_region
    %v311 = vld [vmem:[#allocation2] sm:$0xff]
    %v312 = vld [vmem:[#allocation2 + $0x8] sm:$0xff]
    %v313 = vld [vmem:[#allocation2 + $0x10] sm:$0xff]
    %v314 = vld [vmem:[#allocation2 + $0x18] sm:$0xff]
    %v315 = vld [vmem:[#allocation2 + $0x20] sm:$0xff]
    %v316 = vld [vmem:[#allocation2 + $0x28] sm:$0xff]
    %v317 = vld [vmem:[#allocation2 + $0x30] sm:$0xff]
    %v318 = vld [vmem:[#allocation2 + $0x38] sm:$0xff]
    %v319 = vld [vmem:[#allocation2 + $0x40] sm:$0xff]
    %v320 = vld [vmem:[#allocation2 + $0x48] sm:$0xff]
    %v321 = vld [vmem:[#allocation2 + $0x50] sm:$0xff]
    %v322 = vld [vmem:[#allocation2 + $0x58] sm:$0xff]
    %v323 = vld [vmem:[#allocation2 + $0x60] sm:$0xff]
    %v324 = vld [vmem:[#allocation2 + $0x68] sm:$0xff]
    %v325 = vld [vmem:[#allocation2 + $0x70] sm:$0xff]
    %v326 = vld [vmem:[#allocation2 + $0x78] sm:$0xff]
    %v327 = vld [vmem:[%s2] sm:$0x1]
    %v329 = vlaneseq
    %v330 = vshrl.u32 %v329, 7
    %v331 = vsub.s32 0, %v330
    %v332 = vrot.slane %v327, %v331
    %v334 = vadd.f32 %v311, %v332
    %v335 = vadd.f32 %v312, %v332
    %v336 = vadd.f32 %v313, %v332
    %v337 = vadd.f32 %v314, %v332
    %v338 = vadd.f32 %v315, %v332
    %v339 = vadd.f32 %v316, %v332
    %v340 = vadd.f32 %v317, %v332
    %v341 = vadd.f32 %v318, %v332
    %v342 = vadd.f32 %v319, %v332
    %v343 = vadd.f32 %v320, %v332
    %v344 = vadd.f32 %v321, %v332
    %v345 = vadd.f32 %v322, %v332
    %v346 = vadd.f32 %v323, %v332
    %v347 = vadd.f32 %v324, %v332
    %v348 = vadd.f32 %v325, %v332
    %v349 = vadd.f32 %v326, %v332
    %v350 = vmax.f32 %v334, 0.0
    %v351 = vmax.f32 %v335, 0.0
    %v352 = vmax.f32 %v336, 0.0
    %v353 = vmax.f32 %v337, 0.0
    %v354 = vmax.f32 %v338, 0.0
    %v355 = vmax.f32 %v339, 0.0
    %v356 = vmax.f32 %v340, 0.0
    %v357 = vmax.f32 %v341, 0.0
    %v358 = vmax.f32 %v342, 0.0
    %v359 = vmax.f32 %v343, 0.0
    %v360 = vmax.f32 %v344, 0.0
    %v361 = vmax.f32 %v345, 0.0
    %v362 = vmax.f32 %v346, 0.0
    %v363 = vmax.f32 %v347, 0.0
    %v364 = vmax.f32 %v348, 0.0
    %v365 = vmax.f32 %v349, 0.0
    %v366 = vpack.c.bf16 %v351, %v350
    %v367 = vpack.c.bf16 %v353, %v352
    %v368 = vpack.c.bf16 %v355, %v354
    %v369 = vpack.c.bf16 %v357, %v356
    %v370 = vpack.c.bf16 %v359, %v358
    %v371 = vpack.c.bf16 %v361, %v360
    %v372 = vpack.c.bf16 %v363, %v362
    %v373 = vpack.c.bf16 %v365, %v364
    %v382 = vunpack.c.l.b16 %v366
    %v383 = vunpack.c.h.b16 %v366
    %v384 = vunpack.c.l.b16 %v367
    %v385 = vunpack.c.h.b16 %v367
    %v386 = vunpack.c.l.b16 %v368
    %v387 = vunpack.c.h.b16 %v368
    %v388 = vunpack.c.l.b16 %v369
    %v389 = vunpack.c.h.b16 %v369
    %v390 = vunpack.c.l.b16 %v370
    %v391 = vunpack.c.h.b16 %v370
    %v392 = vunpack.c.l.b16 %v371
    %v393 = vunpack.c.h.b16 %v371
    %v394 = vunpack.c.l.b16 %v372
    %v395 = vunpack.c.h.b16 %v372
    %v396 = vunpack.c.l.b16 %v373
    %v397 = vunpack.c.h.b16 %v373
    %v398 = vpack.c.b16 %v382, %v382
    %v399 = vpack.c.b16 %v383, %v383
    %v400 = vpack.c.b16 %v384, %v384
    %v401 = vpack.c.b16 %v385, %v385
    %v402 = vpack.c.b16 %v386, %v386
    %v403 = vpack.c.b16 %v387, %v387
    %v404 = vpack.c.b16 %v388, %v388
    %v405 = vpack.c.b16 %v389, %v389
    %v406 = vpack.c.b16 %v390, %v390
    %v407 = vpack.c.b16 %v391, %v391
    %v408 = vpack.c.b16 %v392, %v392
    %v409 = vpack.c.b16 %v393, %v393
    %v410 = vpack.c.b16 %v394, %v394
    %v411 = vpack.c.b16 %v395, %v395
    %v412 = vpack.c.b16 %v396, %v396
    %v413 = vpack.c.b16 %v397, %v397
    %430 = vst [vmem:[%s3] sm:$0xf] %v398
    %431 = vst [vmem:[%s3 + $0x4] sm:$0xf] %v399
    %432 = vst [vmem:[%s3 + $0x8] sm:$0xf] %v400
    %433 = vst [vmem:[%s3 + $0xc] sm:$0xf] %v401
    %434 = vst [vmem:[%s3 + $0x10] sm:$0xf] %v402
    %435 = vst [vmem:[%s3 + $0x14] sm:$0xf] %v403
    %436 = vst [vmem:[%s3 + $0x18] sm:$0xf] %v404
    %437 = vst [vmem:[%s3 + $0x1c] sm:$0xf] %v405
    %438 = vst [vmem:[%s3 + $0x20] sm:$0xf] %v406
    %439 = vst [vmem:[%s3 + $0x24] sm:$0xf] %v407
    %440 = vst [vmem:[%s3 + $0x28] sm:$0xf] %v408
    %441 = vst [vmem:[%s3 + $0x2c] sm:$0xf] %v409
    %442 = vst [vmem:[%s3 + $0x30] sm:$0xf] %v410
    %443 = vst [vmem:[%s3 + $0x34] sm:$0xf] %v411
    %444 = vst [vmem:[%s3 + $0x38] sm:$0xf] %v412
    %445 = vst [vmem:[%s3 + $0x3c] sm:$0xf] %v413
  $region21: #{model_forward.13} parent=0 // pred_fallthru
    _
  // Predicated region
  $region22: #{model_forward.13} parent=0 // pred_check
    _
  $region23: #{model_forward.13} parent=0 // pred_check_branch
    %447 = sbr.rel (0) target = $region25
  $region24: #{model_forward.13} parent=0 // pred_region
    _
  $region25: #{model_forward.13} parent=0 // pred_fallthru
    _
  // Predicated region
  $region26: #{model_forward.13} parent=0 // pred_check
    _
  $region27: #{model_forward.13} parent=0 // pred_check_branch
    %449 = sbr.rel (0) target = $region29
  $region28: #{model_forward.13} parent=0 // pred_region
    _
  $region29: #{model_forward.13} parent=0 // pred_fallthru
    _

// kernel: model_forward.15
$region0: #{model_forward.15}
  #allocation0 [shape = 'u32[]', space=smem, size = 0x4, offset = 0x4, fixed_abs, tag = 'smem constant byte address 0x4 - core index']
  #allocation1 [shape = 'u32[144,128]{1,0:T(1,128)}', space=vmem, size = 0x12000, scoped, tag = 'internal scratch']
  %s0 = inlined_call_operand.vmem [shape: f32[8,256], index: 0, kind: input, shape index: {}]
  %s1 = inlined_call_operand.vmem [shape: f32[8,256], index: 1, kind: input, shape index: {}]
  %s2 = inlined_call_operand.vmem [shape: f32[8,256], index: 2, kind: input, shape index: {}]
  %s3 = inlined_call_operand.vmem [shape: bf16[256,128], index: 3, kind: input, shape index: {}]
  %s4 = inlined_call_operand.vmem [shape: f32[1,128], index: 4, kind: input, shape index: {}]
  %s5 = inlined_call_operand.vmem [shape: bf16[128,128], index: 5, kind: input, shape index: {}]
  %s6 = inlined_call_operand.vmem [shape: f32[1,128], index: 6, kind: input, shape index: {}]
  %s7 = inlined_call_operand.vmem [shape: bf16[128,128], index: 7, kind: input, shape index: {}]
  %s8 = inlined_call_operand.vmem [shape: f32[1,128], index: 8, kind: input, shape index: {}]
  %s9 = inlined_call_operand.vmem [shape: f32[8,128], index: 9, kind: output, shape index: {}]
  %s10 = sld [smem:[#allocation0]]
  $region46: #{model_forward.15} parent=0
    _
  %s12 = ssub.s32 1, %s10
  %s13 = scalar_select 0, %s12, %s10
  // Predicated region
  $region2: #{model_forward.15} parent=0 // pred_check
    _
  $region3: #{model_forward.15} parent=0 // pred_check_branch
    %15 = sbr.rel (0) target = $region5
  $region4: #{model_forward.15} parent=0 // pred_region
    _
  $region5: #{model_forward.15} parent=0 // pred_fallthru
    _
  // Predicated region
  $region6: #{model_forward.15} parent=0 // pred_check
    _
  $region7: #{model_forward.15} parent=0 // pred_check_branch
    %17 = sbr.rel (0) target = $region9
  $region8: #{model_forward.15} parent=0 // pred_region
    _
  $region9: #{model_forward.15} parent=0 // pred_fallthru
    _
  // Predicated region
  $region10: #{model_forward.15} parent=0 // pred_check
    _
  $region11: #{model_forward.15} parent=0 // pred_check_branch
    %19 = sbr.rel (0) target = $region13
  $region12: #{model_forward.15} parent=0 // pred_region
    _
  $region13: #{model_forward.15} parent=0 // pred_fallthru
    _
  // Predicated region
  $region14: #{model_forward.15} parent=0 // pred_check
    _
  $region15: #{model_forward.15} parent=0 // pred_check_branch
    %21 = sbr.rel (0) target = $region17
  $region16: #{model_forward.15} parent=0 // pred_region
    _
  $region17: #{model_forward.15} parent=0 // pred_fallthru
    _
  // Predicated region
  $region18: #{model_forward.15} parent=0 // pred_check
    _
  $region19: #{model_forward.15} parent=0 // pred_check_branch
    %23 = sbr.rel (0) target = $region21
  $region20: #{model_forward.15} parent=0 // pred_region
    _
  $region21: #{model_forward.15} parent=0 // pred_fallthru
    _
  // Predicated region
  $region22: #{model_forward.15} parent=0 // pred_check
    _
  $region23: #{model_forward.15} parent=0 // pred_check_branch
    %25 = sbr.rel (0) target = $region25
  $region24: #{model_forward.15} parent=0 // pred_region
    _
  $region25: #{model_forward.15} parent=0 // pred_fallthru
    _
  // Predicated region
  $region26: #{model_forward.15} parent=0 // pred_check
    _
  $region27: #{model_forward.15} parent=0 // pred_check_branch
    %27 = sbr.rel (0) target = $region29
  $region28: #{model_forward.15} parent=0 // pred_region
    _
  $region29: #{model_forward.15} parent=0 // pred_fallthru
    _
  // Predicated region
  $region30: #{model_forward.15} parent=0 // pred_check
    _
  $region31: #{model_forward.15} parent=0 // pred_check_branch
    %29 = sbr.rel (0) target = $region33
  $region32: #{model_forward.15} parent=0 // pred_region
    _
  $region33: #{model_forward.15} parent=0 // pred_fallthru
    _
  // Predicated region
  $region34: #{model_forward.15} parent=0 // pred_check
    _
  $region35: #{model_forward.15} parent=0 // pred_check_branch
    %31 = sbr.rel (0) target = $region37
  $region36: #{model_forward.15} parent=0 // pred_region
    _
  $region37: #{model_forward.15} parent=0 // pred_fallthru
    _
  %v33 = vld [vmem:[%s0] sm:$0xff]
  %v34 = vld [vmem:[%s0 + $0x8] sm:$0xff]
  %v35 = vmax.f32 %v33, 0.0
  %v36 = vmax.f32 %v34, 0.0
  %v37 = vld [vmem:[%s1] sm:$0xff]
  %v38 = vld [vmem:[%s1 + $0x8] sm:$0xff]
  %v39 = vmax.f32 %v37, 0.0
  %v40 = vmax.f32 %v38, 0.0
  %v41 = vadd.f32 %v35, %v39
  %v42 = vadd.f32 %v36, %v40
  %v43 = vld [vmem:[%s2] sm:$0xff]
  %v44 = vld [vmem:[%s2 + $0x8] sm:$0xff]
  %v45 = vmax.f32 %v43, 0.0
  %v46 = vmax.f32 %v44, 0.0
  %v47 = vadd.f32 %v41, %v45
  %v48 = vadd.f32 %v42, %v46
  %v49 = vpack.c.bf16 %v47, %v47
  %v50 = vpack.c.bf16 %v48, %v48
  %v51 = vld [vmem:[%s3] sm:$0xf]
  %v52 = vld [vmem:[%s3 + $0x4] sm:$0xf]
  %v53 = vld [vmem:[%s3 + $0x8] sm:$0xf]
  %v54 = vld [vmem:[%s3 + $0xc] sm:$0xf]
  %v55 = vld [vmem:[%s3 + $0x10] sm:$0xf]
  %v56 = vld [vmem:[%s3 + $0x14] sm:$0xf]
  %v57 = vld [vmem:[%s3 + $0x18] sm:$0xf]
  %v58 = vld [vmem:[%s3 + $0x1c] sm:$0xf]
  %v59 = vld [vmem:[%s3 + $0x20] sm:$0xf]
  %v60 = vld [vmem:[%s3 + $0x24] sm:$0xf]
  %v61 = vld [vmem:[%s3 + $0x28] sm:$0xf]
  %v62 = vld [vmem:[%s3 + $0x2c] sm:$0xf]
  %v63 = vld [vmem:[%s3 + $0x30] sm:$0xf]
  %v64 = vld [vmem:[%s3 + $0x34] sm:$0xf]
  %v65 = vld [vmem:[%s3 + $0x38] sm:$0xf]
  %v66 = vld [vmem:[%s3 + $0x3c] sm:$0xf]
  %v67 = vld [vmem:[%s3 + $0x40] sm:$0xf]
  %v68 = vld [vmem:[%s3 + $0x44] sm:$0xf]
  %v69 = vld [vmem:[%s3 + $0x48] sm:$0xf]
  %v70 = vld [vmem:[%s3 + $0x4c] sm:$0xf]
  %v71 = vld [vmem:[%s3 + $0x50] sm:$0xf]
  %v72 = vld [vmem:[%s3 + $0x54] sm:$0xf]
  %v73 = vld [vmem:[%s3 + $0x58] sm:$0xf]
  %v74 = vld [vmem:[%s3 + $0x5c] sm:$0xf]
  %v75 = vld [vmem:[%s3 + $0x60] sm:$0xf]
  %v76 = vld [vmem:[%s3 + $0x64] sm:$0xf]
  %v77 = vld [vmem:[%s3 + $0x68] sm:$0xf]
  %v78 = vld [vmem:[%s3 + $0x6c] sm:$0xf]
  %v79 = vld [vmem:[%s3 + $0x70] sm:$0xf]
  %v80 = vld [vmem:[%s3 + $0x74] sm:$0xf]
  %v81 = vld [vmem:[%s3 + $0x78] sm:$0xf]
  %v82 = vld [vmem:[%s3 + $0x7c] sm:$0xf]
  %v83 = vld [vmem:[%s4] sm:$0x1]
  %v85 = vlaneseq
  %v86 = vshrl.u32 %v85, 7
  %v87 = vsub.s32 0, %v86
  %v88 = vrot.slane %v83, %v87
  %v122 = vunpack.c.l.b16 %v51
  %v123 = vunpack.c.l.b16 %v52
  %v124 = vunpack.c.l.b16 %v53
  %v125 = vunpack.c.l.b16 %v54
  %v126 = vunpack.c.l.b16 %v55
  %v127 = vunpack.c.l.b16 %v56
  %v128 = vunpack.c.l.b16 %v57
  %v129 = vunpack.c.l.b16 %v58
  %v130 = vunpack.c.l.b16 %v59
  %v131 = vunpack.c.l.b16 %v60
  %v132 = vunpack.c.l.b16 %v61
  %v133 = vunpack.c.l.b16 %v62
  %v134 = vunpack.c.l.b16 %v63
  %v135 = vunpack.c.l.b16 %v64
  %v136 = vunpack.c.l.b16 %v65
  %v137 = vunpack.c.l.b16 %v66
  %v138 = vunpack.c.l.b16 %v67
  %v139 = vunpack.c.l.b16 %v68
  %v140 = vunpack.c.l.b16 %v69
  %v141 = vunpack.c.l.b16 %v70
  %v142 = vunpack.c.l.b16 %v71
  %v143 = vunpack.c.l.b16 %v72
  %v144 = vunpack.c.l.b16 %v73
  %v145 = vunpack.c.l.b16 %v74
  %v146 = vunpack.c.l.b16 %v75
  %v147 = vunpack.c.l.b16 %v76
  %v148 = vunpack.c.l.b16 %v77
  %v149 = vunpack.c.l.b16 %v78
  %v150 = vunpack.c.l.b16 %v79
  %v151 = vunpack.c.l.b16 %v80
  %v152 = vunpack.c.l.b16 %v81
  %v153 = vunpack.c.l.b16 %v82
  %v154 = vpack.c.b16 %v123, %v122
  %v155 = vpack.c.b16 %v125, %v124
  %v156 = vpack.c.b16 %v127, %v126
  %v157 = vpack.c.b16 %v129, %v128
  %v158 = vpack.c.b16 %v131, %v130
  %v159 = vpack.c.b16 %v133, %v132
  %v160 = vpack.c.b16 %v135, %v134
  %v161 = vpack.c.b16 %v137, %v136
  %v162 = vpack.c.b16 %v139, %v138
  %v163 = vpack.c.b16 %v141, %v140
  %v164 = vpack.c.b16 %v143, %v142
  %v165 = vpack.c.b16 %v145, %v144
  %v166 = vpack.c.b16 %v147, %v146
  %v167 = vpack.c.b16 %v149, %v148
  %v168 = vpack.c.b16 %v151, %v150
  %v169 = vpack.c.b16 %v153, %v152
  %186 = vmatprep.subr.bf16.mxu0 0
  %187 = vmatpush1.bf16.msra.mxu0 %v154
  %188 = vmatprep.subr.bf16.mxu0 0
  %189 = vmatpush1.bf16.msra.mxu0 %v155
  %190 = vmatprep.subr.bf16.mxu0 0
  %191 = vmatpush1.bf16.msra.mxu0 %v156
  %192 = vmatprep.subr.bf16.mxu0 0
  %193 = vmatpush1.bf16.msra.mxu0 %v157
  %194 = vmatprep.subr.bf16.mxu0 0
  %195 = vmatpush1.bf16.msra.mxu0 %v158
  %196 = vmatprep.subr.bf16.mxu0 0
  %197 = vmatpush1.bf16.msra.mxu0 %v159
  %198 = vmatprep.subr.bf16.mxu0 0
  %199 = vmatpush1.bf16.msra.mxu0 %v160
  %200 = vmatprep.subr.bf16.mxu0 0
  %201 = vmatpush1.bf16.msra.mxu0 %v161
  %202 = vmatprep.subr.bf16.mxu0 0
  %203 = vmatpush1.bf16.msra.mxu0 %v162
  %204 = vmatprep.subr.bf16.mxu0 0
  %205 = vmatpush1.bf16.msra.mxu0 %v163
  %206 = vmatprep.subr.bf16.mxu0 0
  %207 = vmatpush1.bf16.msra.mxu0 %v164
  %208 = vmatprep.subr.bf16.mxu0 0
  %209 = vmatpush1.bf16.msra.mxu0 %v165
  %210 = vmatprep.subr.bf16.mxu0 0
  %211 = vmatpush1.bf16.msra.mxu0 %v166
  %212 = vmatprep.subr.bf16.mxu0 0
  %213 = vmatpush1.bf16.msra.mxu0 %v167
  %214 = vmatprep.subr.bf16.mxu0 0
  %215 = vmatpush1.bf16.msra.mxu0 %v168
  %216 = vmatprep.subr.bf16.mxu0 0
  %217 = vmatpush1.bf16.msra.mxu0 %v169
  %218 = vmatprep.mubr.bf16.mxu0 %v50
  %219 = vmatmul.mubr.bf16.gmra.mrb[0].mxu0 %v49
  %v220 = vpop.f32.mrb[0].mxu0
  %v221 = vadd.f32 %v88, %v220
  %v222 = vpop.f32.mrb[0].mxu0
  %v223 = vpop.f32.mrb[0].mxu0
  %v224 = vpop.f32.mrb[0].mxu0
  %225 = vdwg.mxu0
  %v226 = vmax.f32 %v221, 0.0
  %v227 = vpack.c.bf16 %v226, %v226
  %v228 = vld [vmem:[%s5] sm:$0xf]
  %v229 = vld [vmem:[%s5 + $0x4] sm:$0xf]
  %v230 = vld [vmem:[%s5 + $0x8] sm:$0xf]
  %v231 = vld [vmem:[%s5 + $0xc] sm:$0xf]
  %v232 = vld [vmem:[%s5 + $0x10] sm:$0xf]
  %v233 = vld [vmem:[%s5 + $0x14] sm:$0xf]
  %v234 = vld [vmem:[%s5 + $0x18] sm:$0xf]
  %v235 = vld [vmem:[%s5 + $0x1c] sm:$0xf]
  %v236 = vld [vmem:[%s5 + $0x20] sm:$0xf]
  %v237 = vld [vmem:[%s5 + $0x24] sm:$0xf]
  %v238 = vld [vmem:[%s5 + $0x28] sm:$0xf]
  %v239 = vld [vmem:[%s5 + $0x2c] sm:$0xf]
  %v240 = vld [vmem:[%s5 + $0x30] sm:$0xf]
  %v241 = vld [vmem:[%s5 + $0x34] sm:$0xf]
  %v242 = vld [vmem:[%s5 + $0x38] sm:$0xf]
  %v243 = vld [vmem:[%s5 + $0x3c] sm:$0xf]
  %v244 = vld [vmem:[%s6] sm:$0x1]
  %v246 = vlaneseq
  %v247 = vshrl.u32 %v246, 7
  %v248 = vsub.s32 0, %v247
  %v249 = vrot.slane %v244, %v248
  %v267 = vunpack.c.l.b16 %v228
  %v268 = vunpack.c.l.b16 %v229
  %v269 = vunpack.c.l.b16 %v230
  %v270 = vunpack.c.l.b16 %v231
  %v271 = vunpack.c.l.b16 %v232
  %v272 = vunpack.c.l.b16 %v233
  %v273 = vunpack.c.l.b16 %v234
  %v274 = vunpack.c.l.b16 %v235
  %v275 = vunpack.c.l.b16 %v236
  %v276 = vunpack.c.l.b16 %v237
  %v277 = vunpack.c.l.b16 %v238
  %v278 = vunpack.c.l.b16 %v239
  %v279 = vunpack.c.l.b16 %v240
  %v280 = vunpack.c.l.b16 %v241
  %v281 = vunpack.c.l.b16 %v242
  %v282 = vunpack.c.l.b16 %v243
  %v283 = vpack.c.b16 %v268, %v267
  %v284 = vpack.c.b16 %v270, %v269
  %v285 = vpack.c.b16 %v272, %v271
  %v286 = vpack.c.b16 %v274, %v273
  %v287 = vpack.c.b16 %v276, %v275
  %v288 = vpack.c.b16 %v278, %v277
  %v289 = vpack.c.b16 %v280, %v279
  %v290 = vpack.c.b16 %v282, %v281
  %299 = vmatprep.subr.bf16.mxu0 0
  %300 = vmatpush1.bf16.msra.mxu0 %v283
  %301 = vmatprep.subr.bf16.mxu0 0
  %302 = vmatpush1.bf16.msra.mxu0 %v284
  %303 = vmatprep.subr.bf16.mxu0 0
  %304 = vmatpush1.bf16.msra.mxu0 %v285
  %305 = vmatprep.subr.bf16.mxu0 0
  %306 = vmatpush1.bf16.msra.mxu0 %v286
  %307 = vmatprep.subr.bf16.mxu0 0
  %308 = vmatpush1.bf16.msra.mxu0 %v287
  %309 = vmatprep.subr.bf16.mxu0 0
  %310 = vmatpush1.bf16.msra.mxu0 %v288
  %311 = vmatprep.subr.bf16.mxu0 0
  %312 = vmatpush1.bf16.msra.mxu0 %v289
  %313 = vmatprep.subr.bf16.mxu0 0
  %314 = vmatpush1.bf16.msra.mxu0 %v290
  %315 = vmatprep.subr.bf16.mxu0 0
  %316 = vmatpush1.bf16.msra.mxu0 0
  %317 = vmatprep.subr.bf16.mxu0 0
  %318 = vmatpush1.bf16.msra.mxu0 0
  %319 = vmatprep.subr.bf16.mxu0 0
  %320 = vmatpush1.bf16.msra.mxu0 0
  %321 = vmatprep.subr.bf16.mxu0 0
  %322 = vmatpush1.bf16.msra.mxu0 0
  %323 = vmatprep.subr.bf16.mxu0 0
  %324 = vmatpush1.bf16.msra.mxu0 0
  %325 = vmatprep.subr.bf16.mxu0 0
  %326 = vmatpush1.bf16.msra.mxu0 0
  %327 = vmatprep.subr.bf16.mxu0 0
  %328 = vmatpush1.bf16.msra.mxu0 0
  %329 = vmatprep.subr.bf16.mxu0 0
  %330 = vmatpush1.bf16.msra.mxu0 0
  %331 = vmatprep.mubr.bf16.mxu0 0
  %332 = vmatmul.mubr.bf16.gmra.mrb[0].mxu0 %v227
  %v333 = vpop.f32.mrb[0].mxu0
  %v334 = vadd.f32 %v249, %v333
  %v335 = vpop.f32.mrb[0].mxu0
  %v336 = vpop.f32.mrb[0].mxu0
  %v337 = vpop.f32.mrb[0].mxu0
  %338 = vdwg.mxu0
  %v339 = vmax.f32 %v334, 0.0
  %v340 = vpack.c.bf16 %v339, %v339
  %v341 = vld [vmem:[%s7] sm:$0xf]
  %v342 = vld [vmem:[%s7 + $0x4] sm:$0xf]
  %v343 = vld [vmem:[%s7 + $0x8] sm:$0xf]
  %v344 = vld [vmem:[%s7 + $0xc] sm:$0xf]
  %v345 = vld [vmem:[%s7 + $0x10] sm:$0xf]
  %v346 = vld [vmem:[%s7 + $0x14] sm:$0xf]
  %v347 = vld [vmem:[%s7 + $0x18] sm:$0xf]
  %v348 = vld [vmem:[%s7 + $0x1c] sm:$0xf]
  %v349 = vld [vmem:[%s7 + $0x20] sm:$0xf]
  %v350 = vld [vmem:[%s7 + $0x24] sm:$0xf]
  %v351 = vld [vmem:[%s7 + $0x28] sm:$0xf]
  %v352 = vld [vmem:[%s7 + $0x2c] sm:$0xf]
  %v353 = vld [vmem:[%s7 + $0x30] sm:$0xf]
  %v354 = vld [vmem:[%s7 + $0x34] sm:$0xf]
  %v355 = vld [vmem:[%s7 + $0x38] sm:$0xf]
  %v356 = vld [vmem:[%s7 + $0x3c] sm:$0xf]
  %v357 = vld [vmem:[%s8] sm:$0x1]
  %v359 = vlaneseq
  %v360 = vshrl.u32 %v359, 7
  %v361 = vsub.s32 0, %v360
  %v362 = vrot.slane %v357, %v361
  %v380 = vunpack.c.l.b16 %v341
  %v381 = vunpack.c.l.b16 %v342
  %v382 = vunpack.c.l.b16 %v343
  %v383 = vunpack.c.l.b16 %v344
  %v384 = vunpack.c.l.b16 %v345
  %v385 = vunpack.c.l.b16 %v346
  %v386 = vunpack.c.l.b16 %v347
  %v387 = vunpack.c.l.b16 %v348
  %v388 = vunpack.c.l.b16 %v349
  %v389 = vunpack.c.l.b16 %v350
  %v390 = vunpack.c.l.b16 %v351
  %v391 = vunpack.c.l.b16 %v352
  %v392 = vunpack.c.l.b16 %v353
  %v393 = vunpack.c.l.b16 %v354
  %v394 = vunpack.c.l.b16 %v355
  %v395 = vunpack.c.l.b16 %v356
  %v396 = vpack.c.b16 %v381, %v380
  %v397 = vpack.c.b16 %v383, %v382
  %v398 = vpack.c.b16 %v385, %v384
  %v399 = vpack.c.b16 %v387, %v386
  %v400 = vpack.c.b16 %v389, %v388
  %v401 = vpack.c.b16 %v391, %v390
  %v402 = vpack.c.b16 %v393, %v392
  %v403 = vpack.c.b16 %v395, %v394
  %412 = vmatprep.subr.bf16.mxu0 0
  %413 = vmatpush1.bf16.msra.mxu0 %v396
  %414 = vmatprep.subr.bf16.mxu0 0
  %415 = vmatpush1.bf16.msra.mxu0 %v397
  %416 = vmatprep.subr.bf16.mxu0 0
  %417 = vmatpush1.bf16.msra.mxu0 %v398
  %418 = vmatprep.subr.bf16.mxu0 0
  %419 = vmatpush1.bf16.msra.mxu0 %v399
  %420 = vmatprep.subr.bf16.mxu0 0
  %421 = vmatpush1.bf16.msra.mxu0 %v400
  %422 = vmatprep.subr.bf16.mxu0 0
  %423 = vmatpush1.bf16.msra.mxu0 %v401
  %424 = vmatprep.subr.bf16.mxu0 0
  %425 = vmatpush1.bf16.msra.mxu0 %v402
  %426 = vmatprep.subr.bf16.mxu0 0
  %427 = vmatpush1.bf16.msra.mxu0 %v403
  %428 = vmatprep.subr.bf16.mxu0 0
  %429 = vmatpush1.bf16.msra.mxu0 0
  %430 = vmatprep.subr.bf16.mxu0 0
  %431 = vmatpush1.bf16.msra.mxu0 0
  %432 = vmatprep.subr.bf16.mxu0 0
  %433 = vmatpush1.bf16.msra.mxu0 0
  %434 = vmatprep.subr.bf16.mxu0 0
  %435 = vmatpush1.bf16.msra.mxu0 0
  %436 = vmatprep.subr.bf16.mxu0 0
  %437 = vmatpush1.bf16.msra.mxu0 0
  %438 = vmatprep.subr.bf16.mxu0 0
  %439 = vmatpush1.bf16.msra.mxu0 0
  %440 = vmatprep.subr.bf16.mxu0 0
  %441 = vmatpush1.bf16.msra.mxu0 0
  %442 = vmatprep.subr.bf16.mxu0 0
  %443 = vmatpush1.bf16.msra.mxu0 0
  %444 = vmatprep.mubr.bf16.mxu0 0
  %445 = vmatmul.mubr.bf16.gmra.mrb[0].mxu0 %v340
  %v446 = vpop.f32.mrb[0].mxu0
  %v447 = vadd.f32 %v362, %v446
  %v448 = vpop.f32.mrb[0].mxu0
  %v449 = vpop.f32.mrb[0].mxu0
  %v450 = vpop.f32.mrb[0].mxu0
  %451 = vdwg.mxu0
  %v452 = vlaneseq
  %v453 = vand.u32 %v452, 127
  %vm454 = vcmp.lt.s32.totalorder %v453, 4
  %v455 = vsel %vm454, %v447, -1e+30
  %456 = vmax.xlane.f32.xlu0 %v455
  %v457 = vpop.xlane.xlu0 %456
  %v458 = vsub.f32 %v455, %v457
  %v459 = vmul.f32 %v458, 1.442695
  %v460 = vpow.pop %v459
  %461 = vadd.xlane.f32.xlu0 %v460
  %v462 = vpop.xlane.xlu0 %461
  %v463 = vlog2.pop %v462
  %v464 = vmul.f32 %v463, 0.6931472
  %v465 = vsub.f32 %v458, %v464
  %466 = vst [vmem:[%s9] sm:$0xff] %v465
  // Predicated region
  $region38: #{model_forward.15} parent=0 // pred_check
    _
  $region39: #{model_forward.15} parent=0 // pred_check_branch
    %468 = sbr.rel (0) target = $region41
  $region40: #{model_forward.15} parent=0 // pred_region
    _
  $region41: #{model_forward.15} parent=0 // pred_fallthru
    _
  // Predicated region
  $region42: #{model_forward.15} parent=0 // pred_check
    _
  $region43: #{model_forward.15} parent=0 // pred_check_branch
    %470 = sbr.rel (0) target = $region45
  $region44: #{model_forward.15} parent=0 // pred_region
    _
  $region45: #{model_forward.15} parent=0 // pred_fallthru
    _

</llo_original>
